<compile_context>
chip_gen: v7x
topology: tpu7x:2x2x1
jax: 0.10.0
libtpu: 0.0.40
codegen_flags: <defaults>
</compile_context>

<pallas_src>
import jax
import jax.numpy as jnp
from jax import lax
from jax.experimental import pallas as pl
from jax.experimental.pallas import tpu as pltpu

_LN_EPS = 1e-5
_BG = 8                      # sublane-aligned batch rows per recurrence step
_BUFFERED1 = [False]         # set by _probe_single_buffering() in __main__


# ----------------------------- small helpers -----------------------------

def _ln(x, g, b):
    mu = jnp.mean(x, axis=-1, keepdims=True)
    xc = x - mu
    var = jnp.mean(xc * xc, axis=-1, keepdims=True)
    return xc * lax.rsqrt(var + _LN_EPS) * g + b


def _vmem_limit_bytes():
    """~96 MiB on 128-MiB parts (v5e/v6e), ~48 MiB on 64-MiB parts (v7x)."""
    try:
        cap = int(pltpu.get_tpu_info().vmem_capacity_bytes)
    except Exception:
        cap = 64 * 1024 * 1024
    return max(32 * 1024 * 1024, min(cap * 3 // 4, 112 * 1024 * 1024))


def _const_spec(block_shape, index_map):
    """BlockSpec for operands whose block never changes (weights, LN params).

    Single-buffers them when pipeline_mode=pl.Buffered(1) is available
    (halves weight-resident VMEM; probed at runtime for safety)."""
    if _BUFFERED1[0]:
        try:
            return pl.BlockSpec(block_shape, index_map,
                                pipeline_mode=pl.Buffered(1))
        except Exception:
            pass
    return pl.BlockSpec(block_shape, index_map)


def _probe_single_buffering():
    def _copy(x_ref, o_ref):
        o_ref[...] = x_ref[...] * 2.0
    try:
        spec = pl.BlockSpec((8, 128), lambda i: (0, 0),
                            pipeline_mode=pl.Buffered(1))
        y = pl.pallas_call(
            _copy,
            out_shape=jax.ShapeDtypeStruct((8, 128), jnp.float32),
            grid=(2,),
            in_specs=[spec],
            out_specs=pl.BlockSpec((8, 128), lambda i: (0, 0)),
        )(jnp.ones((8, 128), jnp.float32))
        jax.block_until_ready(y)
        return bool(jnp.allclose(y, 2.0))
    except Exception:
        return False


def _pick_time_chunk(T, D, F, vmem_limit):
    """Largest divisor of T whose fused-kernel VMEM footprint fits."""
    per_step = 7 * _BG * D * 4                     # x(in,x2) + y(out,x2) + 3 scratch
    wbytes = 2 * (D * F + F * D + D * D)           # worst-case (ffn) weights, bf16
    if not _BUFFERED1[0]:
        wbytes *= 2
    budget = max(vmem_limit - wbytes - (8 << 20), per_step)
    cap = max(1, min(budget // per_step, 2048))
    best = 1
    for d in range(1, T + 1):
        if T % d == 0 and d <= cap:
            best = d
    return best


def _pick_row_chunk(N, cap):
    for d in range(min(N, cap), 0, -1):
        if N % d == 0 and d % 8 == 0:
            return d
    return N


def _pick_vocab_tile(V, cap):
    for d in range(min(V, cap), 0, -1):
        if V % d == 0 and d % 128 == 0:
            return d
    return V


# ----------------------------- LayerNorm kernel (ln0 only) -----------------------------

def _ln_kernel(x_ref, g_ref, b_ref, o_ref):
    o_ref[...] = _ln(x_ref[...], g_ref[...], b_ref[...])


def layer_norm(xf, g, b, vmem_limit):
    N, D = xf.shape
    Rc = _pick_row_chunk(N, 1024)
    return pl.pallas_call(
        _ln_kernel,
        out_shape=jax.ShapeDtypeStruct((N, D), xf.dtype),
        grid=(N // Rc,),
        in_specs=[
            pl.BlockSpec((Rc, D), lambda i: (i, 0)),
            _const_spec((1, D), lambda i: (0, 0)),
            _const_spec((1, D), lambda i: (0, 0)),
        ],
        out_specs=pl.BlockSpec((Rc, D), lambda i: (i, 0)),
        compiler_params=pltpu.CompilerParams(
            dimension_semantics=("parallel",),
            vmem_limit_bytes=vmem_limit),
    )(xf, g.reshape(1, D), b.reshape(1, D))


# ----------------------------- Attention (LN1 + time-mix + WKV + residual) -----------------------------

def _att_kernel(x_ref, g_ref, b_ref, mk_ref, mv_ref, mr_ref,
                wk_ref, wv_ref, wr_ref, wo_ref, w_ref, u_ref,
                y_ref, xlast_ref, state_ref,
                k_s, v_s, sr_s):
    c = pl.program_id(1)
    Nc = x_ref.shape[1]
    D = x_ref.shape[2]
    Tc = Nc // _BG

    @pl.when(c == 0)
    def _():
        xlast_ref[0] = jnp.zeros((_BG, D), jnp.float32)
        state_ref[0] = jnp.zeros((3, _BG, D), jnp.float32)

    x = x_ref[0]
    xn = _ln(x, g_ref[...], b_ref[...])                     # (Nc, D)

    # Time-shift without a scratch round-trip: previous normalized row comes
    # from the carried xlast block, the rest is a static shift by _BG rows.
    prev = xlast_ref[0]
    if Nc > _BG:
        lxn = jnp.concatenate([prev, xn[:Nc - _BG]], axis=0)
    else:
        lxn = prev
    xlast_ref[0] = xn[Nc - _BG:]

    d = xn - lxn
    xk = (lxn + mk_ref[...] * d).astype(jnp.bfloat16)
    xv = (lxn + mv_ref[...] * d).astype(jnp.bfloat16)
    xr = (lxn + mr_ref[...] * d).astype(jnp.bfloat16)

    k_s[...] = jnp.dot(xk, wk_ref[...], preferred_element_type=jnp.float32)
    v_s[...] = jnp.dot(xv, wv_ref[...], preferred_element_type=jnp.float32)
    sr_s[...] = jax.nn.sigmoid(
        jnp.dot(xr, wr_ref[...], preferred_element_type=jnp.float32))

    w = w_ref[...]       # (1, D)  exp(time_decay), hoisted to the wrapper
    u = u_ref[...]       # (1, D)  time_first

    # WKV recurrence: one sublane-aligned (8, D) tile per timestep; the
    # sigmoid(r) multiply is folded in so sr_s becomes the rwkv buffer.
    def step(t, carry):
        alpha, beta, eps = carry
        r0 = pl.multiple_of(t * _BG, _BG)
        kt = k_s[pl.ds(r0, _BG), :]
        vt = v_s[pl.ds(r0, _BG), :]
        ukt = u + kt
        tau = jnp.maximum(ukt, eps)
        e1 = jnp.exp(eps - tau)
        e2 = jnp.exp(ukt - tau)
        wkv = (e1 * alpha + e2 * vt) / (e1 * beta + e2)
        sr_s[pl.ds(r0, _BG), :] = sr_s[pl.ds(r0, _BG), :] * wkv
        w_eps = eps - w
        eps_n = jnp.maximum(w_eps, kt)
        e1n = jnp.exp(w_eps - eps_n)
        e2n = jnp.exp(kt - eps_n)
        return (e1n * alpha + e2n * vt, e1n * beta + e2n, eps_n)

    alpha, beta, eps = lax.fori_loop(
        0, Tc, step,
        (state_ref[0, 0], state_ref[0, 1], state_ref[0, 2]),
        unroll=min(8, Tc))
    state_ref[0, 0] = alpha
    state_ref[0, 1] = beta
    state_ref[0, 2] = eps

    # Output projection + fused residual add (bf16 operands, f32 accumulate).
    y_ref[0] = x + jnp.dot(sr_s[...].astype(jnp.bfloat16), wo_ref[...],
                           preferred_element_type=jnp.float32)


def attention_block(xg, ln1, p, G, T, D, Tc, vmem_limit):
    # TODO(synk): for very large D (>~1500) on v7x the (D,D) weights should
    # additionally be tiled over a contraction/output grid axis.
    Nc = Tc * _BG
    g, b = ln1
    w = jnp.exp(p['time_decay']).astype(jnp.float32)        # hoisted exp
    wk = p['wk'].astype(jnp.bfloat16)
    wv = p['wv'].astype(jnp.bfloat16)
    wr = p['wr'].astype(jnp.bfloat16)
    wo = p['wo'].astype(jnp.bfloat16)
    y, xlast, state = pl.pallas_call(
        _att_kernel,
        out_shape=(jax.ShapeDtypeStruct((G, T * _BG, D), jnp.float32),
                   jax.ShapeDtypeStruct((G, _BG, D), jnp.float32),
                   jax.ShapeDtypeStruct((G, 3, _BG, D), jnp.float32)),
        grid=(G, T // Tc),
        in_specs=[
            pl.BlockSpec((1, Nc, D), lambda gi, c: (gi, c, 0)),     # x
            _const_spec((1, D), lambda gi, c: (0, 0)),              # ln1 gamma
            _const_spec((1, D), lambda gi, c: (0, 0)),              # ln1 beta
            _const_spec((1, D), lambda gi, c: (0, 0)),              # mix_k
            _const_spec((1, D), lambda gi, c: (0, 0)),              # mix_v
            _const_spec((1, D), lambda gi, c: (0, 0)),              # mix_r
            _const_spec((D, D), lambda gi, c: (0, 0)),              # Wk (bf16)
            _const_spec((D, D), lambda gi, c: (0, 0)),              # Wv (bf16)
            _const_spec((D, D), lambda gi, c: (0, 0)),              # Wr (bf16)
            _const_spec((D, D), lambda gi, c: (0, 0)),              # Wo (bf16)
            _const_spec((1, D), lambda gi, c: (0, 0)),              # exp(decay)
            _const_spec((1, D), lambda gi, c: (0, 0)),              # time_first
        ],
        out_specs=(pl.BlockSpec((1, Nc, D), lambda gi, c: (gi, c, 0)),
                   pl.BlockSpec((1, _BG, D), lambda gi, c: (gi, 0, 0)),
                   pl.BlockSpec((1, 3, _BG, D), lambda gi, c: (gi, 0, 0, 0))),
        scratch_shapes=[
            pltpu.VMEM((Nc, D), jnp.float32),   # k
            pltpu.VMEM((Nc, D), jnp.float32),   # v
            pltpu.VMEM((Nc, D), jnp.float32),   # sigmoid(r) -> rwkv
        ],
        input_output_aliases={0: 0},
        compiler_params=pltpu.CompilerParams(
            dimension_semantics=("parallel", "arbitrary"),
            vmem_limit_bytes=vmem_limit),
    )(xg, g.reshape(1, D), b.reshape(1, D),
      p['mix_k'], p['mix_v'], p['mix_r'],
      wk, wv, wr, wo, w, p['time_first'])
    return y, xlast, state


# ----------------------------- FeedForward (LN2 + channel-mix + residual) -----------------------------

def _ffn_kernel(x_ref, g_ref, b_ref, mk_ref, mr_ref, wk_ref, wr_ref, wv_ref,
                y_ref, xlast_ref):
    c = pl.program_id(1)
    Nc = x_ref.shape[1]
    D = x_ref.shape[2]

    @pl.when(c == 0)
    def _():
        xlast_ref[0] = jnp.zeros((_BG, D), jnp.float32)

    x = x_ref[0]
    xn = _ln(x, g_ref[...], b_ref[...])

    prev = xlast_ref[0]
    if Nc > _BG:
        lxn = jnp.concatenate([prev, xn[:Nc - _BG]], axis=0)
    else:
        lxn = prev
    xlast_ref[0] = xn[Nc - _BG:]

    d = xn - lxn
    xk = (lxn + mk_ref[...] * d).astype(jnp.bfloat16)
    xr = (lxn + mr_ref[...] * d).astype(jnp.bfloat16)

    k = jnp.dot(xk, wk_ref[...], preferred_element_type=jnp.float32)
    k = jnp.maximum(k, 0.0)
    k = (k * k).astype(jnp.bfloat16)
    r = jnp.dot(xr, wr_ref[...], preferred_element_type=jnp.float32)
    vk = jnp.dot(k, wv_ref[...], preferred_element_type=jnp.float32)
    y_ref[0] = x + jax.nn.sigmoid(r) * vk


def ffn_block(xg, ln2, p, G, T, D, Tc, vmem_limit):
    # TODO(synk): for very large D on v7x the (D,4D)/(4D,D) weights should be
    # tiled over the hidden (F) dimension with a VMEM accumulator.
    Nc = Tc * _BG
    F = p['wk'].shape[1]
    g, b = ln2
    wk = p['wk'].astype(jnp.bfloat16)
    wr = p['wr'].astype(jnp.bfloat16)
    wv = p['wv'].astype(jnp.bfloat16)
    y, xlast = pl.pallas_call(
        _ffn_kernel,
        out_shape=(jax.ShapeDtypeStruct((G, T * _BG, D), jnp.float32),
                   jax.ShapeDtypeStruct((G, _BG, D), jnp.float32)),
        grid=(G, T // Tc),
        in_specs=[
            pl.BlockSpec((1, Nc, D), lambda gi, c: (gi, c, 0)),
            _const_spec((1, D), lambda gi, c: (0, 0)),
            _const_spec((1, D), lambda gi, c: (0, 0)),
            _const_spec((1, D), lambda gi, c: (0, 0)),
            _const_spec((1, D), lambda gi, c: (0, 0)),
            _const_spec((D, F), lambda gi, c: (0, 0)),
            _const_spec((D, D), lambda gi, c: (0, 0)),
            _const_spec((F, D), lambda gi, c: (0, 0)),
        ],
        out_specs=(pl.BlockSpec((1, Nc, D), lambda gi, c: (gi, c, 0)),
                   pl.BlockSpec((1, _BG, D), lambda gi, c: (gi, 0, 0))),
        input_output_aliases={0: 0},
        compiler_params=pltpu.CompilerParams(
            dimension_semantics=("parallel", "arbitrary"),
            vmem_limit_bytes=vmem_limit),
    )(xg, g.reshape(1, D), b.reshape(1, D),
      p['mix_k'], p['mix_r'], wk, wr, wv)
    return y, xlast


# ----------------------------- ln_out + head (rows x vocab tiled logits) -----------------------------

def _head_kernel(x_ref, g_ref, b_ref, wh_ref, o_ref):
    xn = _ln(x_ref[...], g_ref[...], b_ref[...]).astype(jnp.bfloat16)
    o_ref[...] = jnp.dot(xn, wh_ref[...], preferred_element_type=jnp.float32)


def head_logits(xf, ln_out, wh, vmem_limit):
    N, D = xf.shape
    V = wh.shape[1]
    Rc = _pick_row_chunk(N, 256)
    Vt = _pick_vocab_tile(V, 512)
    g, b = ln_out
    return pl.pallas_call(
        _head_kernel,
        out_shape=jax.ShapeDtypeStruct((N, V), jnp.float32),
        grid=(N // Rc, V // Vt),
        in_specs=[
            pl.BlockSpec((Rc, D), lambda i, j: (i, 0)),
            _const_spec((1, D), lambda i, j: (0, 0)),
            _const_spec((1, D), lambda i, j: (0, 0)),
            pl.BlockSpec((D, Vt), lambda i, j: (0, j)),
        ],
        out_specs=pl.BlockSpec((Rc, Vt), lambda i, j: (i, j)),
        compiler_params=pltpu.CompilerParams(
            dimension_semantics=("parallel", "parallel"),
            vmem_limit_bytes=vmem_limit),
    )(xf, g.reshape(1, D), b.reshape(1, D), wh.astype(jnp.bfloat16))


# ----------------------------- Full model (glue in plain JAX) -----------------------------

def rwkv_forward(params, tokens):
    B, T = tokens.shape
    D = params['emb'].shape[1]
    V = params['head_w'].shape[1]
    B_pad = ((B + _BG - 1) // _BG) * _BG
    G = B_pad // _BG

    # TODO(synk): embedding gather (data-dependent row gather) stays in plain JAX.
    x = params['emb'][tokens].astype(jnp.float32)            # (B, T, D)
    if B_pad != B:
        x = jnp.pad(x, ((0, B_pad - B), (0, 0), (0, 0)))
    # group-major, time-major-within-group layout: row = t*_BG + b_local
    xg = x.reshape(G, _BG, T, D).transpose(0, 2, 1, 3).reshape(G, T * _BG, D)

    vmem_limit = _vmem_limit_bytes()
    F = params['blocks'][0]['ffn']['wk'].shape[1]
    Tc = _pick_time_chunk(T, D, F, vmem_limit)

    states_out = []
    for blk in params['blocks']:
        if blk['ln0'] is not None:
            flat = layer_norm(xg.reshape(G * T * _BG, D),
                              blk['ln0'][0], blk['ln0'][1], vmem_limit)
            xg = flat.reshape(G, T * _BG, D)
        xg, a_last, a_state = attention_block(
            xg, blk['ln1'], blk['att'], G, T, D, Tc, vmem_limit)
        xg, f_last = ffn_block(xg, blk['ln2'], blk['ffn'], G, T, D, Tc, vmem_limit)
        a_last_b = a_last.reshape(B_pad, D)[:B][:, None, :]
        a_state_b = a_state.transpose(0, 2, 1, 3).reshape(B_pad, 3, D)[:B]
        f_last_b = f_last.reshape(B_pad, D)[:B][:, None, :]
        states_out.append(((a_last_b, a_state_b), f_last_b))

    logits = head_logits(xg.reshape(G * T * _BG, D), params['ln_out'],
                         params['head_w'], vmem_limit)        # (N, V)
    logits = logits.reshape(G, T, _BG, V).transpose(0, 2, 1, 3)
    logits = logits.reshape(B_pad, T, V)[:B]                  # drop padded rows
    # TODO(synk): the torch module's GLOBAL softmax (single max & sum over all
    # B*T*V logits) is kept in plain JAX; it is a trivial reduction + elementwise.
    e = jnp.exp(logits - jnp.max(logits))
    probs = e / jnp.sum(e)
    return probs, states_out


# ----------------------------- Pure-JAX reference (same bf16 matmul precision) -----------------------------

def ref_forward(params, tokens):
    def mm(a, w):
        return jnp.dot(a.astype(jnp.bfloat16), w.astype(jnp.bfloat16),
                       preferred_element_type=jnp.float32)

    x = params['emb'][tokens].astype(jnp.float32)
    B, T, D = x.shape
    for blk in params['blocks']:
        if blk['ln0'] is not None:
            x = _ln(x, blk['ln0'][0], blk['ln0'][1])
        # attention
        p = blk['att']
        xn = _ln(x, blk['ln1'][0], blk['ln1'][1])
        lx = jnp.concatenate([jnp.zeros((B, 1, D)), xn[:, :-1]], axis=1)
        dlt = xn - lx
        k = mm(lx + p['mix_k'] * dlt, p['wk'])
        v = mm(lx + p['mix_v'] * dlt, p['wv'])
        r = mm(lx + p['mix_r'] * dlt, p['wr'])
        sr = jax.nn.sigmoid(r)
        w = jnp.exp(p['time_decay'])[0]
        u = p['time_first'][0]
        alpha = jnp.zeros((B, D)); beta = jnp.zeros((B, D)); eps = jnp.zeros((B, D))
        outs = []
        for t in range(T):
            kt, vt = k[:, t], v[:, t]
            ukt = u + kt
            tau = jnp.maximum(ukt, eps)
            e1, e2 = jnp.exp(eps - tau), jnp.exp(ukt - tau)
            outs.append((e1 * alpha + e2 * vt) / (e1 * beta + e2))
            w_eps = eps - w
            eps = jnp.maximum(w_eps, kt)
            e1, e2 = jnp.exp(w_eps - eps), jnp.exp(kt - eps)
            alpha = e1 * alpha + e2 * vt
            beta = e1 * beta + e2
        wkv = jnp.stack(outs, axis=1)
        x = x + mm(wkv * sr, p['wo'])
        # ffn
        p = blk['ffn']
        xn = _ln(x, blk['ln2'][0], blk['ln2'][1])
        lx = jnp.concatenate([jnp.zeros((B, 1, D)), xn[:, :-1]], axis=1)
        dlt = xn - lx
        kf = jnp.maximum(mm(lx + p['mix_k'] * dlt, p['wk']), 0.0)
        vk = mm(kf * kf, p['wv'])
        rf = mm(lx + p['mix_r'] * dlt, p['wr'])
        x = x + jax.nn.sigmoid(rf) * vk
    xn = _ln(x, params['ln_out'][0], params['ln_out'][1])
    logits = mm(xn, params['head_w'])
    e = jnp.exp(logits - jnp.max(logits))
    return e / jnp.sum(e)


# ----------------------------- Deterministic parameter init -----------------------------

def init_params(key, emb_dim, num_tokens, num_layers):
    D, V, F = emb_dim, num_tokens, emb_dim * 4
    keys = jax.random.split(key, 4 + num_layers * 16)
    idx = [0]

    def nk():
        k = keys[idx[0]]
        idx[0] += 1
        return k

    def lin(in_d, out_d):
        return (jax.random.normal(nk(), (in_d, out_d), jnp.float32)
                * (1.0 / jnp.sqrt(jnp.float32(in_d))))

    def mix():
        return jax.random.uniform(nk(), (1, D), jnp.float32, 0.1, 0.9)

    def ln():
        return (jnp.ones((D,), jnp.float32), jnp.zeros((D,), jnp.float32))

    params = {
        'emb': jax.random.normal(nk(), (V, D), jnp.float32) * 0.1,
        'head_w': lin(D, V),
        'ln_out': ln(),
        'blocks': [],
    }
    for i in range(num_layers):
        att = {
            'time_decay': jax.random.uniform(nk(), (1, D), jnp.float32, -1.0, 0.0),
            'time_first': jax.random.uniform(nk(), (1, D), jnp.float32, -0.5, 0.5),
            'mix_k': mix(), 'mix_v': mix(), 'mix_r': mix(),
            'wk': lin(D, D), 'wv': lin(D, D), 'wr': lin(D, D), 'wo': lin(D, D),
        }
        ffn_p = {
            'mix_k': mix(), 'mix_r': mix(),
            'wk': lin(D, F), 'wr': lin(D, D), 'wv': lin(F, D),
        }
        params['blocks'].append({
            'ln0': ln() if i == 0 else None,   # pre_norm only on block 0
            'ln1': ln(), 'ln2': ln(),
            'att': att, 'ffn': ffn_p,
        })
    return params


if __name__ == "__main__":
    emb_dim, num_tokens, num_layers = 32, 64, 2
    batch, seq = 2, 8

    key = jax.random.PRNGKey(0)
    pkey, tkey = jax.random.split(key)
    params = init_params(pkey, emb_dim, num_tokens, num_layers)
    tokens = jax.random.randint(tkey, (batch, seq), 0, num_tokens, dtype=jnp.int32)

    # Probe whether single-buffered constant operands are supported.
    _BUFFERED1[0] = _probe_single_buffering()

    fwd = jax.jit(rwkv_forward)
    probs, states = fwd(params, tokens)
    probs = jax.block_until_ready(probs)
    assert probs.shape == (batch, seq, num_tokens)

    ref = ref_forward(params, tokens)
    err = float(jnp.max(jnp.abs(probs - ref)))
    assert bool(jnp.allclose(probs, ref, rtol=1e-2, atol=1e-6)), f"max err {err}"

    print("KERNEL_OK")
</pallas_src>

<mosaic_0001>
module attributes {stable_mosaic.version = 11 : i64} {
  func.func @_copy(%arg0: i32, %arg1: memref<8x128xf32, #tpu.memory_space<vmem>>, %arg2: memref<8x128xf32, #tpu.memory_space<vmem>>) attributes {dimension_semantics = [#tpu.dimension_semantics<arbitrary>], iteration_bounds = array<i64: 2>, scalar_prefetch = 0 : i64, scratch_operands = 0 : i64, tpu.core_type = #tpu.core_type<tc>, window_params = [{pipeline_mode = #tpu.pipeline_mode<synchronous>, transform_indices = @transform_0, window_bounds = array<i64: 8, 128>}, {pipeline_mode = #tpu.pipeline_mode<synchronous>, transform_indices = @transform_1, window_bounds = array<i64: 8, 128>}]} {
    %c0 = arith.constant 0 : index
    %c0_0 = arith.constant 0 : index
    %0 = vector.load %arg1[%c0, %c0_0] : memref<8x128xf32, #tpu.memory_space<vmem>>, vector<8x128xf32>
    %cst = arith.constant 2.000000e+00 : f32
    %1 = vector.broadcast %cst : f32 to vector<8x128xf32>
    %2 = arith.mulf %0, %1 : vector<8x128xf32>
    %c0_1 = arith.constant 0 : index
    %c0_2 = arith.constant 0 : index
    %3 = vector.load %arg2[%c0_1, %c0_2] : memref<8x128xf32, #tpu.memory_space<vmem>>, vector<8x128xf32>
    tpu.vector_store %arg2[%c0_1, %c0_2], %2 {strides = array<i32>} : memref<8x128xf32, #tpu.memory_space<vmem>>, vector<8x128xf32>,
    return
  }
  func.func @transform_0(%arg0: i32) -> (i32, i32) {
    %c0_i32 = arith.constant 0 : i32
    %c0_i32_0 = arith.constant 0 : i32
    %c0_i32_1 = arith.constant 0 : i32
    return %c0_i32, %c0_i32_0 : i32, i32
  }
  func.func @transform_1(%arg0: i32) -> (i32, i32) {
    %c0_i32 = arith.constant 0 : i32
    %c0_i32_0 = arith.constant 0 : i32
    %c0_i32_1 = arith.constant 0 : i32
    return %c0_i32, %c0_i32_0 : i32, i32
  }
}

module attributes {stable_mosaic.version = 11 : i64} {
  func.func @_ffn_kernel(%arg0: i32, %arg1: i32, %arg2: memref<1x64x32xf32, #tpu.memory_space<vmem>>, %arg3: memref<1x32xf32, #tpu.memory_space<vmem>>, %arg4: memref<1x32xf32, #tpu.memory_space<vmem>>, %arg5: memref<1x32xf32, #tpu.memory_space<vmem>>, %arg6: memref<1x32xf32, #tpu.memory_space<vmem>>, %arg7: memref<32x128xbf16, #tpu.memory_space<vmem>>, %arg8: memref<32x32xbf16, #tpu.memory_space<vmem>>, %arg9: memref<128x32xbf16, #tpu.memory_space<vmem>>, %arg10: memref<1x64x32xf32, #tpu.memory_space<vmem>>, %arg11: memref<1x8x32xf32, #tpu.memory_space<vmem>>) attributes {dimension_semantics = [#tpu.dimension_semantics<parallel>, #tpu.dimension_semantics<arbitrary>], iteration_bounds = array<i64: 1, 1>, scalar_prefetch = 0 : i64, scratch_operands = 0 : i64, tpu.core_type = #tpu.core_type<tc>, window_params = [{transform_indices = @transform_0, window_bounds = array<i64: 1, 64, 32>}, {pipeline_mode = #tpu.pipeline_mode<synchronous>, transform_indices = @transform_1, window_bounds = array<i64: 1, 32>}, {pipeline_mode = #tpu.pipeline_mode<synchronous>, transform_indices = @transform_2, window_bounds = array<i64: 1, 32>}, {pipeline_mode = #tpu.pipeline_mode<synchronous>, transform_indices = @transform_3, window_bounds = array<i64: 1, 32>}, {pipeline_mode = #tpu.pipeline_mode<synchronous>, transform_indices = @transform_4, window_bounds = array<i64: 1, 32>}, {pipeline_mode = #tpu.pipeline_mode<synchronous>, transform_indices = @transform_5, window_bounds = array<i64: 32, 128>}, {pipeline_mode = #tpu.pipeline_mode<synchronous>, transform_indices = @transform_6, window_bounds = array<i64: 32, 32>}, {pipeline_mode = #tpu.pipeline_mode<synchronous>, transform_indices = @transform_7, window_bounds = array<i64: 128, 32>}, {transform_indices = @transform_8, window_bounds = array<i64: 1, 64, 32>}, {transform_indices = @transform_9, window_bounds = array<i64: 1, 8, 32>}]} {
    %c0_i32 = arith.constant 0 : i32
    %0 = arith.cmpi eq, %arg1, %c0_i32 : i32
    %1 = arith.extui %0 : i1 to i32
    %c0_i32_0 = arith.constant 0 : i32
    %2 = arith.cmpi ne, %1, %c0_i32_0 : i32
    scf.if %2 {
      %cst_35 = arith.constant 0.000000e+00 : f32
      %66 = vector.broadcast %cst_35 : f32 to vector<8x32xf32>
      %c0_36 = arith.constant 0 : index
      %c0_37 = arith.constant 0 : index
      %c0_38 = arith.constant 0 : index
      %67 = vector.load %arg11[%c0_36, %c0_37, %c0_38] : memref<1x8x32xf32, #tpu.memory_space<vmem>>, vector<1x8x32xf32>
      %68 = vector.shape_cast %67 : vector<1x8x32xf32> to vector<8x32xf32>
      %69 = vector.shape_cast %66 : vector<8x32xf32> to vector<1x8x32xf32>
      tpu.vector_store %arg11[%c0_36, %c0_37, %c0_38], %69 {strides = array<i32>} : memref<1x8x32xf32, #tpu.memory_space<vmem>>, vector<1x8x32xf32>,
    } else {
    }
    %c0 = arith.constant 0 : index
    %c0_1 = arith.constant 0 : index
    %c0_2 = arith.constant 0 : index
    %3 = vector.load %arg2[%c0, %c0_1, %c0_2] : memref<1x64x32xf32, #tpu.memory_space<vmem>>, vector<1x64x32xf32>
    %4 = vector.shape_cast %3 : vector<1x64x32xf32> to vector<64x32xf32>
    %c0_3 = arith.constant 0 : index
    %c0_4 = arith.constant 0 : index
    %5 = vector.load %arg3[%c0_3, %c0_4] : memref<1x32xf32, #tpu.memory_space<vmem>>, vector<1x32xf32>
    %c0_5 = arith.constant 0 : index
    %c0_6 = arith.constant 0 : index
    %6 = vector.load %arg4[%c0_5, %c0_6] : memref<1x32xf32, #tpu.memory_space<vmem>>, vector<1x32xf32>
    %cst = arith.constant dense<0.000000e+00> : vector<64xf32>
    %7 = vector.multi_reduction <add>, %4, %cst [1] : vector<64x32xf32> to vector<64xf32>
    %8 = vector.shape_cast %7 : vector<64xf32> to vector<64x1xf32>
    %cst_7 = arith.constant 3.200000e+01 : f32
    %9 = vector.broadcast %cst_7 : f32 to vector<64x1xf32>
    %10 = arith.divf %8, %9 : vector<64x1xf32>
    %11 = vector.broadcast %10 : vector<64x1xf32> to vector<64x32xf32>
    %12 = arith.subf %4, %11 : vector<64x32xf32>
    %13 = arith.mulf %12, %12 : vector<64x32xf32>
    %cst_8 = arith.constant dense<0.000000e+00> : vector<64xf32>
    %14 = vector.multi_reduction <add>, %13, %cst_8 [1] : vector<64x32xf32> to vector<64xf32>
    %15 = vector.shape_cast %14 : vector<64xf32> to vector<64x1xf32>
    %cst_9 = arith.constant 3.200000e+01 : f32
    %16 = vector.broadcast %cst_9 : f32 to vector<64x1xf32>
    %17 = arith.divf %15, %16 : vector<64x1xf32>
    %cst_10 = arith.constant 9.99999974E-6 : f32
    %18 = vector.broadcast %cst_10 : f32 to vector<64x1xf32>
    %19 = arith.addf %17, %18 : vector<64x1xf32>
    %20 = math.rsqrt %19 : vector<64x1xf32>
    %21 = vector.broadcast %20 : vector<64x1xf32> to vector<64x32xf32>
    %22 = arith.mulf %12, %21 : vector<64x32xf32>
    %23 = vector.broadcast %5 : vector<1x32xf32> to vector<64x32xf32>
    %24 = arith.mulf %22, %23 : vector<64x32xf32>
    %25 = vector.broadcast %6 : vector<1x32xf32> to vector<64x32xf32>
    %26 = arith.addf %24, %25 : vector<64x32xf32>
    %c0_11 = arith.constant 0 : index
    %c0_12 = arith.constant 0 : index
    %c0_13 = arith.constant 0 : index
    %27 = vector.load %arg11[%c0_11, %c0_12, %c0_13] : memref<1x8x32xf32, #tpu.memory_space<vmem>>, vector<1x8x32xf32>
    %28 = vector.shape_cast %27 : vector<1x8x32xf32> to vector<8x32xf32>
    %29 = vector.extract_strided_slice %26 {offsets = [0, 0], sizes = [56, 32], strides = [1, 1]} : vector<64x32xf32> to vector<56x32xf32>
    %30 = tpu.concatenate %28, %29 in 0 : vector<8x32xf32>, vector<56x32xf32> -> vector<64x32xf32>
    %31 = vector.extract_strided_slice %26 {offsets = [56, 0], sizes = [8, 32], strides = [1, 1]} : vector<64x32xf32> to vector<8x32xf32>
    %c0_14 = arith.constant 0 : index
    %c0_15 = arith.constant 0 : index
    %c0_16 = arith.constant 0 : index
    %32 = vector.load %arg11[%c0_14, %c0_15, %c0_16] : memref<1x8x32xf32, #tpu.memory_space<vmem>>, vector<1x8x32xf32>
    %33 = vector.shape_cast %32 : vector<1x8x32xf32> to vector<8x32xf32>
    %34 = vector.shape_cast %31 : vector<8x32xf32> to vector<1x8x32xf32>
    tpu.vector_store %arg11[%c0_14, %c0_15, %c0_16], %34 {strides = array<i32>} : memref<1x8x32xf32, #tpu.memory_space<vmem>>, vector<1x8x32xf32>,
    %35 = arith.subf %26, %30 : vector<64x32xf32>
    %c0_17 = arith.constant 0 : index
    %c0_18 = arith.constant 0 : index
    %36 = vector.load %arg5[%c0_17, %c0_18] : memref<1x32xf32, #tpu.memory_space<vmem>>, vector<1x32xf32>
    %37 = vector.broadcast %36 : vector<1x32xf32> to vector<64x32xf32>
    %38 = arith.mulf %37, %35 : vector<64x32xf32>
    %39 = arith.addf %30, %38 : vector<64x32xf32>
    %40 = arith.truncf %39 : vector<64x32xf32> to vector<64x32xbf16>
    %c0_19 = arith.constant 0 : index
    %c0_20 = arith.constant 0 : index
    %41 = vector.load %arg6[%c0_19, %c0_20] : memref<1x32xf32, #tpu.memory_space<vmem>>, vector<1x32xf32>
    %42 = vector.broadcast %41 : vector<1x32xf32> to vector<64x32xf32>
    %43 = arith.mulf %42, %35 : vector<64x32xf32>
    %44 = arith.addf %30, %43 : vector<64x32xf32>
    %45 = arith.truncf %44 : vector<64x32xf32> to vector<64x32xbf16>
    %c0_21 = arith.constant 0 : index
    %c0_22 = arith.constant 0 : index
    %46 = vector.load %arg7[%c0_21, %c0_22] : memref<32x128xbf16, #tpu.memory_space<vmem>>, vector<32x128xbf16>
    %cst_23 = arith.constant dense<0.000000e+00> : vector<64x128xf32>
    %47 = tpu.matmul %40, %46, %cst_23 {dimension_numbers = #tpu.dot_dimension_numbers<[1], [0], [0], [1], [0, 0, 1, 1], [], []>} : vector<64x32xbf16>, vector<32x128xbf16>, vector<64x128xf32> -> vector<64x128xf32>
    %cst_24 = arith.constant 0.000000e+00 : f32
    %48 = vector.broadcast %cst_24 : f32 to vector<64x128xf32>
    %49 = arith.maximumf %47, %48 : vector<64x128xf32>
    %50 = arith.mulf %49, %49 : vector<64x128xf32>
    %51 = arith.truncf %50 : vector<64x128xf32> to vector<64x128xbf16>
    %c0_25 = arith.constant 0 : index
    %c0_26 = arith.constant 0 : index
    %52 = vector.load %arg8[%c0_25, %c0_26] : memref<32x32xbf16, #tpu.memory_space<vmem>>, vector<32x32xbf16>
    %cst_27 = arith.constant dense<0.000000e+00> : vector<64x32xf32>
    %53 = tpu.matmul %45, %52, %cst_27 {dimension_numbers = #tpu.dot_dimension_numbers<[1], [0], [0], [1], [0, 0, 1, 1], [], []>} : vector<64x32xbf16>, vector<32x32xbf16>, vector<64x32xf32> -> vector<64x32xf32>
    %c0_28 = arith.constant 0 : index
    %c0_29 = arith.constant 0 : index
    %54 = vector.load %arg9[%c0_28, %c0_29] : memref<128x32xbf16, #tpu.memory_space<vmem>>, vector<128x32xbf16>
    %cst_30 = arith.constant dense<0.000000e+00> : vector<64x32xf32>
    %55 = tpu.matmul %51, %54, %cst_30 {dimension_numbers = #tpu.dot_dimension_numbers<[1], [0], [0], [1], [0, 0, 1, 1], [], []>} : vector<64x128xbf16>, vector<128x32xbf16>, vector<64x32xf32> -> vector<64x32xf32>
    %56 = arith.negf %53 : vector<64x32xf32>
    %57 = math.exp %56 : vector<64x32xf32>
    %cst_31 = arith.constant 1.000000e+00 : f32
    %58 = vector.broadcast %cst_31 : f32 to vector<64x32xf32>
    %59 = arith.addf %58, %57 : vector<64x32xf32>
    %60 = arith.divf %58, %59 : vector<64x32xf32>
    %61 = arith.mulf %60, %55 : vector<64x32xf32>
    %62 = arith.addf %4, %61 : vector<64x32xf32>
    %c0_32 = arith.constant 0 : index
    %c0_33 = arith.constant 0 : index
    %c0_34 = arith.constant 0 : index
    %63 = vector.load %arg10[%c0_32, %c0_33, %c0_34] : memref<1x64x32xf32, #tpu.memory_space<vmem>>, vector<1x64x32xf32>
    %64 = vector.shape_cast %63 : vector<1x64x32xf32> to vector<64x32xf32>
    %65 = vector.shape_cast %62 : vector<64x32xf32> to vector<1x64x32xf32>
    tpu.vector_store %arg10[%c0_32, %c0_33, %c0_34], %65 {strides = array<i32>} : memref<1x64x32xf32, #tpu.memory_space<vmem>>, vector<1x64x32xf32>,
    return
  }
  func.func @transform_0(%arg0: i32, %arg1: i32) -> (i32, i32, i32) {
    %c0_i32 = arith.constant 0 : i32
    %c0_i32_0 = arith.constant 0 : i32
    return %arg0, %arg1, %c0_i32 : i32, i32, i32
  }
  func.func @transform_1(%arg0: i32, %arg1: i32) -> (i32, i32) {
    %c0_i32 = arith.constant 0 : i32
    %c0_i32_0 = arith.constant 0 : i32
    %c0_i32_1 = arith.constant 0 : i32
    return %c0_i32, %c0_i32_0 : i32, i32
  }
  func.func @transform_2(%arg0: i32, %arg1: i32) -> (i32, i32) {
    %c0_i32 = arith.constant 0 : i32
    %c0_i32_0 = arith.constant 0 : i32
    %c0_i32_1 = arith.constant 0 : i32
    return %c0_i32, %c0_i32_0 : i32, i32
  }
  func.func @transform_3(%arg0: i32, %arg1: i32) -> (i32, i32) {
    %c0_i32 = arith.constant 0 : i32
    %c0_i32_0 = arith.constant 0 : i32
    %c0_i32_1 = arith.constant 0 : i32
    return %c0_i32, %c0_i32_0 : i32, i32
  }
  func.func @transform_4(%arg0: i32, %arg1: i32) -> (i32, i32) {
    %c0_i32 = arith.constant 0 : i32
    %c0_i32_0 = arith.constant 0 : i32
    %c0_i32_1 = arith.constant 0 : i32
    return %c0_i32, %c0_i32_0 : i32, i32
  }
  func.func @transform_5(%arg0: i32, %arg1: i32) -> (i32, i32) {
    %c0_i32 = arith.constant 0 : i32
    %c0_i32_0 = arith.constant 0 : i32
    %c0_i32_1 = arith.constant 0 : i32
    return %c0_i32, %c0_i32_0 : i32, i32
  }
  func.func @transform_6(%arg0: i32, %arg1: i32) -> (i32, i32) {
    %c0_i32 = arith.constant 0 : i32
    %c0_i32_0 = arith.constant 0 : i32
    %c0_i32_1 = arith.constant 0 : i32
    return %c0_i32, %c0_i32_0 : i32, i32
  }
  func.func @transform_7(%arg0: i32, %arg1: i32) -> (i32, i32) {
    %c0_i32 = arith.constant 0 : i32
    %c0_i32_0 = arith.constant 0 : i32
    %c0_i32_1 = arith.constant 0 : i32
    return %c0_i32, %c0_i32_0 : i32, i32
  }
  func.func @transform_8(%arg0: i32, %arg1: i32) -> (i32, i32, i32) {
    %c0_i32 = arith.constant 0 : i32
    %c0_i32_0 = arith.constant 0 : i32
    return %arg0, %arg1, %c0_i32 : i32, i32, i32
  }
  func.func @transform_9(%arg0: i32, %arg1: i32) -> (i32, i32, i32) {
    %c0_i32 = arith.constant 0 : i32
    %c0_i32_0 = arith.constant 0 : i32
    %c0_i32_1 = arith.constant 0 : i32
    return %arg0, %c0_i32, %c0_i32_0 : i32, i32, i32
  }
}

module attributes {stable_mosaic.version = 11 : i64} {
  func.func @_ln_kernel(%arg0: i32, %arg1: memref<64x32xf32, #tpu.memory_space<vmem>>, %arg2: memref<1x32xf32, #tpu.memory_space<vmem>>, %arg3: memref<1x32xf32, #tpu.memory_space<vmem>>, %arg4: memref<64x32xf32, #tpu.memory_space<vmem>>) attributes {dimension_semantics = [#tpu.dimension_semantics<parallel>], iteration_bounds = array<i64: 1>, scalar_prefetch = 0 : i64, scratch_operands = 0 : i64, tpu.core_type = #tpu.core_type<tc>, window_params = [{transform_indices = @transform_0, window_bounds = array<i64: 64, 32>}, {pipeline_mode = #tpu.pipeline_mode<synchronous>, transform_indices = @transform_1, window_bounds = array<i64: 1, 32>}, {pipeline_mode = #tpu.pipeline_mode<synchronous>, transform_indices = @transform_2, window_bounds = array<i64: 1, 32>}, {transform_indices = @transform_3, window_bounds = array<i64: 64, 32>}]} {
    %c0 = arith.constant 0 : index
    %c0_0 = arith.constant 0 : index
    %0 = vector.load %arg1[%c0, %c0_0] : memref<64x32xf32, #tpu.memory_space<vmem>>, vector<64x32xf32>
    %c0_1 = arith.constant 0 : index
    %c0_2 = arith.constant 0 : index
    %1 = vector.load %arg2[%c0_1, %c0_2] : memref<1x32xf32, #tpu.memory_space<vmem>>, vector<1x32xf32>
    %c0_3 = arith.constant 0 : index
    %c0_4 = arith.constant 0 : index
    %2 = vector.load %arg3[%c0_3, %c0_4] : memref<1x32xf32, #tpu.memory_space<vmem>>, vector<1x32xf32>
    %cst = arith.constant dense<0.000000e+00> : vector<64xf32>
    %3 = vector.multi_reduction <add>, %0, %cst [1] : vector<64x32xf32> to vector<64xf32>
    %4 = vector.shape_cast %3 : vector<64xf32> to vector<64x1xf32>
    %cst_5 = arith.constant 3.200000e+01 : f32
    %5 = vector.broadcast %cst_5 : f32 to vector<64x1xf32>
    %6 = arith.divf %4, %5 : vector<64x1xf32>
    %7 = vector.broadcast %6 : vector<64x1xf32> to vector<64x32xf32>
    %8 = arith.subf %0, %7 : vector<64x32xf32>
    %9 = arith.mulf %8, %8 : vector<64x32xf32>
    %cst_6 = arith.constant dense<0.000000e+00> : vector<64xf32>
    %10 = vector.multi_reduction <add>, %9, %cst_6 [1] : vector<64x32xf32> to vector<64xf32>
    %11 = vector.shape_cast %10 : vector<64xf32> to vector<64x1xf32>
    %cst_7 = arith.constant 3.200000e+01 : f32
    %12 = vector.broadcast %cst_7 : f32 to vector<64x1xf32>
    %13 = arith.divf %11, %12 : vector<64x1xf32>
    %cst_8 = arith.constant 9.99999974E-6 : f32
    %14 = vector.broadcast %cst_8 : f32 to vector<64x1xf32>
    %15 = arith.addf %13, %14 : vector<64x1xf32>
    %16 = math.rsqrt %15 : vector<64x1xf32>
    %17 = vector.broadcast %16 : vector<64x1xf32> to vector<64x32xf32>
    %18 = arith.mulf %8, %17 : vector<64x32xf32>
    %19 = vector.broadcast %1 : vector<1x32xf32> to vector<64x32xf32>
    %20 = arith.mulf %18, %19 : vector<64x32xf32>
    %21 = vector.broadcast %2 : vector<1x32xf32> to vector<64x32xf32>
    %22 = arith.addf %20, %21 : vector<64x32xf32>
    %c0_9 = arith.constant 0 : index
    %c0_10 = arith.constant 0 : index
    %23 = vector.load %arg4[%c0_9, %c0_10] : memref<64x32xf32, #tpu.memory_space<vmem>>, vector<64x32xf32>
    tpu.vector_store %arg4[%c0_9, %c0_10], %22 {strides = array<i32>} : memref<64x32xf32, #tpu.memory_space<vmem>>, vector<64x32xf32>,
    return
  }
  func.func @transform_0(%arg0: i32) -> (i32, i32) {
    %c0_i32 = arith.constant 0 : i32
    %c0_i32_0 = arith.constant 0 : i32
    return %arg0, %c0_i32 : i32, i32
  }
  func.func @transform_1(%arg0: i32) -> (i32, i32) {
    %c0_i32 = arith.constant 0 : i32
    %c0_i32_0 = arith.constant 0 : i32
    %c0_i32_1 = arith.constant 0 : i32
    return %c0_i32, %c0_i32_0 : i32, i32
  }
  func.func @transform_2(%arg0: i32) -> (i32, i32) {
    %c0_i32 = arith.constant 0 : i32
    %c0_i32_0 = arith.constant 0 : i32
    %c0_i32_1 = arith.constant 0 : i32
    return %c0_i32, %c0_i32_0 : i32, i32
  }
  func.func @transform_3(%arg0: i32) -> (i32, i32) {
    %c0_i32 = arith.constant 0 : i32
    %c0_i32_0 = arith.constant 0 : i32
    return %arg0, %c0_i32 : i32, i32
  }
}

module attributes {stable_mosaic.version = 11 : i64} {
  func.func @_att_kernel(%arg0: i32, %arg1: i32, %arg2: memref<1x64x32xf32, #tpu.memory_space<vmem>>, %arg3: memref<1x32xf32, #tpu.memory_space<vmem>>, %arg4: memref<1x32xf32, #tpu.memory_space<vmem>>, %arg5: memref<1x32xf32, #tpu.memory_space<vmem>>, %arg6: memref<1x32xf32, #tpu.memory_space<vmem>>, %arg7: memref<1x32xf32, #tpu.memory_space<vmem>>, %arg8: memref<32x32xbf16, #tpu.memory_space<vmem>>, %arg9: memref<32x32xbf16, #tpu.memory_space<vmem>>, %arg10: memref<32x32xbf16, #tpu.memory_space<vmem>>, %arg11: memref<32x32xbf16, #tpu.memory_space<vmem>>, %arg12: memref<1x32xf32, #tpu.memory_space<vmem>>, %arg13: memref<1x32xf32, #tpu.memory_space<vmem>>, %arg14: memref<1x64x32xf32, #tpu.memory_space<vmem>>, %arg15: memref<1x8x32xf32, #tpu.memory_space<vmem>>, %arg16: memref<1x3x8x32xf32, #tpu.memory_space<vmem>>, %arg17: memref<64x32xf32, #tpu.memory_space<vmem>>, %arg18: memref<64x32xf32, #tpu.memory_space<vmem>>, %arg19: memref<64x32xf32, #tpu.memory_space<vmem>>) attributes {dimension_semantics = [#tpu.dimension_semantics<parallel>, #tpu.dimension_semantics<arbitrary>], iteration_bounds = array<i64: 1, 1>, scalar_prefetch = 0 : i64, scratch_operands = 3 : i64, tpu.core_type = #tpu.core_type<tc>, window_params = [{transform_indices = @transform_0, window_bounds = array<i64: 1, 64, 32>}, {pipeline_mode = #tpu.pipeline_mode<synchronous>, transform_indices = @transform_1, window_bounds = array<i64: 1, 32>}, {pipeline_mode = #tpu.pipeline_mode<synchronous>, transform_indices = @transform_2, window_bounds = array<i64: 1, 32>}, {pipeline_mode = #tpu.pipeline_mode<synchronous>, transform_indices = @transform_3, window_bounds = array<i64: 1, 32>}, {pipeline_mode = #tpu.pipeline_mode<synchronous>, transform_indices = @transform_4, window_bounds = array<i64: 1, 32>}, {pipeline_mode = #tpu.pipeline_mode<synchronous>, transform_indices = @transform_5, window_bounds = array<i64: 1, 32>}, {pipeline_mode = #tpu.pipeline_mode<synchronous>, transform_indices = @transform_6, window_bounds = array<i64: 32, 32>}, {pipeline_mode = #tpu.pipeline_mode<synchronous>, transform_indices = @transform_7, window_bounds = array<i64: 32, 32>}, {pipeline_mode = #tpu.pipeline_mode<synchronous>, transform_indices = @transform_8, window_bounds = array<i64: 32, 32>}, {pipeline_mode = #tpu.pipeline_mode<synchronous>, transform_indices = @transform_9, window_bounds = array<i64: 32, 32>}, {pipeline_mode = #tpu.pipeline_mode<synchronous>, transform_indices = @transform_10, window_bounds = array<i64: 1, 32>}, {pipeline_mode = #tpu.pipeline_mode<synchronous>, transform_indices = @transform_11, window_bounds = array<i64: 1, 32>}, {transform_indices = @transform_12, window_bounds = array<i64: 1, 64, 32>}, {transform_indices = @transform_13, window_bounds = array<i64: 1, 8, 32>}, {transform_indices = @transform_14, window_bounds = array<i64: 1, 3, 8, 32>}]} {
    %c0_i32 = arith.constant 0 : i32
    %0 = arith.cmpi eq, %arg1, %c0_i32 : i32
    %1 = arith.extui %0 : i1 to i32
    %c0_i32_0 = arith.constant 0 : i32
    %2 = arith.cmpi ne, %1, %c0_i32_0 : i32
    scf.if %2 {
      %cst_114 = arith.constant 0.000000e+00 : f32
      %378 = vector.broadcast %cst_114 : f32 to vector<8x32xf32>
      %c0_115 = arith.constant 0 : index
      %c0_116 = arith.constant 0 : index
      %c0_117 = arith.constant 0 : index
      %379 = vector.load %arg15[%c0_115, %c0_116, %c0_117] : memref<1x8x32xf32, #tpu.memory_space<vmem>>, vector<1x8x32xf32>
      %380 = vector.shape_cast %379 : vector<1x8x32xf32> to vector<8x32xf32>
      %381 = vector.shape_cast %378 : vector<8x32xf32> to vector<1x8x32xf32>
      tpu.vector_store %arg15[%c0_115, %c0_116, %c0_117], %381 {strides = array<i32>} : memref<1x8x32xf32, #tpu.memory_space<vmem>>, vector<1x8x32xf32>,
      %cst_118 = arith.constant 0.000000e+00 : f32
      %382 = vector.broadcast %cst_118 : f32 to vector<3x8x32xf32>
      %c0_119 = arith.constant 0 : index
      %c0_120 = arith.constant 0 : index
      %c0_121 = arith.constant 0 : index
      %c0_122 = arith.constant 0 : index
      %383 = vector.load %arg16[%c0_119, %c0_120, %c0_121, %c0_122] : memref<1x3x8x32xf32, #tpu.memory_space<vmem>>, vector<1x3x8x32xf32>
      %384 = vector.shape_cast %383 : vector<1x3x8x32xf32> to vector<3x8x32xf32>
      %385 = vector.shape_cast %382 : vector<3x8x32xf32> to vector<1x3x8x32xf32>
      tpu.vector_store %arg16[%c0_119, %c0_120, %c0_121, %c0_122], %385 {strides = array<i32>} : memref<1x3x8x32xf32, #tpu.memory_space<vmem>>, vector<1x3x8x32xf32>,
    } else {
    }
    %c0 = arith.constant 0 : index
    %c0_1 = arith.constant 0 : index
    %c0_2 = arith.constant 0 : index
    %3 = vector.load %arg2[%c0, %c0_1, %c0_2] : memref<1x64x32xf32, #tpu.memory_space<vmem>>, vector<1x64x32xf32>
    %4 = vector.shape_cast %3 : vector<1x64x32xf32> to vector<64x32xf32>
    %c0_3 = arith.constant 0 : index
    %c0_4 = arith.constant 0 : index
    %5 = vector.load %arg3[%c0_3, %c0_4] : memref<1x32xf32, #tpu.memory_space<vmem>>, vector<1x32xf32>
    %c0_5 = arith.constant 0 : index
    %c0_6 = arith.constant 0 : index
    %6 = vector.load %arg4[%c0_5, %c0_6] : memref<1x32xf32, #tpu.memory_space<vmem>>, vector<1x32xf32>
    %cst = arith.constant dense<0.000000e+00> : vector<64xf32>
    %7 = vector.multi_reduction <add>, %4, %cst [1] : vector<64x32xf32> to vector<64xf32>
    %8 = vector.shape_cast %7 : vector<64xf32> to vector<64x1xf32>
    %cst_7 = arith.constant 3.200000e+01 : f32
    %9 = vector.broadcast %cst_7 : f32 to vector<64x1xf32>
    %10 = arith.divf %8, %9 : vector<64x1xf32>
    %11 = vector.broadcast %10 : vector<64x1xf32> to vector<64x32xf32>
    %12 = arith.subf %4, %11 : vector<64x32xf32>
    %13 = arith.mulf %12, %12 : vector<64x32xf32>
    %cst_8 = arith.constant dense<0.000000e+00> : vector<64xf32>
    %14 = vector.multi_reduction <add>, %13, %cst_8 [1] : vector<64x32xf32> to vector<64xf32>
    %15 = vector.shape_cast %14 : vector<64xf32> to vector<64x1xf32>
    %cst_9 = arith.constant 3.200000e+01 : f32
    %16 = vector.broadcast %cst_9 : f32 to vector<64x1xf32>
    %17 = arith.divf %15, %16 : vector<64x1xf32>
    %cst_10 = arith.constant 9.99999974E-6 : f32
    %18 = vector.broadcast %cst_10 : f32 to vector<64x1xf32>
    %19 = arith.addf %17, %18 : vector<64x1xf32>
    %20 = math.rsqrt %19 : vector<64x1xf32>
    %21 = vector.broadcast %20 : vector<64x1xf32> to vector<64x32xf32>
    %22 = arith.mulf %12, %21 : vector<64x32xf32>
    %23 = vector.broadcast %5 : vector<1x32xf32> to vector<64x32xf32>
    %24 = arith.mulf %22, %23 : vector<64x32xf32>
    %25 = vector.broadcast %6 : vector<1x32xf32> to vector<64x32xf32>
    %26 = arith.addf %24, %25 : vector<64x32xf32>
    %c0_11 = arith.constant 0 : index
    %c0_12 = arith.constant 0 : index
    %c0_13 = arith.constant 0 : index
    %27 = vector.load %arg15[%c0_11, %c0_12, %c0_13] : memref<1x8x32xf32, #tpu.memory_space<vmem>>, vector<1x8x32xf32>
    %28 = vector.shape_cast %27 : vector<1x8x32xf32> to vector<8x32xf32>
    %29 = vector.extract_strided_slice %26 {offsets = [0, 0], sizes = [56, 32], strides = [1, 1]} : vector<64x32xf32> to vector<56x32xf32>
    %30 = tpu.concatenate %28, %29 in 0 : vector<8x32xf32>, vector<56x32xf32> -> vector<64x32xf32>
    %31 = vector.extract_strided_slice %26 {offsets = [56, 0], sizes = [8, 32], strides = [1, 1]} : vector<64x32xf32> to vector<8x32xf32>
    %c0_14 = arith.constant 0 : index
    %c0_15 = arith.constant 0 : index
    %c0_16 = arith.constant 0 : index
    %32 = vector.load %arg15[%c0_14, %c0_15, %c0_16] : memref<1x8x32xf32, #tpu.memory_space<vmem>>, vector<1x8x32xf32>
    %33 = vector.shape_cast %32 : vector<1x8x32xf32> to vector<8x32xf32>
    %34 = vector.shape_cast %31 : vector<8x32xf32> to vector<1x8x32xf32>
    tpu.vector_store %arg15[%c0_14, %c0_15, %c0_16], %34 {strides = array<i32>} : memref<1x8x32xf32, #tpu.memory_space<vmem>>, vector<1x8x32xf32>,
    %35 = arith.subf %26, %30 : vector<64x32xf32>
    %c0_17 = arith.constant 0 : index
    %c0_18 = arith.constant 0 : index
    %36 = vector.load %arg5[%c0_17, %c0_18] : memref<1x32xf32, #tpu.memory_space<vmem>>, vector<1x32xf32>
    %37 = vector.broadcast %36 : vector<1x32xf32> to vector<64x32xf32>
    %38 = arith.mulf %37, %35 : vector<64x32xf32>
    %39 = arith.addf %30, %38 : vector<64x32xf32>
    %40 = arith.truncf %39 : vector<64x32xf32> to vector<64x32xbf16>
    %c0_19 = arith.constant 0 : index
    %c0_20 = arith.constant 0 : index
    %41 = vector.load %arg6[%c0_19, %c0_20] : memref<1x32xf32, #tpu.memory_space<vmem>>, vector<1x32xf32>
    %42 = vector.broadcast %41 : vector<1x32xf32> to vector<64x32xf32>
    %43 = arith.mulf %42, %35 : vector<64x32xf32>
    %44 = arith.addf %30, %43 : vector<64x32xf32>
    %45 = arith.truncf %44 : vector<64x32xf32> to vector<64x32xbf16>
    %c0_21 = arith.constant 0 : index
    %c0_22 = arith.constant 0 : index
    %46 = vector.load %arg7[%c0_21, %c0_22] : memref<1x32xf32, #tpu.memory_space<vmem>>, vector<1x32xf32>
    %47 = vector.broadcast %46 : vector<1x32xf32> to vector<64x32xf32>
    %48 = arith.mulf %47, %35 : vector<64x32xf32>
    %49 = arith.addf %30, %48 : vector<64x32xf32>
    %50 = arith.truncf %49 : vector<64x32xf32> to vector<64x32xbf16>
    %c0_23 = arith.constant 0 : index
    %c0_24 = arith.constant 0 : index
    %51 = vector.load %arg8[%c0_23, %c0_24] : memref<32x32xbf16, #tpu.memory_space<vmem>>, vector<32x32xbf16>
    %cst_25 = arith.constant dense<0.000000e+00> : vector<64x32xf32>
    %52 = tpu.matmul %40, %51, %cst_25 {dimension_numbers = #tpu.dot_dimension_numbers<[1], [0], [0], [1], [0, 0, 1, 1], [], []>} : vector<64x32xbf16>, vector<32x32xbf16>, vector<64x32xf32> -> vector<64x32xf32>
    %c0_26 = arith.constant 0 : index
    %c0_27 = arith.constant 0 : index
    %53 = vector.load %arg17[%c0_26, %c0_27] : memref<64x32xf32, #tpu.memory_space<vmem>>, vector<64x32xf32>
    tpu.vector_store %arg17[%c0_26, %c0_27], %52 {strides = array<i32>} : memref<64x32xf32, #tpu.memory_space<vmem>>, vector<64x32xf32>,
    %c0_28 = arith.constant 0 : index
    %c0_29 = arith.constant 0 : index
    %54 = vector.load %arg9[%c0_28, %c0_29] : memref<32x32xbf16, #tpu.memory_space<vmem>>, vector<32x32xbf16>
    %cst_30 = arith.constant dense<0.000000e+00> : vector<64x32xf32>
    %55 = tpu.matmul %45, %54, %cst_30 {dimension_numbers = #tpu.dot_dimension_numbers<[1], [0], [0], [1], [0, 0, 1, 1], [], []>} : vector<64x32xbf16>, vector<32x32xbf16>, vector<64x32xf32> -> vector<64x32xf32>
    %c0_31 = arith.constant 0 : index
    %c0_32 = arith.constant 0 : index
    %56 = vector.load %arg18[%c0_31, %c0_32] : memref<64x32xf32, #tpu.memory_space<vmem>>, vector<64x32xf32>
    tpu.vector_store %arg18[%c0_31, %c0_32], %55 {strides = array<i32>} : memref<64x32xf32, #tpu.memory_space<vmem>>, vector<64x32xf32>,
    %c0_33 = arith.constant 0 : index
    %c0_34 = arith.constant 0 : index
    %57 = vector.load %arg10[%c0_33, %c0_34] : memref<32x32xbf16, #tpu.memory_space<vmem>>, vector<32x32xbf16>
    %cst_35 = arith.constant dense<0.000000e+00> : vector<64x32xf32>
    %58 = tpu.matmul %50, %57, %cst_35 {dimension_numbers = #tpu.dot_dimension_numbers<[1], [0], [0], [1], [0, 0, 1, 1], [], []>} : vector<64x32xbf16>, vector<32x32xbf16>, vector<64x32xf32> -> vector<64x32xf32>
    %59 = arith.negf %58 : vector<64x32xf32>
    %60 = math.exp %59 : vector<64x32xf32>
    %cst_36 = arith.constant 1.000000e+00 : f32
    %61 = vector.broadcast %cst_36 : f32 to vector<64x32xf32>
    %62 = arith.addf %61, %60 : vector<64x32xf32>
    %63 = arith.divf %61, %62 : vector<64x32xf32>
    %c0_37 = arith.constant 0 : index
    %c0_38 = arith.constant 0 : index
    %64 = vector.load %arg19[%c0_37, %c0_38] : memref<64x32xf32, #tpu.memory_space<vmem>>, vector<64x32xf32>
    tpu.vector_store %arg19[%c0_37, %c0_38], %63 {strides = array<i32>} : memref<64x32xf32, #tpu.memory_space<vmem>>, vector<64x32xf32>,
    %c0_39 = arith.constant 0 : index
    %c0_40 = arith.constant 0 : index
    %65 = vector.load %arg12[%c0_39, %c0_40] : memref<1x32xf32, #tpu.memory_space<vmem>>, vector<1x32xf32>
    %c0_41 = arith.constant 0 : index
    %c0_42 = arith.constant 0 : index
    %66 = vector.load %arg13[%c0_41, %c0_42] : memref<1x32xf32, #tpu.memory_space<vmem>>, vector<1x32xf32>
    %c0_43 = arith.constant 0 : index
    %c0_44 = arith.constant 0 : index
    %c0_45 = arith.constant 0 : index
    %c0_46 = arith.constant 0 : index
    %67 = vector.load %arg16[%c0_43, %c0_44, %c0_45, %c0_46] : memref<1x3x8x32xf32, #tpu.memory_space<vmem>>, vector<1x1x8x32xf32>
    %68 = vector.shape_cast %67 : vector<1x1x8x32xf32> to vector<8x32xf32>
    %c0_47 = arith.constant 0 : index
    %c1 = arith.constant 1 : index
    %c0_48 = arith.constant 0 : index
    %c0_49 = arith.constant 0 : index
    %69 = vector.load %arg16[%c0_47, %c1, %c0_48, %c0_49] : memref<1x3x8x32xf32, #tpu.memory_space<vmem>>, vector<1x1x8x32xf32>
    %70 = vector.shape_cast %69 : vector<1x1x8x32xf32> to vector<8x32xf32>
    %c0_50 = arith.constant 0 : index
    %c2 = arith.constant 2 : index
    %c0_51 = arith.constant 0 : index
    %c0_52 = arith.constant 0 : index
    %71 = vector.load %arg16[%c0_50, %c2, %c0_51, %c0_52] : memref<1x3x8x32xf32, #tpu.memory_space<vmem>>, vector<1x1x8x32xf32>
    %72 = vector.shape_cast %71 : vector<1x1x8x32xf32> to vector<8x32xf32>
    %c0_i32_53 = arith.constant 0 : i32
    %c8_i32 = arith.constant 8 : i32
    %73 = arith.muli %c0_i32_53, %c8_i32 : i32
    %74 = tpu.assume_multiple %73, 8 : i32
    %75 = arith.index_cast %74 : i32 to index
    %c0_54 = arith.constant 0 : index
    %76 = vector.load %arg17[%75, %c0_54] : memref<64x32xf32, #tpu.memory_space<vmem>>, vector<8x32xf32>
    %77 = arith.index_cast %74 : i32 to index
    %c0_55 = arith.constant 0 : index
    %78 = vector.load %arg18[%77, %c0_55] : memref<64x32xf32, #tpu.memory_space<vmem>>, vector<8x32xf32>
    %79 = vector.broadcast %66 : vector<1x32xf32> to vector<8x32xf32>
    %80 = arith.addf %79, %76 : vector<8x32xf32>
    %81 = arith.maximumf %80, %72 : vector<8x32xf32>
    %82 = arith.subf %72, %81 : vector<8x32xf32>
    %83 = math.exp %82 : vector<8x32xf32>
    %84 = arith.subf %80, %81 : vector<8x32xf32>
    %85 = math.exp %84 : vector<8x32xf32>
    %86 = arith.mulf %83, %68 : vector<8x32xf32>
    %87 = arith.mulf %85, %78 : vector<8x32xf32>
    %88 = arith.addf %86, %87 : vector<8x32xf32>
    %89 = arith.mulf %83, %70 : vector<8x32xf32>
    %90 = arith.addf %89, %85 : vector<8x32xf32>
    %91 = arith.divf %88, %90 : vector<8x32xf32>
    %92 = arith.index_cast %74 : i32 to index
    %c0_56 = arith.constant 0 : index
    %93 = vector.load %arg19[%92, %c0_56] : memref<64x32xf32, #tpu.memory_space<vmem>>, vector<8x32xf32>
    %94 = arith.mulf %93, %91 : vector<8x32xf32>
    %95 = arith.index_cast %74 : i32 to index
    %c0_57 = arith.constant 0 : index
    %96 = vector.load %arg19[%95, %c0_57] : memref<64x32xf32, #tpu.memory_space<vmem>>, vector<8x32xf32>
    tpu.vector_store %arg19[%95, %c0_57], %94 {strides = array<i32>} : memref<64x32xf32, #tpu.memory_space<vmem>>, vector<8x32xf32>,
    %97 = vector.broadcast %65 : vector<1x32xf32> to vector<8x32xf32>
    %98 = arith.subf %72, %97 : vector<8x32xf32>
    %99 = arith.maximumf %98, %76 : vector<8x32xf32>
    %100 = arith.subf %98, %99 : vector<8x32xf32>
    %101 = math.exp %100 : vector<8x32xf32>
    %102 = arith.subf %76, %99 : vector<8x32xf32>
    %103 = math.exp %102 : vector<8x32xf32>
    %104 = arith.mulf %101, %68 : vector<8x32xf32>
    %105 = arith.mulf %103, %78 : vector<8x32xf32>
    %106 = arith.addf %104, %105 : vector<8x32xf32>
    %107 = arith.mulf %101, %70 : vector<8x32xf32>
    %108 = arith.addf %107, %103 : vector<8x32xf32>
    %c1_i32 = arith.constant 1 : i32
    %c8_i32_58 = arith.constant 8 : i32
    %109 = arith.muli %c1_i32, %c8_i32_58 : i32
    %110 = tpu.assume_multiple %109, 8 : i32
    %111 = arith.index_cast %110 : i32 to index
    %c0_59 = arith.constant 0 : index
    %112 = vector.load %arg17[%111, %c0_59] : memref<64x32xf32, #tpu.memory_space<vmem>>, vector<8x32xf32>
    %113 = arith.index_cast %110 : i32 to index
    %c0_60 = arith.constant 0 : index
    %114 = vector.load %arg18[%113, %c0_60] : memref<64x32xf32, #tpu.memory_space<vmem>>, vector<8x32xf32>
    %115 = vector.broadcast %66 : vector<1x32xf32> to vector<8x32xf32>
    %116 = arith.addf %115, %112 : vector<8x32xf32>
    %117 = arith.maximumf %116, %99 : vector<8x32xf32>
    %118 = arith.subf %99, %117 : vector<8x32xf32>
    %119 = math.exp %118 : vector<8x32xf32>
    %120 = arith.subf %116, %117 : vector<8x32xf32>
    %121 = math.exp %120 : vector<8x32xf32>
    %122 = arith.mulf %119, %106 : vector<8x32xf32>
    %123 = arith.mulf %121, %114 : vector<8x32xf32>
    %124 = arith.addf %122, %123 : vector<8x32xf32>
    %125 = arith.mulf %119, %108 : vector<8x32xf32>
    %126 = arith.addf %125, %121 : vector<8x32xf32>
    %127 = arith.divf %124, %126 : vector<8x32xf32>
    %128 = arith.index_cast %110 : i32 to index
    %c0_61 = arith.constant 0 : index
    %129 = vector.load %arg19[%128, %c0_61] : memref<64x32xf32, #tpu.memory_space<vmem>>, vector<8x32xf32>
    %130 = arith.mulf %129, %127 : vector<8x32xf32>
    %131 = arith.index_cast %110 : i32 to index
    %c0_62 = arith.constant 0 : index
    %132 = vector.load %arg19[%131, %c0_62] : memref<64x32xf32, #tpu.memory_space<vmem>>, vector<8x32xf32>
    tpu.vector_store %arg19[%131, %c0_62], %130 {strides = array<i32>} : memref<64x32xf32, #tpu.memory_space<vmem>>, vector<8x32xf32>,
    %133 = vector.broadcast %65 : vector<1x32xf32> to vector<8x32xf32>
    %134 = arith.subf %99, %133 : vector<8x32xf32>
    %135 = arith.maximumf %134, %112 : vector<8x32xf32>
    %136 = arith.subf %134, %135 : vector<8x32xf32>
    %137 = math.exp %136 : vector<8x32xf32>
    %138 = arith.subf %112, %135 : vector<8x32xf32>
    %139 = math.exp %138 : vector<8x32xf32>
    %140 = arith.mulf %137, %106 : vector<8x32xf32>
    %141 = arith.mulf %139, %114 : vector<8x32xf32>
    %142 = arith.addf %140, %141 : vector<8x32xf32>
    %143 = arith.mulf %137, %108 : vector<8x32xf32>
    %144 = arith.addf %143, %139 : vector<8x32xf32>
    %c2_i32 = arith.constant 2 : i32
    %c8_i32_63 = arith.constant 8 : i32
    %145 = arith.muli %c2_i32, %c8_i32_63 : i32
    %146 = tpu.assume_multiple %145, 8 : i32
    %147 = arith.index_cast %146 : i32 to index
    %c0_64 = arith.constant 0 : index
    %148 = vector.load %arg17[%147, %c0_64] : memref<64x32xf32, #tpu.memory_space<vmem>>, vector<8x32xf32>
    %149 = arith.index_cast %146 : i32 to index
    %c0_65 = arith.constant 0 : index
    %150 = vector.load %arg18[%149, %c0_65] : memref<64x32xf32, #tpu.memory_space<vmem>>, vector<8x32xf32>
    %151 = vector.broadcast %66 : vector<1x32xf32> to vector<8x32xf32>
    %152 = arith.addf %151, %148 : vector<8x32xf32>
    %153 = arith.maximumf %152, %135 : vector<8x32xf32>
    %154 = arith.subf %135, %153 : vector<8x32xf32>
    %155 = math.exp %154 : vector<8x32xf32>
    %156 = arith.subf %152, %153 : vector<8x32xf32>
    %157 = math.exp %156 : vector<8x32xf32>
    %158 = arith.mulf %155, %142 : vector<8x32xf32>
    %159 = arith.mulf %157, %150 : vector<8x32xf32>
    %160 = arith.addf %158, %159 : vector<8x32xf32>
    %161 = arith.mulf %155, %144 : vector<8x32xf32>
    %162 = arith.addf %161, %157 : vector<8x32xf32>
    %163 = arith.divf %160, %162 : vector<8x32xf32>
    %164 = arith.index_cast %146 : i32 to index
    %c0_66 = arith.constant 0 : index
    %165 = vector.load %arg19[%164, %c0_66] : memref<64x32xf32, #tpu.memory_space<vmem>>, vector<8x32xf32>
    %166 = arith.mulf %165, %163 : vector<8x32xf32>
    %167 = arith.index_cast %146 : i32 to index
    %c0_67 = arith.constant 0 : index
    %168 = vector.load %arg19[%167, %c0_67] : memref<64x32xf32, #tpu.memory_space<vmem>>, vector<8x32xf32>
    tpu.vector_store %arg19[%167, %c0_67], %166 {strides = array<i32>} : memref<64x32xf32, #tpu.memory_space<vmem>>, vector<8x32xf32>,
    %169 = vector.broadcast %65 : vector<1x32xf32> to vector<8x32xf32>
    %170 = arith.subf %135, %169 : vector<8x32xf32>
    %171 = arith.maximumf %170, %148 : vector<8x32xf32>
    %172 = arith.subf %170, %171 : vector<8x32xf32>
    %173 = math.exp %172 : vector<8x32xf32>
    %174 = arith.subf %148, %171 : vector<8x32xf32>
    %175 = math.exp %174 : vector<8x32xf32>
    %176 = arith.mulf %173, %142 : vector<8x32xf32>
    %177 = arith.mulf %175, %150 : vector<8x32xf32>
    %178 = arith.addf %176, %177 : vector<8x32xf32>
    %179 = arith.mulf %173, %144 : vector<8x32xf32>
    %180 = arith.addf %179, %175 : vector<8x32xf32>
    %c3_i32 = arith.constant 3 : i32
    %c8_i32_68 = arith.constant 8 : i32
    %181 = arith.muli %c3_i32, %c8_i32_68 : i32
    %182 = tpu.assume_multiple %181, 8 : i32
    %183 = arith.index_cast %182 : i32 to index
    %c0_69 = arith.constant 0 : index
    %184 = vector.load %arg17[%183, %c0_69] : memref<64x32xf32, #tpu.memory_space<vmem>>, vector<8x32xf32>
    %185 = arith.index_cast %182 : i32 to index
    %c0_70 = arith.constant 0 : index
    %186 = vector.load %arg18[%185, %c0_70] : memref<64x32xf32, #tpu.memory_space<vmem>>, vector<8x32xf32>
    %187 = vector.broadcast %66 : vector<1x32xf32> to vector<8x32xf32>
    %188 = arith.addf %187, %184 : vector<8x32xf32>
    %189 = arith.maximumf %188, %171 : vector<8x32xf32>
    %190 = arith.subf %171, %189 : vector<8x32xf32>
    %191 = math.exp %190 : vector<8x32xf32>
    %192 = arith.subf %188, %189 : vector<8x32xf32>
    %193 = math.exp %192 : vector<8x32xf32>
    %194 = arith.mulf %191, %178 : vector<8x32xf32>
    %195 = arith.mulf %193, %186 : vector<8x32xf32>
    %196 = arith.addf %194, %195 : vector<8x32xf32>
    %197 = arith.mulf %191, %180 : vector<8x32xf32>
    %198 = arith.addf %197, %193 : vector<8x32xf32>
    %199 = arith.divf %196, %198 : vector<8x32xf32>
    %200 = arith.index_cast %182 : i32 to index
    %c0_71 = arith.constant 0 : index
    %201 = vector.load %arg19[%200, %c0_71] : memref<64x32xf32, #tpu.memory_space<vmem>>, vector<8x32xf32>
    %202 = arith.mulf %201, %199 : vector<8x32xf32>
    %203 = arith.index_cast %182 : i32 to index
    %c0_72 = arith.constant 0 : index
    %204 = vector.load %arg19[%203, %c0_72] : memref<64x32xf32, #tpu.memory_space<vmem>>, vector<8x32xf32>
    tpu.vector_store %arg19[%203, %c0_72], %202 {strides = array<i32>} : memref<64x32xf32, #tpu.memory_space<vmem>>, vector<8x32xf32>,
    %205 = vector.broadcast %65 : vector<1x32xf32> to vector<8x32xf32>
    %206 = arith.subf %171, %205 : vector<8x32xf32>
    %207 = arith.maximumf %206, %184 : vector<8x32xf32>
    %208 = arith.subf %206, %207 : vector<8x32xf32>
    %209 = math.exp %208 : vector<8x32xf32>
    %210 = arith.subf %184, %207 : vector<8x32xf32>
    %211 = math.exp %210 : vector<8x32xf32>
    %212 = arith.mulf %209, %178 : vector<8x32xf32>
    %213 = arith.mulf %211, %186 : vector<8x32xf32>
    %214 = arith.addf %212, %213 : vector<8x32xf32>
    %215 = arith.mulf %209, %180 : vector<8x32xf32>
    %216 = arith.addf %215, %211 : vector<8x32xf32>
    %c4_i32 = arith.constant 4 : i32
    %c8_i32_73 = arith.constant 8 : i32
    %217 = arith.muli %c4_i32, %c8_i32_73 : i32
    %218 = tpu.assume_multiple %217, 8 : i32
    %219 = arith.index_cast %218 : i32 to index
    %c0_74 = arith.constant 0 : index
    %220 = vector.load %arg17[%219, %c0_74] : memref<64x32xf32, #tpu.memory_space<vmem>>, vector<8x32xf32>
    %221 = arith.index_cast %218 : i32 to index
    %c0_75 = arith.constant 0 : index
    %222 = vector.load %arg18[%221, %c0_75] : memref<64x32xf32, #tpu.memory_space<vmem>>, vector<8x32xf32>
    %223 = vector.broadcast %66 : vector<1x32xf32> to vector<8x32xf32>
    %224 = arith.addf %223, %220 : vector<8x32xf32>
    %225 = arith.maximumf %224, %207 : vector<8x32xf32>
    %226 = arith.subf %207, %225 : vector<8x32xf32>
    %227 = math.exp %226 : vector<8x32xf32>
    %228 = arith.subf %224, %225 : vector<8x32xf32>
    %229 = math.exp %228 : vector<8x32xf32>
    %230 = arith.mulf %227, %214 : vector<8x32xf32>
    %231 = arith.mulf %229, %222 : vector<8x32xf32>
    %232 = arith.addf %230, %231 : vector<8x32xf32>
    %233 = arith.mulf %227, %216 : vector<8x32xf32>
    %234 = arith.addf %233, %229 : vector<8x32xf32>
    %235 = arith.divf %232, %234 : vector<8x32xf32>
    %236 = arith.index_cast %218 : i32 to index
    %c0_76 = arith.constant 0 : index
    %237 = vector.load %arg19[%236, %c0_76] : memref<64x32xf32, #tpu.memory_space<vmem>>, vector<8x32xf32>
    %238 = arith.mulf %237, %235 : vector<8x32xf32>
    %239 = arith.index_cast %218 : i32 to index
    %c0_77 = arith.constant 0 : index
    %240 = vector.load %arg19[%239, %c0_77] : memref<64x32xf32, #tpu.memory_space<vmem>>, vector<8x32xf32>
    tpu.vector_store %arg19[%239, %c0_77], %238 {strides = array<i32>} : memref<64x32xf32, #tpu.memory_space<vmem>>, vector<8x32xf32>,
    %241 = vector.broadcast %65 : vector<1x32xf32> to vector<8x32xf32>
    %242 = arith.subf %207, %241 : vector<8x32xf32>
    %243 = arith.maximumf %242, %220 : vector<8x32xf32>
    %244 = arith.subf %242, %243 : vector<8x32xf32>
    %245 = math.exp %244 : vector<8x32xf32>
    %246 = arith.subf %220, %243 : vector<8x32xf32>
    %247 = math.exp %246 : vector<8x32xf32>
    %248 = arith.mulf %245, %214 : vector<8x32xf32>
    %249 = arith.mulf %247, %222 : vector<8x32xf32>
    %250 = arith.addf %248, %249 : vector<8x32xf32>
    %251 = arith.mulf %245, %216 : vector<8x32xf32>
    %252 = arith.addf %251, %247 : vector<8x32xf32>
    %c5_i32 = arith.constant 5 : i32
    %c8_i32_78 = arith.constant 8 : i32
    %253 = arith.muli %c5_i32, %c8_i32_78 : i32
    %254 = tpu.assume_multiple %253, 8 : i32
    %255 = arith.index_cast %254 : i32 to index
    %c0_79 = arith.constant 0 : index
    %256 = vector.load %arg17[%255, %c0_79] : memref<64x32xf32, #tpu.memory_space<vmem>>, vector<8x32xf32>
    %257 = arith.index_cast %254 : i32 to index
    %c0_80 = arith.constant 0 : index
    %258 = vector.load %arg18[%257, %c0_80] : memref<64x32xf32, #tpu.memory_space<vmem>>, vector<8x32xf32>
    %259 = vector.broadcast %66 : vector<1x32xf32> to vector<8x32xf32>
    %260 = arith.addf %259, %256 : vector<8x32xf32>
    %261 = arith.maximumf %260, %243 : vector<8x32xf32>
    %262 = arith.subf %243, %261 : vector<8x32xf32>
    %263 = math.exp %262 : vector<8x32xf32>
    %264 = arith.subf %260, %261 : vector<8x32xf32>
    %265 = math.exp %264 : vector<8x32xf32>
    %266 = arith.mulf %263, %250 : vector<8x32xf32>
    %267 = arith.mulf %265, %258 : vector<8x32xf32>
    %268 = arith.addf %266, %267 : vector<8x32xf32>
    %269 = arith.mulf %263, %252 : vector<8x32xf32>
    %270 = arith.addf %269, %265 : vector<8x32xf32>
    %271 = arith.divf %268, %270 : vector<8x32xf32>
    %272 = arith.index_cast %254 : i32 to index
    %c0_81 = arith.constant 0 : index
    %273 = vector.load %arg19[%272, %c0_81] : memref<64x32xf32, #tpu.memory_space<vmem>>, vector<8x32xf32>
    %274 = arith.mulf %273, %271 : vector<8x32xf32>
    %275 = arith.index_cast %254 : i32 to index
    %c0_82 = arith.constant 0 : index
    %276 = vector.load %arg19[%275, %c0_82] : memref<64x32xf32, #tpu.memory_space<vmem>>, vector<8x32xf32>
    tpu.vector_store %arg19[%275, %c0_82], %274 {strides = array<i32>} : memref<64x32xf32, #tpu.memory_space<vmem>>, vector<8x32xf32>,
    %277 = vector.broadcast %65 : vector<1x32xf32> to vector<8x32xf32>
    %278 = arith.subf %243, %277 : vector<8x32xf32>
    %279 = arith.maximumf %278, %256 : vector<8x32xf32>
    %280 = arith.subf %278, %279 : vector<8x32xf32>
    %281 = math.exp %280 : vector<8x32xf32>
    %282 = arith.subf %256, %279 : vector<8x32xf32>
    %283 = math.exp %282 : vector<8x32xf32>
    %284 = arith.mulf %281, %250 : vector<8x32xf32>
    %285 = arith.mulf %283, %258 : vector<8x32xf32>
    %286 = arith.addf %284, %285 : vector<8x32xf32>
    %287 = arith.mulf %281, %252 : vector<8x32xf32>
    %288 = arith.addf %287, %283 : vector<8x32xf32>
    %c6_i32 = arith.constant 6 : i32
    %c8_i32_83 = arith.constant 8 : i32
    %289 = arith.muli %c6_i32, %c8_i32_83 : i32
    %290 = tpu.assume_multiple %289, 8 : i32
    %291 = arith.index_cast %290 : i32 to index
    %c0_84 = arith.constant 0 : index
    %292 = vector.load %arg17[%291, %c0_84] : memref<64x32xf32, #tpu.memory_space<vmem>>, vector<8x32xf32>
    %293 = arith.index_cast %290 : i32 to index
    %c0_85 = arith.constant 0 : index
    %294 = vector.load %arg18[%293, %c0_85] : memref<64x32xf32, #tpu.memory_space<vmem>>, vector<8x32xf32>
    %295 = vector.broadcast %66 : vector<1x32xf32> to vector<8x32xf32>
    %296 = arith.addf %295, %292 : vector<8x32xf32>
    %297 = arith.maximumf %296, %279 : vector<8x32xf32>
    %298 = arith.subf %279, %297 : vector<8x32xf32>
    %299 = math.exp %298 : vector<8x32xf32>
    %300 = arith.subf %296, %297 : vector<8x32xf32>
    %301 = math.exp %300 : vector<8x32xf32>
    %302 = arith.mulf %299, %286 : vector<8x32xf32>
    %303 = arith.mulf %301, %294 : vector<8x32xf32>
    %304 = arith.addf %302, %303 : vector<8x32xf32>
    %305 = arith.mulf %299, %288 : vector<8x32xf32>
    %306 = arith.addf %305, %301 : vector<8x32xf32>
    %307 = arith.divf %304, %306 : vector<8x32xf32>
    %308 = arith.index_cast %290 : i32 to index
    %c0_86 = arith.constant 0 : index
    %309 = vector.load %arg19[%308, %c0_86] : memref<64x32xf32, #tpu.memory_space<vmem>>, vector<8x32xf32>
    %310 = arith.mulf %309, %307 : vector<8x32xf32>
    %311 = arith.index_cast %290 : i32 to index
    %c0_87 = arith.constant 0 : index
    %312 = vector.load %arg19[%311, %c0_87] : memref<64x32xf32, #tpu.memory_space<vmem>>, vector<8x32xf32>
    tpu.vector_store %arg19[%311, %c0_87], %310 {strides = array<i32>} : memref<64x32xf32, #tpu.memory_space<vmem>>, vector<8x32xf32>,
    %313 = vector.broadcast %65 : vector<1x32xf32> to vector<8x32xf32>
    %314 = arith.subf %279, %313 : vector<8x32xf32>
    %315 = arith.maximumf %314, %292 : vector<8x32xf32>
    %316 = arith.subf %314, %315 : vector<8x32xf32>
    %317 = math.exp %316 : vector<8x32xf32>
    %318 = arith.subf %292, %315 : vector<8x32xf32>
    %319 = math.exp %318 : vector<8x32xf32>
    %320 = arith.mulf %317, %286 : vector<8x32xf32>
    %321 = arith.mulf %319, %294 : vector<8x32xf32>
    %322 = arith.addf %320, %321 : vector<8x32xf32>
    %323 = arith.mulf %317, %288 : vector<8x32xf32>
    %324 = arith.addf %323, %319 : vector<8x32xf32>
    %c7_i32 = arith.constant 7 : i32
    %c8_i32_88 = arith.constant 8 : i32
    %325 = arith.muli %c7_i32, %c8_i32_88 : i32
    %326 = tpu.assume_multiple %325, 8 : i32
    %327 = arith.index_cast %326 : i32 to index
    %c0_89 = arith.constant 0 : index
    %328 = vector.load %arg17[%327, %c0_89] : memref<64x32xf32, #tpu.memory_space<vmem>>, vector<8x32xf32>
    %329 = arith.index_cast %326 : i32 to index
    %c0_90 = arith.constant 0 : index
    %330 = vector.load %arg18[%329, %c0_90] : memref<64x32xf32, #tpu.memory_space<vmem>>, vector<8x32xf32>
    %331 = vector.broadcast %66 : vector<1x32xf32> to vector<8x32xf32>
    %332 = arith.addf %331, %328 : vector<8x32xf32>
    %333 = arith.maximumf %332, %315 : vector<8x32xf32>
    %334 = arith.subf %315, %333 : vector<8x32xf32>
    %335 = math.exp %334 : vector<8x32xf32>
    %336 = arith.subf %332, %333 : vector<8x32xf32>
    %337 = math.exp %336 : vector<8x32xf32>
    %338 = arith.mulf %335, %322 : vector<8x32xf32>
    %339 = arith.mulf %337, %330 : vector<8x32xf32>
    %340 = arith.addf %338, %339 : vector<8x32xf32>
    %341 = arith.mulf %335, %324 : vector<8x32xf32>
    %342 = arith.addf %341, %337 : vector<8x32xf32>
    %343 = arith.divf %340, %342 : vector<8x32xf32>
    %344 = arith.index_cast %326 : i32 to index
    %c0_91 = arith.constant 0 : index
    %345 = vector.load %arg19[%344, %c0_91] : memref<64x32xf32, #tpu.memory_space<vmem>>, vector<8x32xf32>
    %346 = arith.mulf %345, %343 : vector<8x32xf32>
    %347 = arith.index_cast %326 : i32 to index
    %c0_92 = arith.constant 0 : index
    %348 = vector.load %arg19[%347, %c0_92] : memref<64x32xf32, #tpu.memory_space<vmem>>, vector<8x32xf32>
    tpu.vector_store %arg19[%347, %c0_92], %346 {strides = array<i32>} : memref<64x32xf32, #tpu.memory_space<vmem>>, vector<8x32xf32>,
    %349 = vector.broadcast %65 : vector<1x32xf32> to vector<8x32xf32>
    %350 = arith.subf %315, %349 : vector<8x32xf32>
    %351 = arith.maximumf %350, %328 : vector<8x32xf32>
    %352 = arith.subf %350, %351 : vector<8x32xf32>
    %353 = math.exp %352 : vector<8x32xf32>
    %354 = arith.subf %328, %351 : vector<8x32xf32>
    %355 = math.exp %354 : vector<8x32xf32>
    %356 = arith.mulf %353, %322 : vector<8x32xf32>
    %357 = arith.mulf %355, %330 : vector<8x32xf32>
    %358 = arith.addf %356, %357 : vector<8x32xf32>
    %359 = arith.mulf %353, %324 : vector<8x32xf32>
    %360 = arith.addf %359, %355 : vector<8x32xf32>
    %c8_i32_93 = arith.constant 8 : i32
    %c0_94 = arith.constant 0 : index
    %c0_95 = arith.constant 0 : index
    %c0_96 = arith.constant 0 : index
    %c0_97 = arith.constant 0 : index
    %361 = vector.load %arg16[%c0_94, %c0_95, %c0_96, %c0_97] : memref<1x3x8x32xf32, #tpu.memory_space<vmem>>, vector<1x1x8x32xf32>
    %362 = vector.shape_cast %361 : vector<1x1x8x32xf32> to vector<8x32xf32>
    %363 = vector.shape_cast %358 : vector<8x32xf32> to vector<1x1x8x32xf32>
    tpu.vector_store %arg16[%c0_94, %c0_95, %c0_96, %c0_97], %363 {strides = array<i32>} : memref<1x3x8x32xf32, #tpu.memory_space<vmem>>, vector<1x1x8x32xf32>,
    %c0_98 = arith.constant 0 : index
    %c1_99 = arith.constant 1 : index
    %c0_100 = arith.constant 0 : index
    %c0_101 = arith.constant 0 : index
    %364 = vector.load %arg16[%c0_98, %c1_99, %c0_100, %c0_101] : memref<1x3x8x32xf32, #tpu.memory_space<vmem>>, vector<1x1x8x32xf32>
    %365 = vector.shape_cast %364 : vector<1x1x8x32xf32> to vector<8x32xf32>
    %366 = vector.shape_cast %360 : vector<8x32xf32> to vector<1x1x8x32xf32>
    tpu.vector_store %arg16[%c0_98, %c1_99, %c0_100, %c0_101], %366 {strides = array<i32>} : memref<1x3x8x32xf32, #tpu.memory_space<vmem>>, vector<1x1x8x32xf32>,
    %c0_102 = arith.constant 0 : index
    %c2_103 = arith.constant 2 : index
    %c0_104 = arith.constant 0 : index
    %c0_105 = arith.constant 0 : index
    %367 = vector.load %arg16[%c0_102, %c2_103, %c0_104, %c0_105] : memref<1x3x8x32xf32, #tpu.memory_space<vmem>>, vector<1x1x8x32xf32>
    %368 = vector.shape_cast %367 : vector<1x1x8x32xf32> to vector<8x32xf32>
    %369 = vector.shape_cast %351 : vector<8x32xf32> to vector<1x1x8x32xf32>
    tpu.vector_store %arg16[%c0_102, %c2_103, %c0_104, %c0_105], %369 {strides = array<i32>} : memref<1x3x8x32xf32, #tpu.memory_space<vmem>>, vector<1x1x8x32xf32>,
    %c0_106 = arith.constant 0 : index
    %c0_107 = arith.constant 0 : index
    %370 = vector.load %arg19[%c0_106, %c0_107] : memref<64x32xf32, #tpu.memory_space<vmem>>, vector<64x32xf32>
    %371 = arith.truncf %370 : vector<64x32xf32> to vector<64x32xbf16>
    %c0_108 = arith.constant 0 : index
    %c0_109 = arith.constant 0 : index
    %372 = vector.load %arg11[%c0_108, %c0_109] : memref<32x32xbf16, #tpu.memory_space<vmem>>, vector<32x32xbf16>
    %cst_110 = arith.constant dense<0.000000e+00> : vector<64x32xf32>
    %373 = tpu.matmul %371, %372, %cst_110 {dimension_numbers = #tpu.dot_dimension_numbers<[1], [0], [0], [1], [0, 0, 1, 1], [], []>} : vector<64x32xbf16>, vector<32x32xbf16>, vector<64x32xf32> -> vector<64x32xf32>
    %374 = arith.addf %4, %373 : vector<64x32xf32>
    %c0_111 = arith.constant 0 : index
    %c0_112 = arith.constant 0 : index
    %c0_113 = arith.constant 0 : index
    %375 = vector.load %arg14[%c0_111, %c0_112, %c0_113] : memref<1x64x32xf32, #tpu.memory_space<vmem>>, vector<1x64x32xf32>
    %376 = vector.shape_cast %375 : vector<1x64x32xf32> to vector<64x32xf32>
    %377 = vector.shape_cast %374 : vector<64x32xf32> to vector<1x64x32xf32>
    tpu.vector_store %arg14[%c0_111, %c0_112, %c0_113], %377 {strides = array<i32>} : memref<1x64x32xf32, #tpu.memory_space<vmem>>, vector<1x64x32xf32>,
    return
  }
  func.func @transform_0(%arg0: i32, %arg1: i32) -> (i32, i32, i32) {
    %c0_i32 = arith.constant 0 : i32
    %c0_i32_0 = arith.constant 0 : i32
    return %arg0, %arg1, %c0_i32 : i32, i32, i32
  }
  func.func @transform_1(%arg0: i32, %arg1: i32) -> (i32, i32) {
    %c0_i32 = arith.constant 0 : i32
    %c0_i32_0 = arith.constant 0 : i32
    %c0_i32_1 = arith.constant 0 : i32
    return %c0_i32, %c0_i32_0 : i32, i32
  }
  func.func @transform_2(%arg0: i32, %arg1: i32) -> (i32, i32) {
    %c0_i32 = arith.constant 0 : i32
    %c0_i32_0 = arith.constant 0 : i32
    %c0_i32_1 = arith.constant 0 : i32
    return %c0_i32, %c0_i32_0 : i32, i32
  }
  func.func @transform_3(%arg0: i32, %arg1: i32) -> (i32, i32) {
    %c0_i32 = arith.constant 0 : i32
    %c0_i32_0 = arith.constant 0 : i32
    %c0_i32_1 = arith.constant 0 : i32
    return %c0_i32, %c0_i32_0 : i32, i32
  }
  func.func @transform_4(%arg0: i32, %arg1: i32) -> (i32, i32) {
    %c0_i32 = arith.constant 0 : i32
    %c0_i32_0 = arith.constant 0 : i32
    %c0_i32_1 = arith.constant 0 : i32
    return %c0_i32, %c0_i32_0 : i32, i32
  }
  func.func @transform_5(%arg0: i32, %arg1: i32) -> (i32, i32) {
    %c0_i32 = arith.constant 0 : i32
    %c0_i32_0 = arith.constant 0 : i32
    %c0_i32_1 = arith.constant 0 : i32
    return %c0_i32, %c0_i32_0 : i32, i32
  }
  func.func @transform_6(%arg0: i32, %arg1: i32) -> (i32, i32) {
    %c0_i32 = arith.constant 0 : i32
    %c0_i32_0 = arith.constant 0 : i32
    %c0_i32_1 = arith.constant 0 : i32
    return %c0_i32, %c0_i32_0 : i32, i32
  }
  func.func @transform_7(%arg0: i32, %arg1: i32) -> (i32, i32) {
    %c0_i32 = arith.constant 0 : i32
    %c0_i32_0 = arith.constant 0 : i32
    %c0_i32_1 = arith.constant 0 : i32
    return %c0_i32, %c0_i32_0 : i32, i32
  }
  func.func @transform_8(%arg0: i32, %arg1: i32) -> (i32, i32) {
    %c0_i32 = arith.constant 0 : i32
    %c0_i32_0 = arith.constant 0 : i32
    %c0_i32_1 = arith.constant 0 : i32
    return %c0_i32, %c0_i32_0 : i32, i32
  }
  func.func @transform_9(%arg0: i32, %arg1: i32) -> (i32, i32) {
    %c0_i32 = arith.constant 0 : i32
    %c0_i32_0 = arith.constant 0 : i32
    %c0_i32_1 = arith.constant 0 : i32
    return %c0_i32, %c0_i32_0 : i32, i32
  }
  func.func @transform_10(%arg0: i32, %arg1: i32) -> (i32, i32) {
    %c0_i32 = arith.constant 0 : i32
    %c0_i32_0 = arith.constant 0 : i32
    %c0_i32_1 = arith.constant 0 : i32
    return %c0_i32, %c0_i32_0 : i32, i32
  }
  func.func @transform_11(%arg0: i32, %arg1: i32) -> (i32, i32) {
    %c0_i32 = arith.constant 0 : i32
    %c0_i32_0 = arith.constant 0 : i32
    %c0_i32_1 = arith.constant 0 : i32
    return %c0_i32, %c0_i32_0 : i32, i32
  }
  func.func @transform_12(%arg0: i32, %arg1: i32) -> (i32, i32, i32) {
    %c0_i32 = arith.constant 0 : i32
    %c0_i32_0 = arith.constant 0 : i32
    return %arg0, %arg1, %c0_i32 : i32, i32, i32
  }
  func.func @transform_13(%arg0: i32, %arg1: i32) -> (i32, i32, i32) {
    %c0_i32 = arith.constant 0 : i32
    %c0_i32_0 = arith.constant 0 : i32
    %c0_i32_1 = arith.constant 0 : i32
    return %arg0, %c0_i32, %c0_i32_0 : i32, i32, i32
  }
  func.func @transform_14(%arg0: i32, %arg1: i32) -> (i32, i32, i32, i32) {
    %c0_i32 = arith.constant 0 : i32
    %c0_i32_0 = arith.constant 0 : i32
    %c0_i32_1 = arith.constant 0 : i32
    %c0_i32_2 = arith.constant 0 : i32
    return %arg0, %c0_i32, %c0_i32_0, %c0_i32_1 : i32, i32, i32, i32
  }
}

module attributes {stable_mosaic.version = 11 : i64} {
  func.func @_head_kernel(%arg0: i32, %arg1: i32, %arg2: memref<64x32xf32, #tpu.memory_space<vmem>>, %arg3: memref<1x32xf32, #tpu.memory_space<vmem>>, %arg4: memref<1x32xf32, #tpu.memory_space<vmem>>, %arg5: memref<32x64xbf16, #tpu.memory_space<vmem>>, %arg6: memref<64x64xf32, #tpu.memory_space<vmem>>) attributes {dimension_semantics = [#tpu.dimension_semantics<parallel>, #tpu.dimension_semantics<parallel>], iteration_bounds = array<i64: 1, 1>, scalar_prefetch = 0 : i64, scratch_operands = 0 : i64, tpu.core_type = #tpu.core_type<tc>, window_params = [{transform_indices = @transform_0, window_bounds = array<i64: 64, 32>}, {pipeline_mode = #tpu.pipeline_mode<synchronous>, transform_indices = @transform_1, window_bounds = array<i64: 1, 32>}, {pipeline_mode = #tpu.pipeline_mode<synchronous>, transform_indices = @transform_2, window_bounds = array<i64: 1, 32>}, {transform_indices = @transform_3, window_bounds = array<i64: 32, 64>}, {transform_indices = @transform_4, window_bounds = array<i64: 64, 64>}]} {
    %c0 = arith.constant 0 : index
    %c0_0 = arith.constant 0 : index
    %0 = vector.load %arg2[%c0, %c0_0] : memref<64x32xf32, #tpu.memory_space<vmem>>, vector<64x32xf32>
    %c0_1 = arith.constant 0 : index
    %c0_2 = arith.constant 0 : index
    %1 = vector.load %arg3[%c0_1, %c0_2] : memref<1x32xf32, #tpu.memory_space<vmem>>, vector<1x32xf32>
    %c0_3 = arith.constant 0 : index
    %c0_4 = arith.constant 0 : index
    %2 = vector.load %arg4[%c0_3, %c0_4] : memref<1x32xf32, #tpu.memory_space<vmem>>, vector<1x32xf32>
    %cst = arith.constant dense<0.000000e+00> : vector<64xf32>
    %3 = vector.multi_reduction <add>, %0, %cst [1] : vector<64x32xf32> to vector<64xf32>
    %4 = vector.shape_cast %3 : vector<64xf32> to vector<64x1xf32>
    %cst_5 = arith.constant 3.200000e+01 : f32
    %5 = vector.broadcast %cst_5 : f32 to vector<64x1xf32>
    %6 = arith.divf %4, %5 : vector<64x1xf32>
    %7 = vector.broadcast %6 : vector<64x1xf32> to vector<64x32xf32>
    %8 = arith.subf %0, %7 : vector<64x32xf32>
    %9 = arith.mulf %8, %8 : vector<64x32xf32>
    %cst_6 = arith.constant dense<0.000000e+00> : vector<64xf32>
    %10 = vector.multi_reduction <add>, %9, %cst_6 [1] : vector<64x32xf32> to vector<64xf32>
    %11 = vector.shape_cast %10 : vector<64xf32> to vector<64x1xf32>
    %cst_7 = arith.constant 3.200000e+01 : f32
    %12 = vector.broadcast %cst_7 : f32 to vector<64x1xf32>
    %13 = arith.divf %11, %12 : vector<64x1xf32>
    %cst_8 = arith.constant 9.99999974E-6 : f32
    %14 = vector.broadcast %cst_8 : f32 to vector<64x1xf32>
    %15 = arith.addf %13, %14 : vector<64x1xf32>
    %16 = math.rsqrt %15 : vector<64x1xf32>
    %17 = vector.broadcast %16 : vector<64x1xf32> to vector<64x32xf32>
    %18 = arith.mulf %8, %17 : vector<64x32xf32>
    %19 = vector.broadcast %1 : vector<1x32xf32> to vector<64x32xf32>
    %20 = arith.mulf %18, %19 : vector<64x32xf32>
    %21 = vector.broadcast %2 : vector<1x32xf32> to vector<64x32xf32>
    %22 = arith.addf %20, %21 : vector<64x32xf32>
    %23 = arith.truncf %22 : vector<64x32xf32> to vector<64x32xbf16>
    %c0_9 = arith.constant 0 : index
    %c0_10 = arith.constant 0 : index
    %24 = vector.load %arg5[%c0_9, %c0_10] : memref<32x64xbf16, #tpu.memory_space<vmem>>, vector<32x64xbf16>
    %cst_11 = arith.constant dense<0.000000e+00> : vector<64x64xf32>
    %25 = tpu.matmul %23, %24, %cst_11 {dimension_numbers = #tpu.dot_dimension_numbers<[1], [0], [0], [1], [0, 0, 1, 1], [], []>} : vector<64x32xbf16>, vector<32x64xbf16>, vector<64x64xf32> -> vector<64x64xf32>
    %c0_12 = arith.constant 0 : index
    %c0_13 = arith.constant 0 : index
    %26 = vector.load %arg6[%c0_12, %c0_13] : memref<64x64xf32, #tpu.memory_space<vmem>>, vector<64x64xf32>
    tpu.vector_store %arg6[%c0_12, %c0_13], %25 {strides = array<i32>} : memref<64x64xf32, #tpu.memory_space<vmem>>, vector<64x64xf32>,
    return
  }
  func.func @transform_0(%arg0: i32, %arg1: i32) -> (i32, i32) {
    %c0_i32 = arith.constant 0 : i32
    %c0_i32_0 = arith.constant 0 : i32
    return %arg0, %c0_i32 : i32, i32
  }
  func.func @transform_1(%arg0: i32, %arg1: i32) -> (i32, i32) {
    %c0_i32 = arith.constant 0 : i32
    %c0_i32_0 = arith.constant 0 : i32
    %c0_i32_1 = arith.constant 0 : i32
    return %c0_i32, %c0_i32_0 : i32, i32
  }
  func.func @transform_2(%arg0: i32, %arg1: i32) -> (i32, i32) {
    %c0_i32 = arith.constant 0 : i32
    %c0_i32_0 = arith.constant 0 : i32
    %c0_i32_1 = arith.constant 0 : i32
    return %c0_i32, %c0_i32_0 : i32, i32
  }
  func.func @transform_3(%arg0: i32, %arg1: i32) -> (i32, i32) {
    %c0_i32 = arith.constant 0 : i32
    %c0_i32_0 = arith.constant 0 : i32
    return %c0_i32, %arg1 : i32, i32
  }
  func.func @transform_4(%arg0: i32, %arg1: i32) -> (i32, i32) {
    %c0_i32 = arith.constant 0 : i32
    return %arg0, %arg1 : i32, i32
  }
}

</mosaic_0001>

<llo_original>
// kernel: tpu_custom_call.1
$region0: #{tpu_custom_call.1}
  #allocation0 [shape = 'u32[]', space=smem, size = 0x4, offset = 0x4, fixed_abs, tag = 'smem constant byte address 0x4 - core index']
  #allocation1 [shape = 'u32[144,128]{1,0:T(1,128)}', space=vmem, size = 0x12000, scoped, tag = 'internal scratch']
  %s0 = inlined_call_operand.hbm [shape: f32[8,128], index: 0, kind: input, shape index: {}]
  %s1 = inlined_call_operand.hbm [shape: f32[8,128], index: 1, kind: output, shape index: {}]
  %s2 = sld [smem:[#allocation0]]
  $region41: #{tpu_custom_call.1} parent=0
    _
  %s4 = ssub.s32 1, %s2
  %s5 = scalar_select 0, %s4, %s2
  $region1: #{tpu_custom_call.1} parent=0
    #allocation2 [shape = 'u8[4096]{0}', space=vmem, size = 0x1000, scoped, tag = 'input window, operand 0, single buffered']
    #allocation3 [shape = 's32[2]{0}', space=sflag, size = 0x8, scoped, tag = 'scoped memory for tpu_custom_call.1']
    #allocation4 [shape = 's32[2]{0}', space=sflag, size = 0x8, scoped, tag = 'scoped memory for tpu_custom_call.1']
    #allocation5 [shape = 'u8[4096]{0}', space=vmem, size = 0x1000, scoped, tag = 'output window, operand 0, single buffered']
    %6 = vsyncpa [#allocation3], 0
    %7 = vsyncpa [#allocation4], 0
    loop: start=0, step=1, limit=4
    $region2: #{tpu_custom_call.1} parent=1 // loop_pre_header
      _
    $region3: #{tpu_custom_call.1} parent=1 // loop_header
      %s9 = sphi 0, %s13
      %p10 = scmp.ge.s32.totalorder %s9, 4
      %s17 = sphi 0, %s17
      %s19 = sphi 0, %s17
      %s20 = sphi 0, %s19
      %s34 = sphi 0, %s20
      %s38 = sphi 0, %s38
      %s40 = sphi 0, %s38
      %s41 = sphi 0, %s40
      %s55 = sphi 0, %s41
    $region4: #{tpu_custom_call.1} parent=1 // loop_header_branch
      %12 = sbr.rel (%p10) target = $region8
    $region5: #{tpu_custom_call.1} parent=1 // loop_body
      %s14 = ssub.s32 %s9, 1
      %s15 = ssub.s32 %s9, 2
      %s16 = sadd.s32 %s9, 1
      %s18 = sadd.s32 %s17, 1
      %p21 = scmp.eq.s32.totalorder %s9, 1
      %p22 = scmp.ne.s32.totalorder %s17, %s19
      %p23 = scmp.eq.s32.totalorder %s9, 0
      %p24 = por %p22, %p23
      %p25 = scmp.ne.s32.totalorder %s17, %s19
      %p26 = scmp.eq.s32.totalorder %s14, 1
      %p27 = por %p25, %p26
      %p28 = scmp.ne.s32.totalorder %s19, %s20
      %p29 = scmp.eq.s32.totalorder %s14, 0
      %p30 = por %p28, %p29
      %p31 = scmp.ne.s32.totalorder %s19, %s20
      %p32 = scmp.eq.s32.totalorder %s15, 1
      %p33 = por %p31, %p32
      %p35 = scmp.ne.s32.totalorder %s20, %s34
      %p36 = scmp.eq.s32.totalorder %s15, 0
      %p37 = por %p35, %p36
      %s39 = sadd.s32 %s38, 1
      %p42 = scmp.eq.s32.totalorder %s9, 1
      %p43 = scmp.ne.s32.totalorder %s38, %s40
      %p44 = scmp.eq.s32.totalorder %s9, 0
      %p45 = por %p43, %p44
      %p46 = scmp.ne.s32.totalorder %s38, %s40
      %p47 = scmp.eq.s32.totalorder %s14, 1
      %p48 = por %p46, %p47
      %p49 = scmp.ne.s32.totalorder %s40, %s41
      %p50 = scmp.eq.s32.totalorder %s14, 0
      %p51 = por %p49, %p50
      %p52 = scmp.ne.s32.totalorder %s40, %s41
      %p53 = scmp.eq.s32.totalorder %s15, 1
      %p54 = por %p52, %p53
      %p56 = scmp.ne.s32.totalorder %s41, %s55
      %p57 = scmp.eq.s32.totalorder %s15, 0
      %p58 = por %p56, %p57
      %p59 = scmp.le.s32.totalorder 1, %s9
      %p60 = scmp.lt.s32.totalorder %s9, 3
      %p61 = pnand %p59, %p60
      %p62 = pneg %p61
      // Predicated region
      $region9: #{tpu_custom_call.1} parent=5 // pred_check
        _
      $region10: #{tpu_custom_call.1} parent=5 // pred_check_branch
        %64 = sbr.rel (%p61) target = $region12
      $region11: #{tpu_custom_call.1} parent=5 // pred_region
        %s65 = ssub.s32 %s9, 1
        // Predicated region
        $region13: #{tpu_custom_call.1} parent=11 // pred_check
          %p66 = pneg %p30
        $region14: #{tpu_custom_call.1} parent=11 // pred_check_branch
          %68 = sbr.rel (%p66) target = $region16
        $region15: #{tpu_custom_call.1} parent=11 // pred_region
          %s70 = ssub.s32 128, 128
          %71 = vsyncadd [#allocation3], %s70
          %s73 = sshll.u32 [#allocation2], 4
          %s74 = int_to_ptr.vmem [resolvable:$true] %s73
          %76 = dma.hbm_to_vmem [thread:$0]  %s0, 128, %s74, [#allocation3]
        $region16: #{tpu_custom_call.1} parent=11 // pred_fallthru
          _
      $region12: #{tpu_custom_call.1} parent=5 // pred_fallthru
        _
      %p77 = scmp.lt.s32.totalorder %s9, 2
      // Predicated region
      $region17: #{tpu_custom_call.1} parent=5 // pred_check
        %p78 = pneg %p77
      $region18: #{tpu_custom_call.1} parent=5 // pred_check_branch
        %80 = sbr.rel (%p78) target = $region20
      $region19: #{tpu_custom_call.1} parent=5 // pred_region
        _
      $region20: #{tpu_custom_call.1} parent=5 // pred_fallthru
        _
      %p81 = scmp.le.s32.totalorder 1, %s9
      %p82 = scmp.lt.s32.totalorder %s9, 3
      %p83 = pnand %p81, %p82
      %p84 = pneg %p83
      // Predicated region
      $region21: #{tpu_custom_call.1} parent=5 // pred_check
        _
      $region22: #{tpu_custom_call.1} parent=5 // pred_check_branch
        %86 = sbr.rel (%p83) target = $region24
      $region23: #{tpu_custom_call.1} parent=5 // pred_region
        %s87 = ssub.s32 %s9, 1
        // Predicated region
        $region25: #{tpu_custom_call.1} parent=23 // pred_check
          %p88 = pneg %p30
        $region26: #{tpu_custom_call.1} parent=23 // pred_check_branch
          %90 = sbr.rel (%p88) target = $region28
        $region27: #{tpu_custom_call.1} parent=23 // pred_region
          %91 = dma.done [#allocation3], 128
        $region28: #{tpu_custom_call.1} parent=23 // pred_fallthru
          _
        %p92 = pneg %p30
        %p93 = pneg %p27
        %p94 = pneg %p51
        %p95 = pneg %p48
        %v96 = vld [vmem:[#allocation2] sm:$0xff]
        %v97 = vmul.f32 %v96, 2.0
        %98 = vst [vmem:[#allocation5] sm:$0xff] %v97
        // Predicated region
        $region29: #{tpu_custom_call.1} parent=23 // pred_check
          %p99 = pneg %p48
        $region30: #{tpu_custom_call.1} parent=23 // pred_check_branch
          %101 = sbr.rel (%p99) target = $region32
        $region31: #{tpu_custom_call.1} parent=23 // pred_region
          %s103 = ssub.s32 128, 128
          %104 = vsyncadd [#allocation4], %s103
          %s106 = sshll.u32 [#allocation5], 4
          %s107 = int_to_ptr.vmem [resolvable:$true] %s106
          %109 = dma.vmem_to_hbm [thread:$0]  %s107, 128, %s1, [#allocation4]
        $region32: #{tpu_custom_call.1} parent=23 // pred_fallthru
          _
        // Predicated region
        $region33: #{tpu_custom_call.1} parent=23 // pred_check
          %p110 = pneg %p48
        $region34: #{tpu_custom_call.1} parent=23 // pred_check_branch
          %112 = sbr.rel (%p110) target = $region36
        $region35: #{tpu_custom_call.1} parent=23 // pred_region
          %113 = dma.done [#allocation4], 128
        $region36: #{tpu_custom_call.1} parent=23 // pred_fallthru
          _
      $region24: #{tpu_custom_call.1} parent=5 // pred_fallthru
        _
      %p114 = scmp.le.s32.totalorder 2, %s9
      // Predicated region
      $region37: #{tpu_custom_call.1} parent=5 // pred_check
        %p115 = pneg %p114
      $region38: #{tpu_custom_call.1} parent=5 // pred_check_branch
        %117 = sbr.rel (%p115) target = $region40
      $region39: #{tpu_custom_call.1} parent=5 // pred_region
        %s118 = ssub.s32 %s9, 2
      $region40: #{tpu_custom_call.1} parent=5 // pred_fallthru
        _
    $region6: #{tpu_custom_call.1} parent=1 // loop_footer
      %s13 = sadd.s32 1, %s9
    $region7: #{tpu_custom_call.1} parent=1 // loop_footer_branch
      %8 = sbr.rel target = $region3
    $region8: #{tpu_custom_call.1} parent=1 // loop_exit
      _
    %119 = vsyncpa [#allocation3], 1
    %s120 = scalar_lea.sflag [#allocation3], 1
    %121 = vsyncpa %s120, 1
    %122 = vsyncpa [#allocation4], 1
    %s123 = scalar_lea.sflag [#allocation4], 1
    %124 = vsyncpa %s123, 1

// kernel: rwkv_forward.6
$region0: #{rwkv_forward.6}
  #allocation0 [shape = 'u32[]', space=smem, size = 0x4, offset = 0x4, fixed_abs, tag = 'smem constant byte address 0x4 - core index']
  #allocation1 [shape = 'u32[144,128]{1,0:T(1,128)}', space=vmem, size = 0x12000, scoped, tag = 'internal scratch']
  %s0 = inlined_call_operand.vmem [shape: f32[64,32], index: 0, kind: input, shape index: {}]
  %s1 = inlined_call_operand.vmem [shape: f32[1,32], index: 1, kind: input, shape index: {}]
  %s2 = inlined_call_operand.vmem [shape: f32[1,32], index: 2, kind: input, shape index: {}]
  %s3 = inlined_call_operand.vmem [shape: f32[64,32], index: 3, kind: output, shape index: {}]
  %s4 = sld [smem:[#allocation0]]
  $region22: #{rwkv_forward.6} parent=0
    _
  %s6 = ssub.s32 1, %s4
  %s7 = scalar_select 0, %s6, %s4
  // Predicated region
  $region2: #{rwkv_forward.6} parent=0 // pred_check
    _
  $region3: #{rwkv_forward.6} parent=0 // pred_check_branch
    %9 = sbr.rel (0) target = $region5
  $region4: #{rwkv_forward.6} parent=0 // pred_region
    _
  $region5: #{rwkv_forward.6} parent=0 // pred_fallthru
    _
  // Predicated region
  $region6: #{rwkv_forward.6} parent=0 // pred_check
    _
  $region7: #{rwkv_forward.6} parent=0 // pred_check_branch
    %11 = sbr.rel (0) target = $region9
  $region8: #{rwkv_forward.6} parent=0 // pred_region
    _
  $region9: #{rwkv_forward.6} parent=0 // pred_fallthru
    _
  // Predicated region
  $region10: #{rwkv_forward.6} parent=0 // pred_check
    _
  $region11: #{rwkv_forward.6} parent=0 // pred_check_branch
    %13 = sbr.rel (0) target = $region13
  $region12: #{rwkv_forward.6} parent=0 // pred_region
    _
  $region13: #{rwkv_forward.6} parent=0 // pred_fallthru
    _
  %v14 = vld [vmem:[%s0] sm:$0xff]
  %v15 = vld [vmem:[%s0 + $0x8] sm:$0xff]
  %v16 = vld [vmem:[%s0 + $0x10] sm:$0xff]
  %v17 = vld [vmem:[%s0 + $0x18] sm:$0xff]
  %v18 = vld [vmem:[%s0 + $0x20] sm:$0xff]
  %v19 = vld [vmem:[%s0 + $0x28] sm:$0xff]
  %v20 = vld [vmem:[%s0 + $0x30] sm:$0xff]
  %v21 = vld [vmem:[%s0 + $0x38] sm:$0xff]
  %v22 = vld [vmem:[%s1] sm:$0x1]
  %v23 = vld [vmem:[%s2] sm:$0x1]
  %vm24 = vcmask 261120
  %v25 = vsel %vm24, %v14, 0.0
  %26 = vadd.xlane.f32.xlu0 %v25
  %v27 = vpop.xlane.xlu0 %26
  %v28 = vsel %vm24, %v15, 0.0
  %29 = vadd.xlane.f32.xlu0 %v28
  %v30 = vpop.xlane.xlu0 %29
  %v31 = vsel %vm24, %v16, 0.0
  %32 = vadd.xlane.f32.xlu0 %v31
  %v33 = vpop.xlane.xlu0 %32
  %v34 = vsel %vm24, %v17, 0.0
  %35 = vadd.xlane.f32.xlu0 %v34
  %v36 = vpop.xlane.xlu0 %35
  %v37 = vsel %vm24, %v18, 0.0
  %38 = vadd.xlane.f32.xlu0 %v37
  %v39 = vpop.xlane.xlu0 %38
  %v40 = vsel %vm24, %v19, 0.0
  %41 = vadd.xlane.f32.xlu0 %v40
  %v42 = vpop.xlane.xlu0 %41
  %v43 = vsel %vm24, %v20, 0.0
  %44 = vadd.xlane.f32.xlu0 %v43
  %v45 = vpop.xlane.xlu0 %44
  %v46 = vsel %vm24, %v21, 0.0
  %47 = vadd.xlane.f32.xlu0 %v46
  %v48 = vpop.xlane.xlu0 %47
  %v49 = vrcp.pop 32.0
  %v50 = vmul.f32 %v27, %v49
  %v51 = vmul.f32 %v30, %v49
  %v52 = vmul.f32 %v33, %v49
  %v53 = vmul.f32 %v36, %v49
  %v54 = vmul.f32 %v39, %v49
  %v55 = vmul.f32 %v42, %v49
  %v56 = vmul.f32 %v45, %v49
  %v57 = vmul.f32 %v48, %v49
  %v58 = vsub.f32 %v14, %v50
  %v59 = vsub.f32 %v15, %v51
  %v60 = vsub.f32 %v16, %v52
  %v61 = vsub.f32 %v17, %v53
  %v62 = vsub.f32 %v18, %v54
  %v63 = vsub.f32 %v19, %v55
  %v64 = vsub.f32 %v20, %v56
  %v65 = vsub.f32 %v21, %v57
  %v66 = vmul.f32 %v58, %v58
  %v67 = vmul.f32 %v59, %v59
  %v68 = vmul.f32 %v60, %v60
  %v69 = vmul.f32 %v61, %v61
  %v70 = vmul.f32 %v62, %v62
  %v71 = vmul.f32 %v63, %v63
  %v72 = vmul.f32 %v64, %v64
  %v73 = vmul.f32 %v65, %v65
  %v74 = vsel %vm24, %v66, 0.0
  %75 = vadd.xlane.f32.xlu0 %v74
  %v76 = vpop.xlane.xlu0 %75
  %v77 = vsel %vm24, %v67, 0.0
  %78 = vadd.xlane.f32.xlu0 %v77
  %v79 = vpop.xlane.xlu0 %78
  %v80 = vsel %vm24, %v68, 0.0
  %81 = vadd.xlane.f32.xlu0 %v80
  %v82 = vpop.xlane.xlu0 %81
  %v83 = vsel %vm24, %v69, 0.0
  %84 = vadd.xlane.f32.xlu0 %v83
  %v85 = vpop.xlane.xlu0 %84
  %v86 = vsel %vm24, %v70, 0.0
  %87 = vadd.xlane.f32.xlu0 %v86
  %v88 = vpop.xlane.xlu0 %87
  %v89 = vsel %vm24, %v71, 0.0
  %90 = vadd.xlane.f32.xlu0 %v89
  %v91 = vpop.xlane.xlu0 %90
  %v92 = vsel %vm24, %v72, 0.0
  %93 = vadd.xlane.f32.xlu0 %v92
  %v94 = vpop.xlane.xlu0 %93
  %v95 = vsel %vm24, %v73, 0.0
  %96 = vadd.xlane.f32.xlu0 %v95
  %v97 = vpop.xlane.xlu0 %96
  %v98 = vmul.f32 %v76, %v49
  %v99 = vmul.f32 %v79, %v49
  %v100 = vmul.f32 %v82, %v49
  %v101 = vmul.f32 %v85, %v49
  %v102 = vmul.f32 %v88, %v49
  %v103 = vmul.f32 %v91, %v49
  %v104 = vmul.f32 %v94, %v49
  %v105 = vmul.f32 %v97, %v49
  %v106 = vadd.f32 %v98, 1e-05
  %v107 = vadd.f32 %v99, 1e-05
  %v108 = vadd.f32 %v100, 1e-05
  %v109 = vadd.f32 %v101, 1e-05
  %v110 = vadd.f32 %v102, 1e-05
  %v111 = vadd.f32 %v103, 1e-05
  %v112 = vadd.f32 %v104, 1e-05
  %v113 = vadd.f32 %v105, 1e-05
  %v114 = vrsqrt.pop %v106
  %v115 = vrsqrt.pop %v107
  %v116 = vrsqrt.pop %v108
  %v117 = vrsqrt.pop %v109
  %v118 = vrsqrt.pop %v110
  %v119 = vrsqrt.pop %v111
  %v120 = vrsqrt.pop %v112
  %v121 = vrsqrt.pop %v113
  %v122 = vmul.f32 %v58, %v114
  %v123 = vmul.f32 %v59, %v115
  %v124 = vmul.f32 %v60, %v116
  %v125 = vmul.f32 %v61, %v117
  %v126 = vmul.f32 %v62, %v118
  %v127 = vmul.f32 %v63, %v119
  %v128 = vmul.f32 %v64, %v120
  %v129 = vmul.f32 %v65, %v121
  %v131 = vlaneseq
  %v132 = vshrl.u32 %v131, 7
  %v133 = vsub.s32 0, %v132
  %v134 = vrot.slane %v22, %v133
  %v136 = vmul.f32 %v122, %v134
  %v137 = vmul.f32 %v123, %v134
  %v138 = vmul.f32 %v124, %v134
  %v139 = vmul.f32 %v125, %v134
  %v140 = vmul.f32 %v126, %v134
  %v141 = vmul.f32 %v127, %v134
  %v142 = vmul.f32 %v128, %v134
  %v143 = vmul.f32 %v129, %v134
  %v145 = vlaneseq
  %v146 = vshrl.u32 %v145, 7
  %v147 = vsub.s32 0, %v146
  %v148 = vrot.slane %v23, %v147
  %v150 = vadd.f32 %v136, %v148
  %v151 = vadd.f32 %v137, %v148
  %v152 = vadd.f32 %v138, %v148
  %v153 = vadd.f32 %v139, %v148
  %v154 = vadd.f32 %v140, %v148
  %v155 = vadd.f32 %v141, %v148
  %v156 = vadd.f32 %v142, %v148
  %v157 = vadd.f32 %v143, %v148
  %158 = vst.msk [vmem:[%s3] sm:$0xff] %vm24, %v150
  %159 = vst.msk [vmem:[%s3 + $0x8] sm:$0xff] %vm24, %v151
  %160 = vst.msk [vmem:[%s3 + $0x10] sm:$0xff] %vm24, %v152
  %161 = vst.msk [vmem:[%s3 + $0x18] sm:$0xff] %vm24, %v153
  %162 = vst.msk [vmem:[%s3 + $0x20] sm:$0xff] %vm24, %v154
  %163 = vst.msk [vmem:[%s3 + $0x28] sm:$0xff] %vm24, %v155
  %164 = vst.msk [vmem:[%s3 + $0x30] sm:$0xff] %vm24, %v156
  %165 = vst.msk [vmem:[%s3 + $0x38] sm:$0xff] %vm24, %v157
  // Predicated region
  $region14: #{rwkv_forward.6} parent=0 // pred_check
    _
  $region15: #{rwkv_forward.6} parent=0 // pred_check_branch
    %167 = sbr.rel (0) target = $region17
  $region16: #{rwkv_forward.6} parent=0 // pred_region
    _
  $region17: #{rwkv_forward.6} parent=0 // pred_fallthru
    _
  // Predicated region
  $region18: #{rwkv_forward.6} parent=0 // pred_check
    _
  $region19: #{rwkv_forward.6} parent=0 // pred_check_branch
    %169 = sbr.rel (0) target = $region21
  $region20: #{rwkv_forward.6} parent=0 // pred_region
    _
  $region21: #{rwkv_forward.6} parent=0 // pred_fallthru
    _

// kernel: rwkv_forward.8
$region0: #{rwkv_forward.8}
  #allocation0 [shape = 'u32[]', space=smem, size = 0x4, offset = 0x4, fixed_abs, tag = 'smem constant byte address 0x4 - core index']
  #allocation1 [shape = 'u32[144,128]{1,0:T(1,128)}', space=vmem, size = 0x12000, scoped, tag = 'internal scratch']
  %s0 = inlined_call_operand.vmem [shape: f32[1,64,32], index: 0, kind: input, shape index: {}, may-alias: {0,8}]
  %s1 = inlined_call_operand.vmem [shape: f32[1,32], index: 1, kind: input, shape index: {}]
  %s2 = inlined_call_operand.vmem [shape: f32[1,32], index: 2, kind: input, shape index: {}]
  %s3 = inlined_call_operand.vmem [shape: f32[1,32], index: 3, kind: input, shape index: {}]
  %s4 = inlined_call_operand.vmem [shape: f32[1,32], index: 4, kind: input, shape index: {}]
  %s5 = inlined_call_operand.vmem [shape: bf16[32,128], index: 5, kind: input, shape index: {}]
  %s6 = inlined_call_operand.vmem [shape: bf16[32,32], index: 6, kind: input, shape index: {}]
  %s7 = inlined_call_operand.vmem [shape: bf16[128,32], index: 7, kind: input, shape index: {}]
  %s8 = inlined_call_operand.vmem [shape: f32[1,64,32], index: 8, kind: output, shape index: {0}, may-alias: {0,8}]
  %s9 = inlined_call_operand.vmem [shape: f32[1,8,32], index: 9, kind: output, shape index: {1}]
  %10 = xla_tuple %s8, %s9
  %s11 = sld [smem:[#allocation0]]
  $region54: #{rwkv_forward.8} parent=0
    _
  %s13 = ssub.s32 1, %s11
  %s14 = scalar_select 0, %s13, %s11
  // Predicated region
  $region2: #{rwkv_forward.8} parent=0 // pred_check
    _
  $region3: #{rwkv_forward.8} parent=0 // pred_check_branch
    %16 = sbr.rel (0) target = $region5
  $region4: #{rwkv_forward.8} parent=0 // pred_region
    _
  $region5: #{rwkv_forward.8} parent=0 // pred_fallthru
    _
  // Predicated region
  $region6: #{rwkv_forward.8} parent=0 // pred_check
    _
  $region7: #{rwkv_forward.8} parent=0 // pred_check_branch
    %18 = sbr.rel (0) target = $region9
  $region8: #{rwkv_forward.8} parent=0 // pred_region
    _
  $region9: #{rwkv_forward.8} parent=0 // pred_fallthru
    _
  // Predicated region
  $region10: #{rwkv_forward.8} parent=0 // pred_check
    _
  $region11: #{rwkv_forward.8} parent=0 // pred_check_branch
    %20 = sbr.rel (0) target = $region13
  $region12: #{rwkv_forward.8} parent=0 // pred_region
    _
  $region13: #{rwkv_forward.8} parent=0 // pred_fallthru
    _
  // Predicated region
  $region14: #{rwkv_forward.8} parent=0 // pred_check
    _
  $region15: #{rwkv_forward.8} parent=0 // pred_check_branch
    %22 = sbr.rel (0) target = $region17
  $region16: #{rwkv_forward.8} parent=0 // pred_region
    _
  $region17: #{rwkv_forward.8} parent=0 // pred_fallthru
    _
  // Predicated region
  $region18: #{rwkv_forward.8} parent=0 // pred_check
    _
  $region19: #{rwkv_forward.8} parent=0 // pred_check_branch
    %24 = sbr.rel (0) target = $region21
  $region20: #{rwkv_forward.8} parent=0 // pred_region
    _
  $region21: #{rwkv_forward.8} parent=0 // pred_fallthru
    _
  // Predicated region
  $region22: #{rwkv_forward.8} parent=0 // pred_check
    _
  $region23: #{rwkv_forward.8} parent=0 // pred_check_branch
    %26 = sbr.rel (0) target = $region25
  $region24: #{rwkv_forward.8} parent=0 // pred_region
    _
  $region25: #{rwkv_forward.8} parent=0 // pred_fallthru
    _
  // Predicated region
  $region26: #{rwkv_forward.8} parent=0 // pred_check
    _
  $region27: #{rwkv_forward.8} parent=0 // pred_check_branch
    %28 = sbr.rel (0) target = $region29
  $region28: #{rwkv_forward.8} parent=0 // pred_region
    _
  $region29: #{rwkv_forward.8} parent=0 // pred_fallthru
    _
  // Predicated region
  $region30: #{rwkv_forward.8} parent=0 // pred_check
    _
  $region31: #{rwkv_forward.8} parent=0 // pred_check_branch
    %30 = sbr.rel (0) target = $region33
  $region32: #{rwkv_forward.8} parent=0 // pred_region
    _
  $region33: #{rwkv_forward.8} parent=0 // pred_fallthru
    _
  %p32 = scmp.eq.s32.totalorder 0, 0
  // Predicated region
  $region34: #{rwkv_forward.8} parent=0 // pred_check
    %p33 = pneg %p32
  $region35: #{rwkv_forward.8} parent=0 // pred_check_branch
    %35 = sbr.rel (%p33) target = $region37
  $region36: #{rwkv_forward.8} parent=0 // pred_region
    %vm36 = vcmask 261120
    %37 = vst.msk [vmem:[%s9] sm:$0xff] %vm36, 0.0
  $region37: #{rwkv_forward.8} parent=0 // pred_fallthru
    _
  %v38 = vld [vmem:[%s0] sm:$0xff]
  %v39 = vld [vmem:[%s0 + $0x8] sm:$0xff]
  %v40 = vld [vmem:[%s0 + $0x10] sm:$0xff]
  %v41 = vld [vmem:[%s0 + $0x18] sm:$0xff]
  %v42 = vld [vmem:[%s0 + $0x20] sm:$0xff]
  %v43 = vld [vmem:[%s0 + $0x28] sm:$0xff]
  %v44 = vld [vmem:[%s0 + $0x30] sm:$0xff]
  %v45 = vld [vmem:[%s0 + $0x38] sm:$0xff]
  %v46 = vld [vmem:[%s1] sm:$0x1]
  %v47 = vld [vmem:[%s2] sm:$0x1]
  %vm48 = vcmask 261120
  %v49 = vsel %vm48, %v38, 0.0
  %50 = vadd.xlane.f32.xlu0 %v49
  %v51 = vpop.xlane.xlu0 %50
  %v52 = vsel %vm48, %v39, 0.0
  %53 = vadd.xlane.f32.xlu0 %v52
  %v54 = vpop.xlane.xlu0 %53
  %v55 = vsel %vm48, %v40, 0.0
  %56 = vadd.xlane.f32.xlu0 %v55
  %v57 = vpop.xlane.xlu0 %56
  %v58 = vsel %vm48, %v41, 0.0
  %59 = vadd.xlane.f32.xlu0 %v58
  %v60 = vpop.xlane.xlu0 %59
  %v61 = vsel %vm48, %v42, 0.0
  %62 = vadd.xlane.f32.xlu0 %v61
  %v63 = vpop.xlane.xlu0 %62
  %v64 = vsel %vm48, %v43, 0.0
  %65 = vadd.xlane.f32.xlu0 %v64
  %v66 = vpop.xlane.xlu0 %65
  %v67 = vsel %vm48, %v44, 0.0
  %68 = vadd.xlane.f32.xlu0 %v67
  %v69 = vpop.xlane.xlu0 %68
  %v70 = vsel %vm48, %v45, 0.0
  %71 = vadd.xlane.f32.xlu0 %v70
  %v72 = vpop.xlane.xlu0 %71
  %v73 = vrcp.pop 32.0
  %v74 = vmul.f32 %v51, %v73
  %v75 = vmul.f32 %v54, %v73
  %v76 = vmul.f32 %v57, %v73
  %v77 = vmul.f32 %v60, %v73
  %v78 = vmul.f32 %v63, %v73
  %v79 = vmul.f32 %v66, %v73
  %v80 = vmul.f32 %v69, %v73
  %v81 = vmul.f32 %v72, %v73
  %v82 = vsub.f32 %v38, %v74
  %v83 = vsub.f32 %v39, %v75
  %v84 = vsub.f32 %v40, %v76
  %v85 = vsub.f32 %v41, %v77
  %v86 = vsub.f32 %v42, %v78
  %v87 = vsub.f32 %v43, %v79
  %v88 = vsub.f32 %v44, %v80
  %v89 = vsub.f32 %v45, %v81
  %v90 = vmul.f32 %v82, %v82
  %v91 = vmul.f32 %v83, %v83
  %v92 = vmul.f32 %v84, %v84
  %v93 = vmul.f32 %v85, %v85
  %v94 = vmul.f32 %v86, %v86
  %v95 = vmul.f32 %v87, %v87
  %v96 = vmul.f32 %v88, %v88
  %v97 = vmul.f32 %v89, %v89
  %v98 = vsel %vm48, %v90, 0.0
  %99 = vadd.xlane.f32.xlu0 %v98
  %v100 = vpop.xlane.xlu0 %99
  %v101 = vsel %vm48, %v91, 0.0
  %102 = vadd.xlane.f32.xlu0 %v101
  %v103 = vpop.xlane.xlu0 %102
  %v104 = vsel %vm48, %v92, 0.0
  %105 = vadd.xlane.f32.xlu0 %v104
  %v106 = vpop.xlane.xlu0 %105
  %v107 = vsel %vm48, %v93, 0.0
  %108 = vadd.xlane.f32.xlu0 %v107
  %v109 = vpop.xlane.xlu0 %108
  %v110 = vsel %vm48, %v94, 0.0
  %111 = vadd.xlane.f32.xlu0 %v110
  %v112 = vpop.xlane.xlu0 %111
  %v113 = vsel %vm48, %v95, 0.0
  %114 = vadd.xlane.f32.xlu0 %v113
  %v115 = vpop.xlane.xlu0 %114
  %v116 = vsel %vm48, %v96, 0.0
  %117 = vadd.xlane.f32.xlu0 %v116
  %v118 = vpop.xlane.xlu0 %117
  %v119 = vsel %vm48, %v97, 0.0
  %120 = vadd.xlane.f32.xlu0 %v119
  %v121 = vpop.xlane.xlu0 %120
  %v122 = vmul.f32 %v100, %v73
  %v123 = vmul.f32 %v103, %v73
  %v124 = vmul.f32 %v106, %v73
  %v125 = vmul.f32 %v109, %v73
  %v126 = vmul.f32 %v112, %v73
  %v127 = vmul.f32 %v115, %v73
  %v128 = vmul.f32 %v118, %v73
  %v129 = vmul.f32 %v121, %v73
  %v130 = vadd.f32 %v122, 1e-05
  %v131 = vadd.f32 %v123, 1e-05
  %v132 = vadd.f32 %v124, 1e-05
  %v133 = vadd.f32 %v125, 1e-05
  %v134 = vadd.f32 %v126, 1e-05
  %v135 = vadd.f32 %v127, 1e-05
  %v136 = vadd.f32 %v128, 1e-05
  %v137 = vadd.f32 %v129, 1e-05
  %v138 = vrsqrt.pop %v130
  %v139 = vrsqrt.pop %v131
  %v140 = vrsqrt.pop %v132
  %v141 = vrsqrt.pop %v133
  %v142 = vrsqrt.pop %v134
  %v143 = vrsqrt.pop %v135
  %v144 = vrsqrt.pop %v136
  %v145 = vrsqrt.pop %v137
  %v146 = vmul.f32 %v82, %v138
  %v147 = vmul.f32 %v83, %v139
  %v148 = vmul.f32 %v84, %v140
  %v149 = vmul.f32 %v85, %v141
  %v150 = vmul.f32 %v86, %v142
  %v151 = vmul.f32 %v87, %v143
  %v152 = vmul.f32 %v88, %v144
  %v153 = vmul.f32 %v89, %v145
  %v155 = vlaneseq
  %v156 = vshrl.u32 %v155, 7
  %v157 = vsub.s32 0, %v156
  %v158 = vrot.slane %v46, %v157
  %v160 = vmul.f32 %v146, %v158
  %v161 = vmul.f32 %v147, %v158
  %v162 = vmul.f32 %v148, %v158
  %v163 = vmul.f32 %v149, %v158
  %v164 = vmul.f32 %v150, %v158
  %v165 = vmul.f32 %v151, %v158
  %v166 = vmul.f32 %v152, %v158
  %v167 = vmul.f32 %v153, %v158
  %v169 = vlaneseq
  %v170 = vshrl.u32 %v169, 7
  %v171 = vsub.s32 0, %v170
  %v172 = vrot.slane %v47, %v171
  %v174 = vadd.f32 %v160, %v172
  %v175 = vadd.f32 %v161, %v172
  %v176 = vadd.f32 %v162, %v172
  %v177 = vadd.f32 %v163, %v172
  %v178 = vadd.f32 %v164, %v172
  %v179 = vadd.f32 %v165, %v172
  %v180 = vadd.f32 %v166, %v172
  %v181 = vadd.f32 %v167, %v172
  %v182 = vld [vmem:[%s9] sm:$0xff]
  %183 = vst.msk [vmem:[%s9] sm:$0xff] %vm48, %v181
  %v184 = vsub.f32 %v174, %v182
  %v185 = vsub.f32 %v175, %v174
  %v186 = vsub.f32 %v176, %v175
  %v187 = vsub.f32 %v177, %v176
  %v188 = vsub.f32 %v178, %v177
  %v189 = vsub.f32 %v179, %v178
  %v190 = vsub.f32 %v180, %v179
  %v191 = vsub.f32 %v181, %v180
  %v192 = vld [vmem:[%s3] sm:$0x1]
  %v194 = vlaneseq
  %v195 = vshrl.u32 %v194, 7
  %v196 = vsub.s32 0, %v195
  %v197 = vrot.slane %v192, %v196
  %v199 = vmul.f32 %v197, %v184
  %v200 = vmul.f32 %v197, %v185
  %v201 = vmul.f32 %v197, %v186
  %v202 = vmul.f32 %v197, %v187
  %v203 = vmul.f32 %v197, %v188
  %v204 = vmul.f32 %v197, %v189
  %v205 = vmul.f32 %v197, %v190
  %v206 = vmul.f32 %v197, %v191
  %v207 = vadd.f32 %v182, %v199
  %v208 = vadd.f32 %v174, %v200
  %v209 = vadd.f32 %v175, %v201
  %v210 = vadd.f32 %v176, %v202
  %v211 = vadd.f32 %v177, %v203
  %v212 = vadd.f32 %v178, %v204
  %v213 = vadd.f32 %v179, %v205
  %v214 = vadd.f32 %v180, %v206
  %v215 = vpack.c.bf16 %v208, %v207
  %v216 = vpack.c.bf16 %v210, %v209
  %v217 = vpack.c.bf16 %v212, %v211
  %v218 = vpack.c.bf16 %v214, %v213
  %v219 = vld [vmem:[%s4] sm:$0x1]
  %v221 = vlaneseq
  %v222 = vshrl.u32 %v221, 7
  %v223 = vsub.s32 0, %v222
  %v224 = vrot.slane %v219, %v223
  %v226 = vmul.f32 %v224, %v184
  %v227 = vmul.f32 %v224, %v185
  %v228 = vmul.f32 %v224, %v186
  %v229 = vmul.f32 %v224, %v187
  %v230 = vmul.f32 %v224, %v188
  %v231 = vmul.f32 %v224, %v189
  %v232 = vmul.f32 %v224, %v190
  %v233 = vmul.f32 %v224, %v191
  %v234 = vadd.f32 %v182, %v226
  %v235 = vadd.f32 %v174, %v227
  %v236 = vadd.f32 %v175, %v228
  %v237 = vadd.f32 %v176, %v229
  %v238 = vadd.f32 %v177, %v230
  %v239 = vadd.f32 %v178, %v231
  %v240 = vadd.f32 %v179, %v232
  %v241 = vadd.f32 %v180, %v233
  %v242 = vpack.c.bf16 %v235, %v234
  %v243 = vpack.c.bf16 %v237, %v236
  %v244 = vpack.c.bf16 %v239, %v238
  %v245 = vpack.c.bf16 %v241, %v240
  %v246 = vld [vmem:[%s5] sm:$0xf]
  %v247 = vld [vmem:[%s5 + $0x4] sm:$0xf]
  %v248 = vld [vmem:[%s5 + $0x8] sm:$0xf]
  %v249 = vld [vmem:[%s5 + $0xc] sm:$0xf]
  %v254 = vunpack.c.l.b16 %v246
  %v255 = vunpack.c.l.b16 %v247
  %v256 = vunpack.c.l.b16 %v248
  %v257 = vunpack.c.l.b16 %v249
  %v258 = vpack.c.b16 %v255, %v254
  %v259 = vpack.c.b16 %v257, %v256
  %v263 = vsel %vm48, %v215, 0
  %v266 = vsel %vm48, %v216, 0
  %v269 = vsel %vm48, %v217, 0
  %v272 = vsel %vm48, %v218, 0
  %274 = vmatprep.subr.bf16.mxu0 0
  %275 = vmatpush1.bf16.msra.mxu0 %v258
  %276 = vmatprep.subr.bf16.mxu0 0
  %277 = vmatpush1.bf16.msra.mxu0 %v259
  %278 = vmatprep.subr.bf16.mxu0 0
  %279 = vmatpush1.bf16.msra.mxu0 0
  %280 = vmatprep.subr.bf16.mxu0 0
  %281 = vmatpush1.bf16.msra.mxu0 0
  %282 = vmatprep.subr.bf16.mxu0 0
  %283 = vmatpush1.bf16.msra.mxu0 0
  %284 = vmatprep.subr.bf16.mxu0 0
  %285 = vmatpush1.bf16.msra.mxu0 0
  %286 = vmatprep.subr.bf16.mxu0 0
  %287 = vmatpush1.bf16.msra.mxu0 0
  %288 = vmatprep.subr.bf16.mxu0 0
  %289 = vmatpush1.bf16.msra.mxu0 0
  %290 = vmatprep.subr.bf16.mxu0 0
  %291 = vmatpush1.bf16.msra.mxu0 0
  %292 = vmatprep.subr.bf16.mxu0 0
  %293 = vmatpush1.bf16.msra.mxu0 0
  %294 = vmatprep.subr.bf16.mxu0 0
  %295 = vmatpush1.bf16.msra.mxu0 0
  %296 = vmatprep.subr.bf16.mxu0 0
  %297 = vmatpush1.bf16.msra.mxu0 0
  %298 = vmatprep.subr.bf16.mxu0 0
  %299 = vmatpush1.bf16.msra.mxu0 0
  %300 = vmatprep.subr.bf16.mxu0 0
  %301 = vmatpush1.bf16.msra.mxu0 0
  %302 = vmatprep.subr.bf16.mxu0 0
  %303 = vmatpush1.bf16.msra.mxu0 0
  %304 = vmatprep.subr.bf16.mxu0 0
  %305 = vmatpush1.bf16.msra.mxu0 0
  %306 = vmatprep.mubr.bf16.mxu0 0
  %307 = vmatmul.mubr.bf16.gmra.mrb[0].mxu0 %v263
  %v308 = vpop.f32.mrb[0].mxu0
  %v309 = vadd.f32 0.0, %v308
  %v310 = vpop.f32.mrb[0].mxu0
  %v311 = vpop.f32.mrb[0].mxu0
  %v312 = vadd.f32 0.0, %v311
  %v313 = vpop.f32.mrb[0].mxu0
  %314 = vmatprep.mubr.bf16.mxu0 0
  %315 = vmatmul.mubr.bf16.gmra.mrb[0].mxu0 %v266
  %v316 = vpop.f32.mrb[0].mxu0
  %v317 = vadd.f32 0.0, %v316
  %v318 = vpop.f32.mrb[0].mxu0
  %v319 = vpop.f32.mrb[0].mxu0
  %v320 = vadd.f32 0.0, %v319
  %v321 = vpop.f32.mrb[0].mxu0
  %322 = vmatprep.mubr.bf16.mxu0 0
  %323 = vmatmul.mubr.bf16.gmra.mrb[0].mxu0 %v269
  %v324 = vpop.f32.mrb[0].mxu0
  %v325 = vadd.f32 0.0, %v324
  %v326 = vpop.f32.mrb[0].mxu0
  %v327 = vpop.f32.mrb[0].mxu0
  %v328 = vadd.f32 0.0, %v327
  %v329 = vpop.f32.mrb[0].mxu0
  %330 = vmatprep.mubr.bf16.mxu0 0
  %331 = vmatmul.mubr.bf16.gmra.mrb[0].mxu0 %v272
  %v332 = vpop.f32.mrb[0].mxu0
  %v333 = vadd.f32 0.0, %v332
  %v334 = vpop.f32.mrb[0].mxu0
  %v335 = vpop.f32.mrb[0].mxu0
  %v336 = vadd.f32 0.0, %v335
  %v337 = vpop.f32.mrb[0].mxu0
  %338 = vdwg.mxu0
  %v339 = vmax.f32 %v309, 0.0
  %v340 = vmax.f32 %v312, 0.0
  %v341 = vmax.f32 %v317, 0.0
  %v342 = vmax.f32 %v320, 0.0
  %v343 = vmax.f32 %v325, 0.0
  %v344 = vmax.f32 %v328, 0.0
  %v345 = vmax.f32 %v333, 0.0
  %v346 = vmax.f32 %v336, 0.0
  %v347 = vmul.f32 %v339, %v339
  %v348 = vmul.f32 %v340, %v340
  %v349 = vmul.f32 %v341, %v341
  %v350 = vmul.f32 %v342, %v342
  %v351 = vmul.f32 %v343, %v343
  %v352 = vmul.f32 %v344, %v344
  %v353 = vmul.f32 %v345, %v345
  %v354 = vmul.f32 %v346, %v346
  %v355 = vpack.c.bf16 %v348, %v347
  %v356 = vpack.c.bf16 %v350, %v349
  %v357 = vpack.c.bf16 %v352, %v351
  %v358 = vpack.c.bf16 %v354, %v353
  %v359 = vld [vmem:[%s6] sm:$0xf]
  %v360 = vld [vmem:[%s6 + $0x4] sm:$0xf]
  %v361 = vld [vmem:[%s6 + $0x8] sm:$0xf]
  %v362 = vld [vmem:[%s6 + $0xc] sm:$0xf]
  %v367 = vunpack.c.l.b16 %v359
  %v368 = vunpack.c.l.b16 %v360
  %v369 = vunpack.c.l.b16 %v361
  %v370 = vunpack.c.l.b16 %v362
  %v371 = vpack.c.b16 %v368, %v367
  %v372 = vpack.c.b16 %v370, %v369
  %v376 = vsel %vm48, %v242, 0
  %v379 = vsel %vm48, %v243, 0
  %v382 = vsel %vm48, %v244, 0
  %v385 = vsel %vm48, %v245, 0
  %387 = vmatprep.subr.bf16.mxu0 0
  %388 = vmatpush1.bf16.msra.mxu0 %v371
  %389 = vmatprep.subr.bf16.mxu0 0
  %390 = vmatpush1.bf16.msra.mxu0 %v372
  %391 = vmatprep.subr.bf16.mxu0 0
  %392 = vmatpush1.bf16.msra.mxu0 0
  %393 = vmatprep.subr.bf16.mxu0 0
  %394 = vmatpush1.bf16.msra.mxu0 0
  %395 = vmatprep.subr.bf16.mxu0 0
  %396 = vmatpush1.bf16.msra.mxu0 0
  %397 = vmatprep.subr.bf16.mxu0 0
  %398 = vmatpush1.bf16.msra.mxu0 0
  %399 = vmatprep.subr.bf16.mxu0 0
  %400 = vmatpush1.bf16.msra.mxu0 0
  %401 = vmatprep.subr.bf16.mxu0 0
  %402 = vmatpush1.bf16.msra.mxu0 0
  %403 = vmatprep.subr.bf16.mxu0 0
  %404 = vmatpush1.bf16.msra.mxu0 0
  %405 = vmatprep.subr.bf16.mxu0 0
  %406 = vmatpush1.bf16.msra.mxu0 0
  %407 = vmatprep.subr.bf16.mxu0 0
  %408 = vmatpush1.bf16.msra.mxu0 0
  %409 = vmatprep.subr.bf16.mxu0 0
  %410 = vmatpush1.bf16.msra.mxu0 0
  %411 = vmatprep.subr.bf16.mxu0 0
  %412 = vmatpush1.bf16.msra.mxu0 0
  %413 = vmatprep.subr.bf16.mxu0 0
  %414 = vmatpush1.bf16.msra.mxu0 0
  %415 = vmatprep.subr.bf16.mxu0 0
  %416 = vmatpush1.bf16.msra.mxu0 0
  %417 = vmatprep.subr.bf16.mxu0 0
  %418 = vmatpush1.bf16.msra.mxu0 0
  %419 = vmatprep.mubr.bf16.mxu0 0
  %420 = vmatmul.mubr.bf16.gmra.mrb[0].mxu0 %v376
  %v421 = vpop.f32.mrb[0].mxu0
  %v422 = vadd.f32 0.0, %v421
  %v423 = vpop.f32.mrb[0].mxu0
  %v424 = vpop.f32.mrb[0].mxu0
  %v425 = vadd.f32 0.0, %v424
  %v426 = vpop.f32.mrb[0].mxu0
  %427 = vmatprep.mubr.bf16.mxu0 0
  %428 = vmatmul.mubr.bf16.gmra.mrb[0].mxu0 %v379
  %v429 = vpop.f32.mrb[0].mxu0
  %v430 = vadd.f32 0.0, %v429
  %v431 = vpop.f32.mrb[0].mxu0
  %v432 = vpop.f32.mrb[0].mxu0
  %v433 = vadd.f32 0.0, %v432
  %v434 = vpop.f32.mrb[0].mxu0
  %435 = vmatprep.mubr.bf16.mxu0 0
  %436 = vmatmul.mubr.bf16.gmra.mrb[0].mxu0 %v382
  %v437 = vpop.f32.mrb[0].mxu0
  %v438 = vadd.f32 0.0, %v437
  %v439 = vpop.f32.mrb[0].mxu0
  %v440 = vpop.f32.mrb[0].mxu0
  %v441 = vadd.f32 0.0, %v440
  %v442 = vpop.f32.mrb[0].mxu0
  %443 = vmatprep.mubr.bf16.mxu0 0
  %444 = vmatmul.mubr.bf16.gmra.mrb[0].mxu0 %v385
  %v445 = vpop.f32.mrb[0].mxu0
  %v446 = vadd.f32 0.0, %v445
  %v447 = vpop.f32.mrb[0].mxu0
  %v448 = vpop.f32.mrb[0].mxu0
  %v449 = vadd.f32 0.0, %v448
  %v450 = vpop.f32.mrb[0].mxu0
  %451 = vdwg.mxu0
  %v452 = vld [vmem:[%s7] sm:$0xf]
  %v453 = vld [vmem:[%s7 + $0x4] sm:$0xf]
  %v454 = vld [vmem:[%s7 + $0x8] sm:$0xf]
  %v455 = vld [vmem:[%s7 + $0xc] sm:$0xf]
  %v456 = vld [vmem:[%s7 + $0x10] sm:$0xf]
  %v457 = vld [vmem:[%s7 + $0x14] sm:$0xf]
  %v458 = vld [vmem:[%s7 + $0x18] sm:$0xf]
  %v459 = vld [vmem:[%s7 + $0x1c] sm:$0xf]
  %v460 = vld [vmem:[%s7 + $0x20] sm:$0xf]
  %v461 = vld [vmem:[%s7 + $0x24] sm:$0xf]
  %v462 = vld [vmem:[%s7 + $0x28] sm:$0xf]
  %v463 = vld [vmem:[%s7 + $0x2c] sm:$0xf]
  %v464 = vld [vmem:[%s7 + $0x30] sm:$0xf]
  %v465 = vld [vmem:[%s7 + $0x34] sm:$0xf]
  %v466 = vld [vmem:[%s7 + $0x38] sm:$0xf]
  %v467 = vld [vmem:[%s7 + $0x3c] sm:$0xf]
  %v484 = vunpack.c.l.b16 %v452
  %v485 = vunpack.c.l.b16 %v453
  %v486 = vunpack.c.l.b16 %v454
  %v487 = vunpack.c.l.b16 %v455
  %v488 = vunpack.c.l.b16 %v456
  %v489 = vunpack.c.l.b16 %v457
  %v490 = vunpack.c.l.b16 %v458
  %v491 = vunpack.c.l.b16 %v459
  %v492 = vunpack.c.l.b16 %v460
  %v493 = vunpack.c.l.b16 %v461
  %v494 = vunpack.c.l.b16 %v462
  %v495 = vunpack.c.l.b16 %v463
  %v496 = vunpack.c.l.b16 %v464
  %v497 = vunpack.c.l.b16 %v465
  %v498 = vunpack.c.l.b16 %v466
  %v499 = vunpack.c.l.b16 %v467
  %v500 = vpack.c.b16 %v485, %v484
  %v501 = vpack.c.b16 %v487, %v486
  %v502 = vpack.c.b16 %v489, %v488
  %v503 = vpack.c.b16 %v491, %v490
  %v504 = vpack.c.b16 %v493, %v492
  %v505 = vpack.c.b16 %v495, %v494
  %v506 = vpack.c.b16 %v497, %v496
  %v507 = vpack.c.b16 %v499, %v498
  %516 = vmatprep.subr.bf16.mxu0 0
  %517 = vmatpush1.bf16.msra.mxu0 %v500
  %518 = vmatprep.subr.bf16.mxu0 0
  %519 = vmatpush1.bf16.msra.mxu0 %v501
  %520 = vmatprep.subr.bf16.mxu0 0
  %521 = vmatpush1.bf16.msra.mxu0 %v502
  %522 = vmatprep.subr.bf16.mxu0 0
  %523 = vmatpush1.bf16.msra.mxu0 %v503
  %524 = vmatprep.subr.bf16.mxu0 0
  %525 = vmatpush1.bf16.msra.mxu0 %v504
  %526 = vmatprep.subr.bf16.mxu0 0
  %527 = vmatpush1.bf16.msra.mxu0 %v505
  %528 = vmatprep.subr.bf16.mxu0 0
  %529 = vmatpush1.bf16.msra.mxu0 %v506
  %530 = vmatprep.subr.bf16.mxu0 0
  %531 = vmatpush1.bf16.msra.mxu0 %v507
  %532 = vmatprep.subr.bf16.mxu0 0
  %533 = vmatpush1.bf16.msra.mxu0 0
  %534 = vmatprep.subr.bf16.mxu0 0
  %535 = vmatpush1.bf16.msra.mxu0 0
  %536 = vmatprep.subr.bf16.mxu0 0
  %537 = vmatpush1.bf16.msra.mxu0 0
  %538 = vmatprep.subr.bf16.mxu0 0
  %539 = vmatpush1.bf16.msra.mxu0 0
  %540 = vmatprep.subr.bf16.mxu0 0
  %541 = vmatpush1.bf16.msra.mxu0 0
  %542 = vmatprep.subr.bf16.mxu0 0
  %543 = vmatpush1.bf16.msra.mxu0 0
  %544 = vmatprep.subr.bf16.mxu0 0
  %545 = vmatpush1.bf16.msra.mxu0 0
  %546 = vmatprep.subr.bf16.mxu0 0
  %547 = vmatpush1.bf16.msra.mxu0 0
  %548 = vmatprep.mubr.bf16.mxu0 0
  %549 = vmatmul.mubr.bf16.gmra.mrb[0].mxu0 %v355
  %v550 = vpop.f32.mrb[0].mxu0
  %v551 = vadd.f32 0.0, %v550
  %v552 = vpop.f32.mrb[0].mxu0
  %v553 = vpop.f32.mrb[0].mxu0
  %v554 = vadd.f32 0.0, %v553
  %v555 = vpop.f32.mrb[0].mxu0
  %556 = vmatprep.mubr.bf16.mxu0 0
  %557 = vmatmul.mubr.bf16.gmra.mrb[0].mxu0 %v356
  %v558 = vpop.f32.mrb[0].mxu0
  %v559 = vadd.f32 0.0, %v558
  %v560 = vpop.f32.mrb[0].mxu0
  %v561 = vpop.f32.mrb[0].mxu0
  %v562 = vadd.f32 0.0, %v561
  %v563 = vpop.f32.mrb[0].mxu0
  %564 = vmatprep.mubr.bf16.mxu0 0
  %565 = vmatmul.mubr.bf16.gmra.mrb[0].mxu0 %v357
  %v566 = vpop.f32.mrb[0].mxu0
  %v567 = vadd.f32 0.0, %v566
  %v568 = vpop.f32.mrb[0].mxu0
  %v569 = vpop.f32.mrb[0].mxu0
  %v570 = vadd.f32 0.0, %v569
  %v571 = vpop.f32.mrb[0].mxu0
  %572 = vmatprep.mubr.bf16.mxu0 0
  %573 = vmatmul.mubr.bf16.gmra.mrb[0].mxu0 %v358
  %v574 = vpop.f32.mrb[0].mxu0
  %v575 = vadd.f32 0.0, %v574
  %v576 = vpop.f32.mrb[0].mxu0
  %v577 = vpop.f32.mrb[0].mxu0
  %v578 = vadd.f32 0.0, %v577
  %v579 = vpop.f32.mrb[0].mxu0
  %580 = vdwg.mxu0
  %v581 = vxor.u32 %v422, 2147483648
  %v582 = vxor.u32 %v425, 2147483648
  %v583 = vxor.u32 %v430, 2147483648
  %v584 = vxor.u32 %v433, 2147483648
  %v585 = vxor.u32 %v438, 2147483648
  %v586 = vxor.u32 %v441, 2147483648
  %v587 = vxor.u32 %v446, 2147483648
  %v588 = vxor.u32 %v449, 2147483648
  %v589 = vmul.f32 %v581, 1.442695
  %v590 = vpow.pop %v589
  %v591 = vmul.f32 %v582, 1.442695
  %v592 = vpow.pop %v591
  %v593 = vmul.f32 %v583, 1.442695
  %v594 = vpow.pop %v593
  %v595 = vmul.f32 %v584, 1.442695
  %v596 = vpow.pop %v595
  %v597 = vmul.f32 %v585, 1.442695
  %v598 = vpow.pop %v597
  %v599 = vmul.f32 %v586, 1.442695
  %v600 = vpow.pop %v599
  %v601 = vmul.f32 %v587, 1.442695
  %v602 = vpow.pop %v601
  %v603 = vmul.f32 %v588, 1.442695
  %v604 = vpow.pop %v603
  %v605 = vadd.f32 %v590, 1.0
  %v606 = vadd.f32 %v592, 1.0
  %v607 = vadd.f32 %v594, 1.0
  %v608 = vadd.f32 %v596, 1.0
  %v609 = vadd.f32 %v598, 1.0
  %v610 = vadd.f32 %v600, 1.0
  %v611 = vadd.f32 %v602, 1.0
  %v612 = vadd.f32 %v604, 1.0
  %v613 = vrcp.pop %v605
  %v614 = vmul.f32 1.0, %v613
  %v615 = vrcp.pop %v606
  %v616 = vmul.f32 1.0, %v615
  %v617 = vrcp.pop %v607
  %v618 = vmul.f32 1.0, %v617
  %v619 = vrcp.pop %v608
  %v620 = vmul.f32 1.0, %v619
  %v621 = vrcp.pop %v609
  %v622 = vmul.f32 1.0, %v621
  %v623 = vrcp.pop %v610
  %v624 = vmul.f32 1.0, %v623
  %v625 = vrcp.pop %v611
  %v626 = vmul.f32 1.0, %v625
  %v627 = vrcp.pop %v612
  %v628 = vmul.f32 1.0, %v627
  %v629 = vmul.f32 %v614, %v551
  %v630 = vmul.f32 %v616, %v554
  %v631 = vmul.f32 %v618, %v559
  %v632 = vmul.f32 %v620, %v562
  %v633 = vmul.f32 %v622, %v567
  %v634 = vmul.f32 %v624, %v570
  %v635 = vmul.f32 %v626, %v575
  %v636 = vmul.f32 %v628, %v578
  %v637 = vadd.f32 %v38, %v629
  %v638 = vadd.f32 %v39, %v630
  %v639 = vadd.f32 %v40, %v631
  %v640 = vadd.f32 %v41, %v632
  %v641 = vadd.f32 %v42, %v633
  %v642 = vadd.f32 %v43, %v634
  %v643 = vadd.f32 %v44, %v635
  %v644 = vadd.f32 %v45, %v636
  %645 = vst.msk [vmem:[%s8] sm:$0xff] %vm48, %v637
  %646 = vst.msk [vmem:[%s8 + $0x8] sm:$0xff] %vm48, %v638
  %647 = vst.msk [vmem:[%s8 + $0x10] sm:$0xff] %vm48, %v639
  %648 = vst.msk [vmem:[%s8 + $0x18] sm:$0xff] %vm48, %v640
  %649 = vst.msk [vmem:[%s8 + $0x20] sm:$0xff] %vm48, %v641
  %650 = vst.msk [vmem:[%s8 + $0x28] sm:$0xff] %vm48, %v642
  %651 = vst.msk [vmem:[%s8 + $0x30] sm:$0xff] %vm48, %v643
  %652 = vst.msk [vmem:[%s8 + $0x38] sm:$0xff] %vm48, %v644
  // Predicated region
  $region38: #{rwkv_forward.8} parent=0 // pred_check
    _
  $region39: #{rwkv_forward.8} parent=0 // pred_check_branch
    %654 = sbr.rel (0) target = $region41
  $region40: #{rwkv_forward.8} parent=0 // pred_region
    _
  $region41: #{rwkv_forward.8} parent=0 // pred_fallthru
    _
  // Predicated region
  $region42: #{rwkv_forward.8} parent=0 // pred_check
    _
  $region43: #{rwkv_forward.8} parent=0 // pred_check_branch
    %656 = sbr.rel (0) target = $region45
  $region44: #{rwkv_forward.8} parent=0 // pred_region
    _
  $region45: #{rwkv_forward.8} parent=0 // pred_fallthru
    _
  // Predicated region
  $region46: #{rwkv_forward.8} parent=0 // pred_check
    _
  $region47: #{rwkv_forward.8} parent=0 // pred_check_branch
    %658 = sbr.rel (0) target = $region49
  $region48: #{rwkv_forward.8} parent=0 // pred_region
    _
  $region49: #{rwkv_forward.8} parent=0 // pred_fallthru
    _
  // Predicated region
  $region50: #{rwkv_forward.8} parent=0 // pred_check
    _
  $region51: #{rwkv_forward.8} parent=0 // pred_check_branch
    %660 = sbr.rel (0) target = $region53
  $region52: #{rwkv_forward.8} parent=0 // pred_region
    _
  $region53: #{rwkv_forward.8} parent=0 // pred_fallthru
    _

// kernel: rwkv_forward.11
$region0: #{rwkv_forward.11}
  #allocation0 [shape = 'u32[]', space=smem, size = 0x4, offset = 0x4, fixed_abs, tag = 'smem constant byte address 0x4 - core index']
  #allocation1 [shape = 'u32[144,128]{1,0:T(1,128)}', space=vmem, size = 0x12000, scoped, tag = 'internal scratch']
  %s0 = inlined_call_operand.vmem [shape: f32[64,32], index: 0, kind: input, shape index: {}]
  %s1 = inlined_call_operand.vmem [shape: f32[1,32], index: 1, kind: input, shape index: {}]
  %s2 = inlined_call_operand.vmem [shape: f32[1,32], index: 2, kind: input, shape index: {}]
  %s3 = inlined_call_operand.vmem [shape: bf16[32,64], index: 3, kind: input, shape index: {}]
  %s4 = inlined_call_operand.vmem [shape: f32[64,64], index: 4, kind: output, shape index: {}]
  %s5 = sld [smem:[#allocation0]]
  $region26: #{rwkv_forward.11} parent=0
    _
  %s7 = ssub.s32 1, %s5
  %s8 = scalar_select 0, %s7, %s5
  // Predicated region
  $region2: #{rwkv_forward.11} parent=0 // pred_check
    _
  $region3: #{rwkv_forward.11} parent=0 // pred_check_branch
    %10 = sbr.rel (0) target = $region5
  $region4: #{rwkv_forward.11} parent=0 // pred_region
    _
  $region5: #{rwkv_forward.11} parent=0 // pred_fallthru
    _
  // Predicated region
  $region6: #{rwkv_forward.11} parent=0 // pred_check
    _
  $region7: #{rwkv_forward.11} parent=0 // pred_check_branch
    %12 = sbr.rel (0) target = $region9
  $region8: #{rwkv_forward.11} parent=0 // pred_region
    _
  $region9: #{rwkv_forward.11} parent=0 // pred_fallthru
    _
  // Predicated region
  $region10: #{rwkv_forward.11} parent=0 // pred_check
    _
  $region11: #{rwkv_forward.11} parent=0 // pred_check_branch
    %14 = sbr.rel (0) target = $region13
  $region12: #{rwkv_forward.11} parent=0 // pred_region
    _
  $region13: #{rwkv_forward.11} parent=0 // pred_fallthru
    _
  // Predicated region
  $region14: #{rwkv_forward.11} parent=0 // pred_check
    _
  $region15: #{rwkv_forward.11} parent=0 // pred_check_branch
    %16 = sbr.rel (0) target = $region17
  $region16: #{rwkv_forward.11} parent=0 // pred_region
    _
  $region17: #{rwkv_forward.11} parent=0 // pred_fallthru
    _
  %v18 = vld [vmem:[%s0] sm:$0xff]
  %v19 = vld [vmem:[%s0 + $0x8] sm:$0xff]
  %v20 = vld [vmem:[%s0 + $0x10] sm:$0xff]
  %v21 = vld [vmem:[%s0 + $0x18] sm:$0xff]
  %v22 = vld [vmem:[%s0 + $0x20] sm:$0xff]
  %v23 = vld [vmem:[%s0 + $0x28] sm:$0xff]
  %v24 = vld [vmem:[%s0 + $0x30] sm:$0xff]
  %v25 = vld [vmem:[%s0 + $0x38] sm:$0xff]
  %v26 = vld [vmem:[%s1] sm:$0x1]
  %v27 = vld [vmem:[%s2] sm:$0x1]
  %vm28 = vcmask 261120
  %v29 = vsel %vm28, %v18, 0.0
  %30 = vadd.xlane.f32.xlu0 %v29
  %v31 = vpop.xlane.xlu0 %30
  %v32 = vsel %vm28, %v19, 0.0
  %33 = vadd.xlane.f32.xlu0 %v32
  %v34 = vpop.xlane.xlu0 %33
  %v35 = vsel %vm28, %v20, 0.0
  %36 = vadd.xlane.f32.xlu0 %v35
  %v37 = vpop.xlane.xlu0 %36
  %v38 = vsel %vm28, %v21, 0.0
  %39 = vadd.xlane.f32.xlu0 %v38
  %v40 = vpop.xlane.xlu0 %39
  %v41 = vsel %vm28, %v22, 0.0
  %42 = vadd.xlane.f32.xlu0 %v41
  %v43 = vpop.xlane.xlu0 %42
  %v44 = vsel %vm28, %v23, 0.0
  %45 = vadd.xlane.f32.xlu0 %v44
  %v46 = vpop.xlane.xlu0 %45
  %v47 = vsel %vm28, %v24, 0.0
  %48 = vadd.xlane.f32.xlu0 %v47
  %v49 = vpop.xlane.xlu0 %48
  %v50 = vsel %vm28, %v25, 0.0
  %51 = vadd.xlane.f32.xlu0 %v50
  %v52 = vpop.xlane.xlu0 %51
  %v53 = vrcp.pop 32.0
  %v54 = vmul.f32 %v31, %v53
  %v55 = vmul.f32 %v34, %v53
  %v56 = vmul.f32 %v37, %v53
  %v57 = vmul.f32 %v40, %v53
  %v58 = vmul.f32 %v43, %v53
  %v59 = vmul.f32 %v46, %v53
  %v60 = vmul.f32 %v49, %v53
  %v61 = vmul.f32 %v52, %v53
  %v62 = vsub.f32 %v18, %v54
  %v63 = vsub.f32 %v19, %v55
  %v64 = vsub.f32 %v20, %v56
  %v65 = vsub.f32 %v21, %v57
  %v66 = vsub.f32 %v22, %v58
  %v67 = vsub.f32 %v23, %v59
  %v68 = vsub.f32 %v24, %v60
  %v69 = vsub.f32 %v25, %v61
  %v70 = vmul.f32 %v62, %v62
  %v71 = vmul.f32 %v63, %v63
  %v72 = vmul.f32 %v64, %v64
  %v73 = vmul.f32 %v65, %v65
  %v74 = vmul.f32 %v66, %v66
  %v75 = vmul.f32 %v67, %v67
  %v76 = vmul.f32 %v68, %v68
  %v77 = vmul.f32 %v69, %v69
  %v78 = vsel %vm28, %v70, 0.0
  %79 = vadd.xlane.f32.xlu0 %v78
  %v80 = vpop.xlane.xlu0 %79
  %v81 = vsel %vm28, %v71, 0.0
  %82 = vadd.xlane.f32.xlu0 %v81
  %v83 = vpop.xlane.xlu0 %82
  %v84 = vsel %vm28, %v72, 0.0
  %85 = vadd.xlane.f32.xlu0 %v84
  %v86 = vpop.xlane.xlu0 %85
  %v87 = vsel %vm28, %v73, 0.0
  %88 = vadd.xlane.f32.xlu0 %v87
  %v89 = vpop.xlane.xlu0 %88
  %v90 = vsel %vm28, %v74, 0.0
  %91 = vadd.xlane.f32.xlu0 %v90
  %v92 = vpop.xlane.xlu0 %91
  %v93 = vsel %vm28, %v75, 0.0
  %94 = vadd.xlane.f32.xlu0 %v93
  %v95 = vpop.xlane.xlu0 %94
  %v96 = vsel %vm28, %v76, 0.0
  %97 = vadd.xlane.f32.xlu0 %v96
  %v98 = vpop.xlane.xlu0 %97
  %v99 = vsel %vm28, %v77, 0.0
  %100 = vadd.xlane.f32.xlu0 %v99
  %v101 = vpop.xlane.xlu0 %100
  %v102 = vmul.f32 %v80, %v53
  %v103 = vmul.f32 %v83, %v53
  %v104 = vmul.f32 %v86, %v53
  %v105 = vmul.f32 %v89, %v53
  %v106 = vmul.f32 %v92, %v53
  %v107 = vmul.f32 %v95, %v53
  %v108 = vmul.f32 %v98, %v53
  %v109 = vmul.f32 %v101, %v53
  %v110 = vadd.f32 %v102, 1e-05
  %v111 = vadd.f32 %v103, 1e-05
  %v112 = vadd.f32 %v104, 1e-05
  %v113 = vadd.f32 %v105, 1e-05
  %v114 = vadd.f32 %v106, 1e-05
  %v115 = vadd.f32 %v107, 1e-05
  %v116 = vadd.f32 %v108, 1e-05
  %v117 = vadd.f32 %v109, 1e-05
  %v118 = vrsqrt.pop %v110
  %v119 = vrsqrt.pop %v111
  %v120 = vrsqrt.pop %v112
  %v121 = vrsqrt.pop %v113
  %v122 = vrsqrt.pop %v114
  %v123 = vrsqrt.pop %v115
  %v124 = vrsqrt.pop %v116
  %v125 = vrsqrt.pop %v117
  %v126 = vmul.f32 %v62, %v118
  %v127 = vmul.f32 %v63, %v119
  %v128 = vmul.f32 %v64, %v120
  %v129 = vmul.f32 %v65, %v121
  %v130 = vmul.f32 %v66, %v122
  %v131 = vmul.f32 %v67, %v123
  %v132 = vmul.f32 %v68, %v124
  %v133 = vmul.f32 %v69, %v125
  %v135 = vlaneseq
  %v136 = vshrl.u32 %v135, 7
  %v137 = vsub.s32 0, %v136
  %v138 = vrot.slane %v26, %v137
  %v140 = vmul.f32 %v126, %v138
  %v141 = vmul.f32 %v127, %v138
  %v142 = vmul.f32 %v128, %v138
  %v143 = vmul.f32 %v129, %v138
  %v144 = vmul.f32 %v130, %v138
  %v145 = vmul.f32 %v131, %v138
  %v146 = vmul.f32 %v132, %v138
  %v147 = vmul.f32 %v133, %v138
  %v149 = vlaneseq
  %v150 = vshrl.u32 %v149, 7
  %v151 = vsub.s32 0, %v150
  %v152 = vrot.slane %v27, %v151
  %v154 = vadd.f32 %v140, %v152
  %v155 = vadd.f32 %v141, %v152
  %v156 = vadd.f32 %v142, %v152
  %v157 = vadd.f32 %v143, %v152
  %v158 = vadd.f32 %v144, %v152
  %v159 = vadd.f32 %v145, %v152
  %v160 = vadd.f32 %v146, %v152
  %v161 = vadd.f32 %v147, %v152
  %v162 = vpack.c.bf16 %v155, %v154
  %v163 = vpack.c.bf16 %v157, %v156
  %v164 = vpack.c.bf16 %v159, %v158
  %v165 = vpack.c.bf16 %v161, %v160
  %v166 = vld [vmem:[%s3] sm:$0xf]
  %v167 = vld [vmem:[%s3 + $0x4] sm:$0xf]
  %v168 = vld [vmem:[%s3 + $0x8] sm:$0xf]
  %v169 = vld [vmem:[%s3 + $0xc] sm:$0xf]
  %v174 = vunpack.c.l.b16 %v166
  %v175 = vunpack.c.l.b16 %v167
  %v176 = vunpack.c.l.b16 %v168
  %v177 = vunpack.c.l.b16 %v169
  %v178 = vpack.c.b16 %v175, %v174
  %v179 = vpack.c.b16 %v177, %v176
  %v183 = vsel %vm28, %v162, 0
  %v186 = vsel %vm28, %v163, 0
  %v189 = vsel %vm28, %v164, 0
  %v192 = vsel %vm28, %v165, 0
  %194 = vmatprep.subr.bf16.mxu0 0
  %195 = vmatpush1.bf16.msra.mxu0 %v178
  %196 = vmatprep.subr.bf16.mxu0 0
  %197 = vmatpush1.bf16.msra.mxu0 %v179
  %198 = vmatprep.subr.bf16.mxu0 0
  %199 = vmatpush1.bf16.msra.mxu0 0
  %200 = vmatprep.subr.bf16.mxu0 0
  %201 = vmatpush1.bf16.msra.mxu0 0
  %202 = vmatprep.subr.bf16.mxu0 0
  %203 = vmatpush1.bf16.msra.mxu0 0
  %204 = vmatprep.subr.bf16.mxu0 0
  %205 = vmatpush1.bf16.msra.mxu0 0
  %206 = vmatprep.subr.bf16.mxu0 0
  %207 = vmatpush1.bf16.msra.mxu0 0
  %208 = vmatprep.subr.bf16.mxu0 0
  %209 = vmatpush1.bf16.msra.mxu0 0
  %210 = vmatprep.subr.bf16.mxu0 0
  %211 = vmatpush1.bf16.msra.mxu0 0
  %212 = vmatprep.subr.bf16.mxu0 0
  %213 = vmatpush1.bf16.msra.mxu0 0
  %214 = vmatprep.subr.bf16.mxu0 0
  %215 = vmatpush1.bf16.msra.mxu0 0
  %216 = vmatprep.subr.bf16.mxu0 0
  %217 = vmatpush1.bf16.msra.mxu0 0
  %218 = vmatprep.subr.bf16.mxu0 0
  %219 = vmatpush1.bf16.msra.mxu0 0
  %220 = vmatprep.subr.bf16.mxu0 0
  %221 = vmatpush1.bf16.msra.mxu0 0
  %222 = vmatprep.subr.bf16.mxu0 0
  %223 = vmatpush1.bf16.msra.mxu0 0
  %224 = vmatprep.subr.bf16.mxu0 0
  %225 = vmatpush1.bf16.msra.mxu0 0
  %226 = vmatprep.mubr.bf16.mxu0 0
  %227 = vmatmul.mubr.bf16.gmra.mrb[0].mxu0 %v183
  %v228 = vpop.f32.mrb[0].mxu0
  %v229 = vadd.f32 0.0, %v228
  %v230 = vpop.f32.mrb[0].mxu0
  %v231 = vpop.f32.mrb[0].mxu0
  %v232 = vadd.f32 0.0, %v231
  %v233 = vpop.f32.mrb[0].mxu0
  %234 = vmatprep.mubr.bf16.mxu0 0
  %235 = vmatmul.mubr.bf16.gmra.mrb[0].mxu0 %v186
  %v236 = vpop.f32.mrb[0].mxu0
  %v237 = vadd.f32 0.0, %v236
  %v238 = vpop.f32.mrb[0].mxu0
  %v239 = vpop.f32.mrb[0].mxu0
  %v240 = vadd.f32 0.0, %v239
  %v241 = vpop.f32.mrb[0].mxu0
  %242 = vmatprep.mubr.bf16.mxu0 0
  %243 = vmatmul.mubr.bf16.gmra.mrb[0].mxu0 %v189
  %v244 = vpop.f32.mrb[0].mxu0
  %v245 = vadd.f32 0.0, %v244
  %v246 = vpop.f32.mrb[0].mxu0
  %v247 = vpop.f32.mrb[0].mxu0
  %v248 = vadd.f32 0.0, %v247
  %v249 = vpop.f32.mrb[0].mxu0
  %250 = vmatprep.mubr.bf16.mxu0 0
  %251 = vmatmul.mubr.bf16.gmra.mrb[0].mxu0 %v192
  %v252 = vpop.f32.mrb[0].mxu0
  %v253 = vadd.f32 0.0, %v252
  %v254 = vpop.f32.mrb[0].mxu0
  %v255 = vpop.f32.mrb[0].mxu0
  %v256 = vadd.f32 0.0, %v255
  %v257 = vpop.f32.mrb[0].mxu0
  %258 = vdwg.mxu0
  %vm259 = vcmask 523264
  %260 = vst.msk [vmem:[%s4] sm:$0xff] %vm259, %v229
  %261 = vst.msk [vmem:[%s4 + $0x8] sm:$0xff] %vm259, %v232
  %262 = vst.msk [vmem:[%s4 + $0x10] sm:$0xff] %vm259, %v237
  %263 = vst.msk [vmem:[%s4 + $0x18] sm:$0xff] %vm259, %v240
  %264 = vst.msk [vmem:[%s4 + $0x20] sm:$0xff] %vm259, %v245
  %265 = vst.msk [vmem:[%s4 + $0x28] sm:$0xff] %vm259, %v248
  %266 = vst.msk [vmem:[%s4 + $0x30] sm:$0xff] %vm259, %v253
  %267 = vst.msk [vmem:[%s4 + $0x38] sm:$0xff] %vm259, %v256
  // Predicated region
  $region18: #{rwkv_forward.11} parent=0 // pred_check
    _
  $region19: #{rwkv_forward.11} parent=0 // pred_check_branch
    %269 = sbr.rel (0) target = $region21
  $region20: #{rwkv_forward.11} parent=0 // pred_region
    _
  $region21: #{rwkv_forward.11} parent=0 // pred_fallthru
    _
  // Predicated region
  $region22: #{rwkv_forward.11} parent=0 // pred_check
    _
  $region23: #{rwkv_forward.11} parent=0 // pred_check_branch
    %271 = sbr.rel (0) target = $region25
  $region24: #{rwkv_forward.11} parent=0 // pred_region
    _
  $region25: #{rwkv_forward.11} parent=0 // pred_fallthru
    _

// kernel: rwkv_forward.7
$region0: #{rwkv_forward.7}
  #allocation0 [shape = 'u32[]', space=smem, size = 0x4, offset = 0x4, fixed_abs, tag = 'smem constant byte address 0x4 - core index']
  #allocation1 [shape = 'u32[144,128]{1,0:T(1,128)}', space=vmem, size = 0x12000, scoped, tag = 'internal scratch']
  #allocation2 [shape = 'f32[64,32]{1,0:T(8,128)}', space=vmem, size = 0x8000, scoped, tag = 'scratch operand']
  #allocation3 [shape = 'f32[64,32]{1,0:T(8,128)}', space=vmem, size = 0x8000, scoped, tag = 'scratch operand']
  #allocation4 [shape = 'f32[64,32]{1,0:T(8,128)}', space=vmem, size = 0x8000, scoped, tag = 'scratch operand']
  %s0 = inlined_call_operand.vmem [shape: f32[1,64,32], index: 0, kind: input, shape index: {}, may-alias: {0,12}]
  %s1 = inlined_call_operand.vmem [shape: f32[1,32], index: 1, kind: input, shape index: {}]
  %s2 = inlined_call_operand.vmem [shape: f32[1,32], index: 2, kind: input, shape index: {}]
  %s3 = inlined_call_operand.vmem [shape: f32[1,32], index: 3, kind: input, shape index: {}]
  %s4 = inlined_call_operand.vmem [shape: f32[1,32], index: 4, kind: input, shape index: {}]
  %s5 = inlined_call_operand.vmem [shape: f32[1,32], index: 5, kind: input, shape index: {}]
  %s6 = inlined_call_operand.vmem [shape: bf16[32,32], index: 6, kind: input, shape index: {}]
  %s7 = inlined_call_operand.vmem [shape: bf16[32,32], index: 7, kind: input, shape index: {}]
  %s8 = inlined_call_operand.vmem [shape: bf16[32,32], index: 8, kind: input, shape index: {}]
  %s9 = inlined_call_operand.vmem [shape: bf16[32,32], index: 9, kind: input, shape index: {}]
  %s10 = inlined_call_operand.vmem [shape: f32[1,32], index: 10, kind: input, shape index: {}]
  %s11 = inlined_call_operand.vmem [shape: f32[1,32], index: 11, kind: input, shape index: {}]
  %s12 = inlined_call_operand.vmem [shape: f32[1,64,32], index: 12, kind: output, shape index: {0}, may-alias: {0,12}]
  %s13 = inlined_call_operand.vmem [shape: f32[1,8,32], index: 13, kind: output, shape index: {1}]
  %s14 = inlined_call_operand.vmem [shape: f32[1,3,8,32], index: 14, kind: output, shape index: {2}]
  %15 = xla_tuple %s12, %s13, %s14
  %s16 = sld [smem:[#allocation0]]
  $region78: #{rwkv_forward.7} parent=0
    _
  %s18 = ssub.s32 1, %s16
  %s19 = scalar_select 0, %s18, %s16
  // Predicated region
  $region2: #{rwkv_forward.7} parent=0 // pred_check
    _
  $region3: #{rwkv_forward.7} parent=0 // pred_check_branch
    %21 = sbr.rel (0) target = $region5
  $region4: #{rwkv_forward.7} parent=0 // pred_region
    _
  $region5: #{rwkv_forward.7} parent=0 // pred_fallthru
    _
  // Predicated region
  $region6: #{rwkv_forward.7} parent=0 // pred_check
    _
  $region7: #{rwkv_forward.7} parent=0 // pred_check_branch
    %23 = sbr.rel (0) target = $region9
  $region8: #{rwkv_forward.7} parent=0 // pred_region
    _
  $region9: #{rwkv_forward.7} parent=0 // pred_fallthru
    _
  // Predicated region
  $region10: #{rwkv_forward.7} parent=0 // pred_check
    _
  $region11: #{rwkv_forward.7} parent=0 // pred_check_branch
    %25 = sbr.rel (0) target = $region13
  $region12: #{rwkv_forward.7} parent=0 // pred_region
    _
  $region13: #{rwkv_forward.7} parent=0 // pred_fallthru
    _
  // Predicated region
  $region14: #{rwkv_forward.7} parent=0 // pred_check
    _
  $region15: #{rwkv_forward.7} parent=0 // pred_check_branch
    %27 = sbr.rel (0) target = $region17
  $region16: #{rwkv_forward.7} parent=0 // pred_region
    _
  $region17: #{rwkv_forward.7} parent=0 // pred_fallthru
    _
  // Predicated region
  $region18: #{rwkv_forward.7} parent=0 // pred_check
    _
  $region19: #{rwkv_forward.7} parent=0 // pred_check_branch
    %29 = sbr.rel (0) target = $region21
  $region20: #{rwkv_forward.7} parent=0 // pred_region
    _
  $region21: #{rwkv_forward.7} parent=0 // pred_fallthru
    _
  // Predicated region
  $region22: #{rwkv_forward.7} parent=0 // pred_check
    _
  $region23: #{rwkv_forward.7} parent=0 // pred_check_branch
    %31 = sbr.rel (0) target = $region25
  $region24: #{rwkv_forward.7} parent=0 // pred_region
    _
  $region25: #{rwkv_forward.7} parent=0 // pred_fallthru
    _
  // Predicated region
  $region26: #{rwkv_forward.7} parent=0 // pred_check
    _
  $region27: #{rwkv_forward.7} parent=0 // pred_check_branch
    %33 = sbr.rel (0) target = $region29
  $region28: #{rwkv_forward.7} parent=0 // pred_region
    _
  $region29: #{rwkv_forward.7} parent=0 // pred_fallthru
    _
  // Predicated region
  $region30: #{rwkv_forward.7} parent=0 // pred_check
    _
  $region31: #{rwkv_forward.7} parent=0 // pred_check_branch
    %35 = sbr.rel (0) target = $region33
  $region32: #{rwkv_forward.7} parent=0 // pred_region
    _
  $region33: #{rwkv_forward.7} parent=0 // pred_fallthru
    _
  // Predicated region
  $region34: #{rwkv_forward.7} parent=0 // pred_check
    _
  $region35: #{rwkv_forward.7} parent=0 // pred_check_branch
    %37 = sbr.rel (0) target = $region37
  $region36: #{rwkv_forward.7} parent=0 // pred_region
    _
  $region37: #{rwkv_forward.7} parent=0 // pred_fallthru
    _
  // Predicated region
  $region38: #{rwkv_forward.7} parent=0 // pred_check
    _
  $region39: #{rwkv_forward.7} parent=0 // pred_check_branch
    %39 = sbr.rel (0) target = $region41
  $region40: #{rwkv_forward.7} parent=0 // pred_region
    _
  $region41: #{rwkv_forward.7} parent=0 // pred_fallthru
    _
  // Predicated region
  $region42: #{rwkv_forward.7} parent=0 // pred_check
    _
  $region43: #{rwkv_forward.7} parent=0 // pred_check_branch
    %41 = sbr.rel (0) target = $region45
  $region44: #{rwkv_forward.7} parent=0 // pred_region
    _
  $region45: #{rwkv_forward.7} parent=0 // pred_fallthru
    _
  // Predicated region
  $region46: #{rwkv_forward.7} parent=0 // pred_check
    _
  $region47: #{rwkv_forward.7} parent=0 // pred_check_branch
    %43 = sbr.rel (0) target = $region49
  $region48: #{rwkv_forward.7} parent=0 // pred_region
    _
  $region49: #{rwkv_forward.7} parent=0 // pred_fallthru
    _
  %p45 = scmp.eq.s32.totalorder 0, 0
  // Predicated region
  $region50: #{rwkv_forward.7} parent=0 // pred_check
    %p46 = pneg %p45
  $region51: #{rwkv_forward.7} parent=0 // pred_check_branch
    %48 = sbr.rel (%p46) target = $region53
  $region52: #{rwkv_forward.7} parent=0 // pred_region
    %vm49 = vcmask 261120
    %50 = vst.msk [vmem:[%s13] sm:$0xff] %vm49, 0.0
    %51 = vst.msk [vmem:[%s14] sm:$0xff] %vm49, 0.0
    %52 = vst.msk [vmem:[%s14 + $0x8] sm:$0xff] %vm49, 0.0
    %53 = vst.msk [vmem:[%s14 + $0x10] sm:$0xff] %vm49, 0.0
  $region53: #{rwkv_forward.7} parent=0 // pred_fallthru
    _
  %v54 = vld [vmem:[%s0] sm:$0xff]
  %v55 = vld [vmem:[%s0 + $0x8] sm:$0xff]
  %v56 = vld [vmem:[%s0 + $0x10] sm:$0xff]
  %v57 = vld [vmem:[%s0 + $0x18] sm:$0xff]
  %v58 = vld [vmem:[%s0 + $0x20] sm:$0xff]
  %v59 = vld [vmem:[%s0 + $0x28] sm:$0xff]
  %v60 = vld [vmem:[%s0 + $0x30] sm:$0xff]
  %v61 = vld [vmem:[%s0 + $0x38] sm:$0xff]
  %v62 = vld [vmem:[%s1] sm:$0x1]
  %v63 = vld [vmem:[%s2] sm:$0x1]
  %vm64 = vcmask 261120
  %v65 = vsel %vm64, %v54, 0.0
  %66 = vadd.xlane.f32.xlu0 %v65
  %v67 = vpop.xlane.xlu0 %66
  %v68 = vsel %vm64, %v55, 0.0
  %69 = vadd.xlane.f32.xlu0 %v68
  %v70 = vpop.xlane.xlu0 %69
  %v71 = vsel %vm64, %v56, 0.0
  %72 = vadd.xlane.f32.xlu0 %v71
  %v73 = vpop.xlane.xlu0 %72
  %v74 = vsel %vm64, %v57, 0.0
  %75 = vadd.xlane.f32.xlu0 %v74
  %v76 = vpop.xlane.xlu0 %75
  %v77 = vsel %vm64, %v58, 0.0
  %78 = vadd.xlane.f32.xlu0 %v77
  %v79 = vpop.xlane.xlu0 %78
  %v80 = vsel %vm64, %v59, 0.0
  %81 = vadd.xlane.f32.xlu0 %v80
  %v82 = vpop.xlane.xlu0 %81
  %v83 = vsel %vm64, %v60, 0.0
  %84 = vadd.xlane.f32.xlu0 %v83
  %v85 = vpop.xlane.xlu0 %84
  %v86 = vsel %vm64, %v61, 0.0
  %87 = vadd.xlane.f32.xlu0 %v86
  %v88 = vpop.xlane.xlu0 %87
  %v89 = vrcp.pop 32.0
  %v90 = vmul.f32 %v67, %v89
  %v91 = vmul.f32 %v70, %v89
  %v92 = vmul.f32 %v73, %v89
  %v93 = vmul.f32 %v76, %v89
  %v94 = vmul.f32 %v79, %v89
  %v95 = vmul.f32 %v82, %v89
  %v96 = vmul.f32 %v85, %v89
  %v97 = vmul.f32 %v88, %v89
  %v98 = vsub.f32 %v54, %v90
  %v99 = vsub.f32 %v55, %v91
  %v100 = vsub.f32 %v56, %v92
  %v101 = vsub.f32 %v57, %v93
  %v102 = vsub.f32 %v58, %v94
  %v103 = vsub.f32 %v59, %v95
  %v104 = vsub.f32 %v60, %v96
  %v105 = vsub.f32 %v61, %v97
  %v106 = vmul.f32 %v98, %v98
  %v107 = vmul.f32 %v99, %v99
  %v108 = vmul.f32 %v100, %v100
  %v109 = vmul.f32 %v101, %v101
  %v110 = vmul.f32 %v102, %v102
  %v111 = vmul.f32 %v103, %v103
  %v112 = vmul.f32 %v104, %v104
  %v113 = vmul.f32 %v105, %v105
  %v114 = vsel %vm64, %v106, 0.0
  %115 = vadd.xlane.f32.xlu0 %v114
  %v116 = vpop.xlane.xlu0 %115
  %v117 = vsel %vm64, %v107, 0.0
  %118 = vadd.xlane.f32.xlu0 %v117
  %v119 = vpop.xlane.xlu0 %118
  %v120 = vsel %vm64, %v108, 0.0
  %121 = vadd.xlane.f32.xlu0 %v120
  %v122 = vpop.xlane.xlu0 %121
  %v123 = vsel %vm64, %v109, 0.0
  %124 = vadd.xlane.f32.xlu0 %v123
  %v125 = vpop.xlane.xlu0 %124
  %v126 = vsel %vm64, %v110, 0.0
  %127 = vadd.xlane.f32.xlu0 %v126
  %v128 = vpop.xlane.xlu0 %127
  %v129 = vsel %vm64, %v111, 0.0
  %130 = vadd.xlane.f32.xlu0 %v129
  %v131 = vpop.xlane.xlu0 %130
  %v132 = vsel %vm64, %v112, 0.0
  %133 = vadd.xlane.f32.xlu0 %v132
  %v134 = vpop.xlane.xlu0 %133
  %v135 = vsel %vm64, %v113, 0.0
  %136 = vadd.xlane.f32.xlu0 %v135
  %v137 = vpop.xlane.xlu0 %136
  %v138 = vmul.f32 %v116, %v89
  %v139 = vmul.f32 %v119, %v89
  %v140 = vmul.f32 %v122, %v89
  %v141 = vmul.f32 %v125, %v89
  %v142 = vmul.f32 %v128, %v89
  %v143 = vmul.f32 %v131, %v89
  %v144 = vmul.f32 %v134, %v89
  %v145 = vmul.f32 %v137, %v89
  %v146 = vadd.f32 %v138, 1e-05
  %v147 = vadd.f32 %v139, 1e-05
  %v148 = vadd.f32 %v140, 1e-05
  %v149 = vadd.f32 %v141, 1e-05
  %v150 = vadd.f32 %v142, 1e-05
  %v151 = vadd.f32 %v143, 1e-05
  %v152 = vadd.f32 %v144, 1e-05
  %v153 = vadd.f32 %v145, 1e-05
  %v154 = vrsqrt.pop %v146
  %v155 = vrsqrt.pop %v147
  %v156 = vrsqrt.pop %v148
  %v157 = vrsqrt.pop %v149
  %v158 = vrsqrt.pop %v150
  %v159 = vrsqrt.pop %v151
  %v160 = vrsqrt.pop %v152
  %v161 = vrsqrt.pop %v153
  %v162 = vmul.f32 %v98, %v154
  %v163 = vmul.f32 %v99, %v155
  %v164 = vmul.f32 %v100, %v156
  %v165 = vmul.f32 %v101, %v157
  %v166 = vmul.f32 %v102, %v158
  %v167 = vmul.f32 %v103, %v159
  %v168 = vmul.f32 %v104, %v160
  %v169 = vmul.f32 %v105, %v161
  %v171 = vlaneseq
  %v172 = vshrl.u32 %v171, 7
  %v173 = vsub.s32 0, %v172
  %v174 = vrot.slane %v62, %v173
  %v176 = vmul.f32 %v162, %v174
  %v177 = vmul.f32 %v163, %v174
  %v178 = vmul.f32 %v164, %v174
  %v179 = vmul.f32 %v165, %v174
  %v180 = vmul.f32 %v166, %v174
  %v181 = vmul.f32 %v167, %v174
  %v182 = vmul.f32 %v168, %v174
  %v183 = vmul.f32 %v169, %v174
  %v185 = vlaneseq
  %v186 = vshrl.u32 %v185, 7
  %v187 = vsub.s32 0, %v186
  %v188 = vrot.slane %v63, %v187
  %v190 = vadd.f32 %v176, %v188
  %v191 = vadd.f32 %v177, %v188
  %v192 = vadd.f32 %v178, %v188
  %v193 = vadd.f32 %v179, %v188
  %v194 = vadd.f32 %v180, %v188
  %v195 = vadd.f32 %v181, %v188
  %v196 = vadd.f32 %v182, %v188
  %v197 = vadd.f32 %v183, %v188
  %v198 = vld [vmem:[%s13] sm:$0xff]
  %199 = vst.msk [vmem:[%s13] sm:$0xff] %vm64, %v197
  %v200 = vsub.f32 %v190, %v198
  %v201 = vsub.f32 %v191, %v190
  %v202 = vsub.f32 %v192, %v191
  %v203 = vsub.f32 %v193, %v192
  %v204 = vsub.f32 %v194, %v193
  %v205 = vsub.f32 %v195, %v194
  %v206 = vsub.f32 %v196, %v195
  %v207 = vsub.f32 %v197, %v196
  %v208 = vld [vmem:[%s3] sm:$0x1]
  %v210 = vlaneseq
  %v211 = vshrl.u32 %v210, 7
  %v212 = vsub.s32 0, %v211
  %v213 = vrot.slane %v208, %v212
  %v215 = vmul.f32 %v213, %v200
  %v216 = vmul.f32 %v213, %v201
  %v217 = vmul.f32 %v213, %v202
  %v218 = vmul.f32 %v213, %v203
  %v219 = vmul.f32 %v213, %v204
  %v220 = vmul.f32 %v213, %v205
  %v221 = vmul.f32 %v213, %v206
  %v222 = vmul.f32 %v213, %v207
  %v223 = vadd.f32 %v198, %v215
  %v224 = vadd.f32 %v190, %v216
  %v225 = vadd.f32 %v191, %v217
  %v226 = vadd.f32 %v192, %v218
  %v227 = vadd.f32 %v193, %v219
  %v228 = vadd.f32 %v194, %v220
  %v229 = vadd.f32 %v195, %v221
  %v230 = vadd.f32 %v196, %v222
  %v231 = vpack.c.bf16 %v224, %v223
  %v232 = vpack.c.bf16 %v226, %v225
  %v233 = vpack.c.bf16 %v228, %v227
  %v234 = vpack.c.bf16 %v230, %v229
  %v235 = vld [vmem:[%s4] sm:$0x1]
  %v237 = vlaneseq
  %v238 = vshrl.u32 %v237, 7
  %v239 = vsub.s32 0, %v238
  %v240 = vrot.slane %v235, %v239
  %v242 = vmul.f32 %v240, %v200
  %v243 = vmul.f32 %v240, %v201
  %v244 = vmul.f32 %v240, %v202
  %v245 = vmul.f32 %v240, %v203
  %v246 = vmul.f32 %v240, %v204
  %v247 = vmul.f32 %v240, %v205
  %v248 = vmul.f32 %v240, %v206
  %v249 = vmul.f32 %v240, %v207
  %v250 = vadd.f32 %v198, %v242
  %v251 = vadd.f32 %v190, %v243
  %v252 = vadd.f32 %v191, %v244
  %v253 = vadd.f32 %v192, %v245
  %v254 = vadd.f32 %v193, %v246
  %v255 = vadd.f32 %v194, %v247
  %v256 = vadd.f32 %v195, %v248
  %v257 = vadd.f32 %v196, %v249
  %v258 = vpack.c.bf16 %v251, %v250
  %v259 = vpack.c.bf16 %v253, %v252
  %v260 = vpack.c.bf16 %v255, %v254
  %v261 = vpack.c.bf16 %v257, %v256
  %v262 = vld [vmem:[%s5] sm:$0x1]
  %v264 = vlaneseq
  %v265 = vshrl.u32 %v264, 7
  %v266 = vsub.s32 0, %v265
  %v267 = vrot.slane %v262, %v266
  %v269 = vmul.f32 %v267, %v200
  %v270 = vmul.f32 %v267, %v201
  %v271 = vmul.f32 %v267, %v202
  %v272 = vmul.f32 %v267, %v203
  %v273 = vmul.f32 %v267, %v204
  %v274 = vmul.f32 %v267, %v205
  %v275 = vmul.f32 %v267, %v206
  %v276 = vmul.f32 %v267, %v207
  %v277 = vadd.f32 %v198, %v269
  %v278 = vadd.f32 %v190, %v270
  %v279 = vadd.f32 %v191, %v271
  %v280 = vadd.f32 %v192, %v272
  %v281 = vadd.f32 %v193, %v273
  %v282 = vadd.f32 %v194, %v274
  %v283 = vadd.f32 %v195, %v275
  %v284 = vadd.f32 %v196, %v276
  %v285 = vpack.c.bf16 %v278, %v277
  %v286 = vpack.c.bf16 %v280, %v279
  %v287 = vpack.c.bf16 %v282, %v281
  %v288 = vpack.c.bf16 %v284, %v283
  %v289 = vld [vmem:[%s6] sm:$0xf]
  %v290 = vld [vmem:[%s6 + $0x4] sm:$0xf]
  %v291 = vld [vmem:[%s6 + $0x8] sm:$0xf]
  %v292 = vld [vmem:[%s6 + $0xc] sm:$0xf]
  %v297 = vunpack.c.l.b16 %v289
  %v298 = vunpack.c.l.b16 %v290
  %v299 = vunpack.c.l.b16 %v291
  %v300 = vunpack.c.l.b16 %v292
  %v301 = vpack.c.b16 %v298, %v297
  %v302 = vpack.c.b16 %v300, %v299
  %v306 = vsel %vm64, %v231, 0
  %v309 = vsel %vm64, %v232, 0
  %v312 = vsel %vm64, %v233, 0
  %v315 = vsel %vm64, %v234, 0
  %317 = vmatprep.subr.bf16.mxu0 0
  %318 = vmatpush1.bf16.msra.mxu0 %v301
  %319 = vmatprep.subr.bf16.mxu0 0
  %320 = vmatpush1.bf16.msra.mxu0 %v302
  %321 = vmatprep.subr.bf16.mxu0 0
  %322 = vmatpush1.bf16.msra.mxu0 0
  %323 = vmatprep.subr.bf16.mxu0 0
  %324 = vmatpush1.bf16.msra.mxu0 0
  %325 = vmatprep.subr.bf16.mxu0 0
  %326 = vmatpush1.bf16.msra.mxu0 0
  %327 = vmatprep.subr.bf16.mxu0 0
  %328 = vmatpush1.bf16.msra.mxu0 0
  %329 = vmatprep.subr.bf16.mxu0 0
  %330 = vmatpush1.bf16.msra.mxu0 0
  %331 = vmatprep.subr.bf16.mxu0 0
  %332 = vmatpush1.bf16.msra.mxu0 0
  %333 = vmatprep.subr.bf16.mxu0 0
  %334 = vmatpush1.bf16.msra.mxu0 0
  %335 = vmatprep.subr.bf16.mxu0 0
  %336 = vmatpush1.bf16.msra.mxu0 0
  %337 = vmatprep.subr.bf16.mxu0 0
  %338 = vmatpush1.bf16.msra.mxu0 0
  %339 = vmatprep.subr.bf16.mxu0 0
  %340 = vmatpush1.bf16.msra.mxu0 0
  %341 = vmatprep.subr.bf16.mxu0 0
  %342 = vmatpush1.bf16.msra.mxu0 0
  %343 = vmatprep.subr.bf16.mxu0 0
  %344 = vmatpush1.bf16.msra.mxu0 0
  %345 = vmatprep.subr.bf16.mxu0 0
  %346 = vmatpush1.bf16.msra.mxu0 0
  %347 = vmatprep.subr.bf16.mxu0 0
  %348 = vmatpush1.bf16.msra.mxu0 0
  %349 = vmatprep.mubr.bf16.mxu0 0
  %350 = vmatmul.mubr.bf16.gmra.mrb[0].mxu0 %v306
  %v351 = vpop.f32.mrb[0].mxu0
  %v352 = vadd.f32 0.0, %v351
  %v353 = vpop.f32.mrb[0].mxu0
  %v354 = vpop.f32.mrb[0].mxu0
  %v355 = vadd.f32 0.0, %v354
  %v356 = vpop.f32.mrb[0].mxu0
  %357 = vmatprep.mubr.bf16.mxu0 0
  %358 = vmatmul.mubr.bf16.gmra.mrb[0].mxu0 %v309
  %v359 = vpop.f32.mrb[0].mxu0
  %v360 = vadd.f32 0.0, %v359
  %v361 = vpop.f32.mrb[0].mxu0
  %v362 = vpop.f32.mrb[0].mxu0
  %v363 = vadd.f32 0.0, %v362
  %v364 = vpop.f32.mrb[0].mxu0
  %365 = vmatprep.mubr.bf16.mxu0 0
  %366 = vmatmul.mubr.bf16.gmra.mrb[0].mxu0 %v312
  %v367 = vpop.f32.mrb[0].mxu0
  %v368 = vadd.f32 0.0, %v367
  %v369 = vpop.f32.mrb[0].mxu0
  %v370 = vpop.f32.mrb[0].mxu0
  %v371 = vadd.f32 0.0, %v370
  %v372 = vpop.f32.mrb[0].mxu0
  %373 = vmatprep.mubr.bf16.mxu0 0
  %374 = vmatmul.mubr.bf16.gmra.mrb[0].mxu0 %v315
  %v375 = vpop.f32.mrb[0].mxu0
  %v376 = vadd.f32 0.0, %v375
  %v377 = vpop.f32.mrb[0].mxu0
  %v378 = vpop.f32.mrb[0].mxu0
  %v379 = vadd.f32 0.0, %v378
  %v380 = vpop.f32.mrb[0].mxu0
  %381 = vdwg.mxu0
  %382 = vst.msk [vmem:[#allocation2] sm:$0xff] %vm64, %v352
  %383 = vst.msk [vmem:[#allocation2 + $0x8] sm:$0xff] %vm64, %v355
  %384 = vst.msk [vmem:[#allocation2 + $0x10] sm:$0xff] %vm64, %v360
  %385 = vst.msk [vmem:[#allocation2 + $0x18] sm:$0xff] %vm64, %v363
  %386 = vst.msk [vmem:[#allocation2 + $0x20] sm:$0xff] %vm64, %v368
  %387 = vst.msk [vmem:[#allocation2 + $0x28] sm:$0xff] %vm64, %v371
  %388 = vst.msk [vmem:[#allocation2 + $0x30] sm:$0xff] %vm64, %v376
  %389 = vst.msk [vmem:[#allocation2 + $0x38] sm:$0xff] %vm64, %v379
  %v390 = vld [vmem:[%s7] sm:$0xf]
  %v391 = vld [vmem:[%s7 + $0x4] sm:$0xf]
  %v392 = vld [vmem:[%s7 + $0x8] sm:$0xf]
  %v393 = vld [vmem:[%s7 + $0xc] sm:$0xf]
  %v398 = vunpack.c.l.b16 %v390
  %v399 = vunpack.c.l.b16 %v391
  %v400 = vunpack.c.l.b16 %v392
  %v401 = vunpack.c.l.b16 %v393
  %v402 = vpack.c.b16 %v399, %v398
  %v403 = vpack.c.b16 %v401, %v400
  %v407 = vsel %vm64, %v258, 0
  %v410 = vsel %vm64, %v259, 0
  %v413 = vsel %vm64, %v260, 0
  %v416 = vsel %vm64, %v261, 0
  %418 = vmatprep.subr.bf16.mxu0 0
  %419 = vmatpush1.bf16.msra.mxu0 %v402
  %420 = vmatprep.subr.bf16.mxu0 0
  %421 = vmatpush1.bf16.msra.mxu0 %v403
  %422 = vmatprep.subr.bf16.mxu0 0
  %423 = vmatpush1.bf16.msra.mxu0 0
  %424 = vmatprep.subr.bf16.mxu0 0
  %425 = vmatpush1.bf16.msra.mxu0 0
  %426 = vmatprep.subr.bf16.mxu0 0
  %427 = vmatpush1.bf16.msra.mxu0 0
  %428 = vmatprep.subr.bf16.mxu0 0
  %429 = vmatpush1.bf16.msra.mxu0 0
  %430 = vmatprep.subr.bf16.mxu0 0
  %431 = vmatpush1.bf16.msra.mxu0 0
  %432 = vmatprep.subr.bf16.mxu0 0
  %433 = vmatpush1.bf16.msra.mxu0 0
  %434 = vmatprep.subr.bf16.mxu0 0
  %435 = vmatpush1.bf16.msra.mxu0 0
  %436 = vmatprep.subr.bf16.mxu0 0
  %437 = vmatpush1.bf16.msra.mxu0 0
  %438 = vmatprep.subr.bf16.mxu0 0
  %439 = vmatpush1.bf16.msra.mxu0 0
  %440 = vmatprep.subr.bf16.mxu0 0
  %441 = vmatpush1.bf16.msra.mxu0 0
  %442 = vmatprep.subr.bf16.mxu0 0
  %443 = vmatpush1.bf16.msra.mxu0 0
  %444 = vmatprep.subr.bf16.mxu0 0
  %445 = vmatpush1.bf16.msra.mxu0 0
  %446 = vmatprep.subr.bf16.mxu0 0
  %447 = vmatpush1.bf16.msra.mxu0 0
  %448 = vmatprep.subr.bf16.mxu0 0
  %449 = vmatpush1.bf16.msra.mxu0 0
  %450 = vmatprep.mubr.bf16.mxu0 0
  %451 = vmatmul.mubr.bf16.gmra.mrb[0].mxu0 %v407
  %v452 = vpop.f32.mrb[0].mxu0
  %v453 = vadd.f32 0.0, %v452
  %v454 = vpop.f32.mrb[0].mxu0
  %v455 = vpop.f32.mrb[0].mxu0
  %v456 = vadd.f32 0.0, %v455
  %v457 = vpop.f32.mrb[0].mxu0
  %458 = vmatprep.mubr.bf16.mxu0 0
  %459 = vmatmul.mubr.bf16.gmra.mrb[0].mxu0 %v410
  %v460 = vpop.f32.mrb[0].mxu0
  %v461 = vadd.f32 0.0, %v460
  %v462 = vpop.f32.mrb[0].mxu0
  %v463 = vpop.f32.mrb[0].mxu0
  %v464 = vadd.f32 0.0, %v463
  %v465 = vpop.f32.mrb[0].mxu0
  %466 = vmatprep.mubr.bf16.mxu0 0
  %467 = vmatmul.mubr.bf16.gmra.mrb[0].mxu0 %v413
  %v468 = vpop.f32.mrb[0].mxu0
  %v469 = vadd.f32 0.0, %v468
  %v470 = vpop.f32.mrb[0].mxu0
  %v471 = vpop.f32.mrb[0].mxu0
  %v472 = vadd.f32 0.0, %v471
  %v473 = vpop.f32.mrb[0].mxu0
  %474 = vmatprep.mubr.bf16.mxu0 0
  %475 = vmatmul.mubr.bf16.gmra.mrb[0].mxu0 %v416
  %v476 = vpop.f32.mrb[0].mxu0
  %v477 = vadd.f32 0.0, %v476
  %v478 = vpop.f32.mrb[0].mxu0
  %v479 = vpop.f32.mrb[0].mxu0
  %v480 = vadd.f32 0.0, %v479
  %v481 = vpop.f32.mrb[0].mxu0
  %482 = vdwg.mxu0
  %483 = vst.msk [vmem:[#allocation3] sm:$0xff] %vm64, %v453
  %484 = vst.msk [vmem:[#allocation3 + $0x8] sm:$0xff] %vm64, %v456
  %485 = vst.msk [vmem:[#allocation3 + $0x10] sm:$0xff] %vm64, %v461
  %486 = vst.msk [vmem:[#allocation3 + $0x18] sm:$0xff] %vm64, %v464
  %487 = vst.msk [vmem:[#allocation3 + $0x20] sm:$0xff] %vm64, %v469
  %488 = vst.msk [vmem:[#allocation3 + $0x28] sm:$0xff] %vm64, %v472
  %489 = vst.msk [vmem:[#allocation3 + $0x30] sm:$0xff] %vm64, %v477
  %490 = vst.msk [vmem:[#allocation3 + $0x38] sm:$0xff] %vm64, %v480
  %v491 = vld [vmem:[%s8] sm:$0xf]
  %v492 = vld [vmem:[%s8 + $0x4] sm:$0xf]
  %v493 = vld [vmem:[%s8 + $0x8] sm:$0xf]
  %v494 = vld [vmem:[%s8 + $0xc] sm:$0xf]
  %v499 = vunpack.c.l.b16 %v491
  %v500 = vunpack.c.l.b16 %v492
  %v501 = vunpack.c.l.b16 %v493
  %v502 = vunpack.c.l.b16 %v494
  %v503 = vpack.c.b16 %v500, %v499
  %v504 = vpack.c.b16 %v502, %v501
  %v508 = vsel %vm64, %v285, 0
  %v511 = vsel %vm64, %v286, 0
  %v514 = vsel %vm64, %v287, 0
  %v517 = vsel %vm64, %v288, 0
  %519 = vmatprep.subr.bf16.mxu0 0
  %520 = vmatpush1.bf16.msra.mxu0 %v503
  %521 = vmatprep.subr.bf16.mxu0 0
  %522 = vmatpush1.bf16.msra.mxu0 %v504
  %523 = vmatprep.subr.bf16.mxu0 0
  %524 = vmatpush1.bf16.msra.mxu0 0
  %525 = vmatprep.subr.bf16.mxu0 0
  %526 = vmatpush1.bf16.msra.mxu0 0
  %527 = vmatprep.subr.bf16.mxu0 0
  %528 = vmatpush1.bf16.msra.mxu0 0
  %529 = vmatprep.subr.bf16.mxu0 0
  %530 = vmatpush1.bf16.msra.mxu0 0
  %531 = vmatprep.subr.bf16.mxu0 0
  %532 = vmatpush1.bf16.msra.mxu0 0
  %533 = vmatprep.subr.bf16.mxu0 0
  %534 = vmatpush1.bf16.msra.mxu0 0
  %535 = vmatprep.subr.bf16.mxu0 0
  %536 = vmatpush1.bf16.msra.mxu0 0
  %537 = vmatprep.subr.bf16.mxu0 0
  %538 = vmatpush1.bf16.msra.mxu0 0
  %539 = vmatprep.subr.bf16.mxu0 0
  %540 = vmatpush1.bf16.msra.mxu0 0
  %541 = vmatprep.subr.bf16.mxu0 0
  %542 = vmatpush1.bf16.msra.mxu0 0
  %543 = vmatprep.subr.bf16.mxu0 0
  %544 = vmatpush1.bf16.msra.mxu0 0
  %545 = vmatprep.subr.bf16.mxu0 0
  %546 = vmatpush1.bf16.msra.mxu0 0
  %547 = vmatprep.subr.bf16.mxu0 0
  %548 = vmatpush1.bf16.msra.mxu0 0
  %549 = vmatprep.subr.bf16.mxu0 0
  %550 = vmatpush1.bf16.msra.mxu0 0
  %551 = vmatprep.mubr.bf16.mxu0 0
  %552 = vmatmul.mubr.bf16.gmra.mrb[0].mxu0 %v508
  %v553 = vpop.f32.mrb[0].mxu0
  %v554 = vadd.f32 0.0, %v553
  %v555 = vpop.f32.mrb[0].mxu0
  %v556 = vpop.f32.mrb[0].mxu0
  %v557 = vadd.f32 0.0, %v556
  %v558 = vpop.f32.mrb[0].mxu0
  %559 = vmatprep.mubr.bf16.mxu0 0
  %560 = vmatmul.mubr.bf16.gmra.mrb[0].mxu0 %v511
  %v561 = vpop.f32.mrb[0].mxu0
  %v562 = vadd.f32 0.0, %v561
  %v563 = vpop.f32.mrb[0].mxu0
  %v564 = vpop.f32.mrb[0].mxu0
  %v565 = vadd.f32 0.0, %v564
  %v566 = vpop.f32.mrb[0].mxu0
  %567 = vmatprep.mubr.bf16.mxu0 0
  %568 = vmatmul.mubr.bf16.gmra.mrb[0].mxu0 %v514
  %v569 = vpop.f32.mrb[0].mxu0
  %v570 = vadd.f32 0.0, %v569
  %v571 = vpop.f32.mrb[0].mxu0
  %v572 = vpop.f32.mrb[0].mxu0
  %v573 = vadd.f32 0.0, %v572
  %v574 = vpop.f32.mrb[0].mxu0
  %575 = vmatprep.mubr.bf16.mxu0 0
  %576 = vmatmul.mubr.bf16.gmra.mrb[0].mxu0 %v517
  %v577 = vpop.f32.mrb[0].mxu0
  %v578 = vadd.f32 0.0, %v577
  %v579 = vpop.f32.mrb[0].mxu0
  %v580 = vpop.f32.mrb[0].mxu0
  %v581 = vadd.f32 0.0, %v580
  %v582 = vpop.f32.mrb[0].mxu0
  %583 = vdwg.mxu0
  %v584 = vxor.u32 %v554, 2147483648
  %v585 = vxor.u32 %v557, 2147483648
  %v586 = vxor.u32 %v562, 2147483648
  %v587 = vxor.u32 %v565, 2147483648
  %v588 = vxor.u32 %v570, 2147483648
  %v589 = vxor.u32 %v573, 2147483648
  %v590 = vxor.u32 %v578, 2147483648
  %v591 = vxor.u32 %v581, 2147483648
  %v592 = vmul.f32 %v584, 1.442695
  %v593 = vpow.pop %v592
  %v594 = vmul.f32 %v585, 1.442695
  %v595 = vpow.pop %v594
  %v596 = vmul.f32 %v586, 1.442695
  %v597 = vpow.pop %v596
  %v598 = vmul.f32 %v587, 1.442695
  %v599 = vpow.pop %v598
  %v600 = vmul.f32 %v588, 1.442695
  %v601 = vpow.pop %v600
  %v602 = vmul.f32 %v589, 1.442695
  %v603 = vpow.pop %v602
  %v604 = vmul.f32 %v590, 1.442695
  %v605 = vpow.pop %v604
  %v606 = vmul.f32 %v591, 1.442695
  %v607 = vpow.pop %v606
  %v608 = vadd.f32 %v593, 1.0
  %v609 = vadd.f32 %v595, 1.0
  %v610 = vadd.f32 %v597, 1.0
  %v611 = vadd.f32 %v599, 1.0
  %v612 = vadd.f32 %v601, 1.0
  %v613 = vadd.f32 %v603, 1.0
  %v614 = vadd.f32 %v605, 1.0
  %v615 = vadd.f32 %v607, 1.0
  %v616 = vrcp.pop %v608
  %v617 = vmul.f32 1.0, %v616
  %v618 = vrcp.pop %v609
  %v619 = vmul.f32 1.0, %v618
  %v620 = vrcp.pop %v610
  %v621 = vmul.f32 1.0, %v620
  %v622 = vrcp.pop %v611
  %v623 = vmul.f32 1.0, %v622
  %v624 = vrcp.pop %v612
  %v625 = vmul.f32 1.0, %v624
  %v626 = vrcp.pop %v613
  %v627 = vmul.f32 1.0, %v626
  %v628 = vrcp.pop %v614
  %v629 = vmul.f32 1.0, %v628
  %v630 = vrcp.pop %v615
  %v631 = vmul.f32 1.0, %v630
  %632 = vst.msk [vmem:[#allocation4] sm:$0xff] %vm64, %v617
  %633 = vst.msk [vmem:[#allocation4 + $0x8] sm:$0xff] %vm64, %v619
  %634 = vst.msk [vmem:[#allocation4 + $0x10] sm:$0xff] %vm64, %v621
  %635 = vst.msk [vmem:[#allocation4 + $0x18] sm:$0xff] %vm64, %v623
  %636 = vst.msk [vmem:[#allocation4 + $0x20] sm:$0xff] %vm64, %v625
  %637 = vst.msk [vmem:[#allocation4 + $0x28] sm:$0xff] %vm64, %v627
  %638 = vst.msk [vmem:[#allocation4 + $0x30] sm:$0xff] %vm64, %v629
  %639 = vst.msk [vmem:[#allocation4 + $0x38] sm:$0xff] %vm64, %v631
  %v640 = vld [vmem:[%s10] sm:$0x1]
  %v641 = vld [vmem:[%s11] sm:$0x1]
  %v642 = vld [vmem:[%s14] sm:$0xff]
  %s643 = scalar_lea.vmem %s14, 8
  %v644 = vld [vmem:[%s643] sm:$0xff]
  %s645 = scalar_lea.vmem %s14, 16
  %v646 = vld [vmem:[%s645] sm:$0xff]
  %v647 = vld [vmem:[#allocation2] sm:$0xff]
  %v648 = vld [vmem:[#allocation3] sm:$0xff]
  %v650 = vlaneseq
  %v651 = vshrl.u32 %v650, 7
  %v652 = vsub.s32 0, %v651
  %v653 = vrot.slane %v641, %v652
  %v655 = vadd.f32 %v653, %v647
  %v656 = vmax.f32 %v655, %v646
  %v657 = vsub.f32 %v646, %v656
  %v658 = vmul.f32 %v657, 1.442695
  %v659 = vpow.pop %v658
  %v660 = vsub.f32 %v655, %v656
  %v661 = vmul.f32 %v660, 1.442695
  %v662 = vpow.pop %v661
  %v663 = vmul.f32 %v659, %v642
  %v664 = vmul.f32 %v662, %v648
  %v665 = vadd.f32 %v663, %v664
  %v666 = vmul.f32 %v659, %v644
  %v667 = vadd.f32 %v666, %v662
  %v668 = vrcp.pop %v667
  %v669 = vmul.f32 %v665, %v668
  %v670 = vld [vmem:[#allocation4] sm:$0xff]
  %v671 = vmul.f32 %v670, %v669
  %672 = vst.msk [vmem:[#allocation4] sm:$0xff] %vm64, %v671
  %v674 = vlaneseq
  %v675 = vshrl.u32 %v674, 7
  %v676 = vsub.s32 0, %v675
  %v677 = vrot.slane %v640, %v676
  %v679 = vsub.f32 %v646, %v677
  %v680 = vmax.f32 %v679, %v647
  %v681 = vsub.f32 %v679, %v680
  %v682 = vmul.f32 %v681, 1.442695
  %v683 = vpow.pop %v682
  %v684 = vsub.f32 %v647, %v680
  %v685 = vmul.f32 %v684, 1.442695
  %v686 = vpow.pop %v685
  %v687 = vmul.f32 %v683, %v642
  %v688 = vmul.f32 %v686, %v648
  %v689 = vadd.f32 %v687, %v688
  %v690 = vmul.f32 %v683, %v644
  %v691 = vadd.f32 %v690, %v686
  %s692 = scalar_lea.vmem [#allocation2], 8
  %v693 = vld [vmem:[%s692] sm:$0xff]
  %s694 = scalar_lea.vmem [#allocation3], 8
  %v695 = vld [vmem:[%s694] sm:$0xff]
  %v696 = vadd.f32 %v653, %v693
  %v697 = vmax.f32 %v696, %v680
  %v698 = vsub.f32 %v680, %v697
  %v699 = vmul.f32 %v698, 1.442695
  %v700 = vpow.pop %v699
  %v701 = vsub.f32 %v696, %v697
  %v702 = vmul.f32 %v701, 1.442695
  %v703 = vpow.pop %v702
  %v704 = vmul.f32 %v700, %v689
  %v705 = vmul.f32 %v703, %v695
  %v706 = vadd.f32 %v704, %v705
  %v707 = vmul.f32 %v700, %v691
  %v708 = vadd.f32 %v707, %v703
  %v709 = vrcp.pop %v708
  %v710 = vmul.f32 %v706, %v709
  %s711 = scalar_lea.vmem [#allocation4], 8
  %v712 = vld [vmem:[%s711] sm:$0xff]
  %v713 = vmul.f32 %v712, %v710
  %714 = vst.msk [vmem:[%s711] sm:$0xff] %vm64, %v713
  %v715 = vsub.f32 %v680, %v677
  %v716 = vmax.f32 %v715, %v693
  %v717 = vsub.f32 %v715, %v716
  %v718 = vmul.f32 %v717, 1.442695
  %v719 = vpow.pop %v718
  %v720 = vsub.f32 %v693, %v716
  %v721 = vmul.f32 %v720, 1.442695
  %v722 = vpow.pop %v721
  %v723 = vmul.f32 %v719, %v689
  %v724 = vmul.f32 %v722, %v695
  %v725 = vadd.f32 %v723, %v724
  %v726 = vmul.f32 %v719, %v691
  %v727 = vadd.f32 %v726, %v722
  %s728 = scalar_lea.vmem [#allocation2], 16
  %v729 = vld [vmem:[%s728] sm:$0xff]
  %s730 = scalar_lea.vmem [#allocation3], 16
  %v731 = vld [vmem:[%s730] sm:$0xff]
  %v732 = vadd.f32 %v653, %v729
  %v733 = vmax.f32 %v732, %v716
  %v734 = vsub.f32 %v716, %v733
  %v735 = vmul.f32 %v734, 1.442695
  %v736 = vpow.pop %v735
  %v737 = vsub.f32 %v732, %v733
  %v738 = vmul.f32 %v737, 1.442695
  %v739 = vpow.pop %v738
  %v740 = vmul.f32 %v736, %v725
  %v741 = vmul.f32 %v739, %v731
  %v742 = vadd.f32 %v740, %v741
  %v743 = vmul.f32 %v736, %v727
  %v744 = vadd.f32 %v743, %v739
  %v745 = vrcp.pop %v744
  %v746 = vmul.f32 %v742, %v745
  %s747 = scalar_lea.vmem [#allocation4], 16
  %v748 = vld [vmem:[%s747] sm:$0xff]
  %v749 = vmul.f32 %v748, %v746
  %750 = vst.msk [vmem:[%s747] sm:$0xff] %vm64, %v749
  %v751 = vsub.f32 %v716, %v677
  %v752 = vmax.f32 %v751, %v729
  %v753 = vsub.f32 %v751, %v752
  %v754 = vmul.f32 %v753, 1.442695
  %v755 = vpow.pop %v754
  %v756 = vsub.f32 %v729, %v752
  %v757 = vmul.f32 %v756, 1.442695
  %v758 = vpow.pop %v757
  %v759 = vmul.f32 %v755, %v725
  %v760 = vmul.f32 %v758, %v731
  %v761 = vadd.f32 %v759, %v760
  %v762 = vmul.f32 %v755, %v727
  %v763 = vadd.f32 %v762, %v758
  %s764 = scalar_lea.vmem [#allocation2], 24
  %v765 = vld [vmem:[%s764] sm:$0xff]
  %s766 = scalar_lea.vmem [#allocation3], 24
  %v767 = vld [vmem:[%s766] sm:$0xff]
  %v768 = vadd.f32 %v653, %v765
  %v769 = vmax.f32 %v768, %v752
  %v770 = vsub.f32 %v752, %v769
  %v771 = vmul.f32 %v770, 1.442695
  %v772 = vpow.pop %v771
  %v773 = vsub.f32 %v768, %v769
  %v774 = vmul.f32 %v773, 1.442695
  %v775 = vpow.pop %v774
  %v776 = vmul.f32 %v772, %v761
  %v777 = vmul.f32 %v775, %v767
  %v778 = vadd.f32 %v776, %v777
  %v779 = vmul.f32 %v772, %v763
  %v780 = vadd.f32 %v779, %v775
  %v781 = vrcp.pop %v780
  %v782 = vmul.f32 %v778, %v781
  %s783 = scalar_lea.vmem [#allocation4], 24
  %v784 = vld [vmem:[%s783] sm:$0xff]
  %v785 = vmul.f32 %v784, %v782
  %786 = vst.msk [vmem:[%s783] sm:$0xff] %vm64, %v785
  %v787 = vsub.f32 %v752, %v677
  %v788 = vmax.f32 %v787, %v765
  %v789 = vsub.f32 %v787, %v788
  %v790 = vmul.f32 %v789, 1.442695
  %v791 = vpow.pop %v790
  %v792 = vsub.f32 %v765, %v788
  %v793 = vmul.f32 %v792, 1.442695
  %v794 = vpow.pop %v793
  %v795 = vmul.f32 %v791, %v761
  %v796 = vmul.f32 %v794, %v767
  %v797 = vadd.f32 %v795, %v796
  %v798 = vmul.f32 %v791, %v763
  %v799 = vadd.f32 %v798, %v794
  %s800 = scalar_lea.vmem [#allocation2], 32
  %v801 = vld [vmem:[%s800] sm:$0xff]
  %s802 = scalar_lea.vmem [#allocation3], 32
  %v803 = vld [vmem:[%s802] sm:$0xff]
  %v804 = vadd.f32 %v653, %v801
  %v805 = vmax.f32 %v804, %v788
  %v806 = vsub.f32 %v788, %v805
  %v807 = vmul.f32 %v806, 1.442695
  %v808 = vpow.pop %v807
  %v809 = vsub.f32 %v804, %v805
  %v810 = vmul.f32 %v809, 1.442695
  %v811 = vpow.pop %v810
  %v812 = vmul.f32 %v808, %v797
  %v813 = vmul.f32 %v811, %v803
  %v814 = vadd.f32 %v812, %v813
  %v815 = vmul.f32 %v808, %v799
  %v816 = vadd.f32 %v815, %v811
  %v817 = vrcp.pop %v816
  %v818 = vmul.f32 %v814, %v817
  %s819 = scalar_lea.vmem [#allocation4], 32
  %v820 = vld [vmem:[%s819] sm:$0xff]
  %v821 = vmul.f32 %v820, %v818
  %822 = vst.msk [vmem:[%s819] sm:$0xff] %vm64, %v821
  %v823 = vsub.f32 %v788, %v677
  %v824 = vmax.f32 %v823, %v801
  %v825 = vsub.f32 %v823, %v824
  %v826 = vmul.f32 %v825, 1.442695
  %v827 = vpow.pop %v826
  %v828 = vsub.f32 %v801, %v824
  %v829 = vmul.f32 %v828, 1.442695
  %v830 = vpow.pop %v829
  %v831 = vmul.f32 %v827, %v797
  %v832 = vmul.f32 %v830, %v803
  %v833 = vadd.f32 %v831, %v832
  %v834 = vmul.f32 %v827, %v799
  %v835 = vadd.f32 %v834, %v830
  %s836 = scalar_lea.vmem [#allocation2], 40
  %v837 = vld [vmem:[%s836] sm:$0xff]
  %s838 = scalar_lea.vmem [#allocation3], 40
  %v839 = vld [vmem:[%s838] sm:$0xff]
  %v840 = vadd.f32 %v653, %v837
  %v841 = vmax.f32 %v840, %v824
  %v842 = vsub.f32 %v824, %v841
  %v843 = vmul.f32 %v842, 1.442695
  %v844 = vpow.pop %v843
  %v845 = vsub.f32 %v840, %v841
  %v846 = vmul.f32 %v845, 1.442695
  %v847 = vpow.pop %v846
  %v848 = vmul.f32 %v844, %v833
  %v849 = vmul.f32 %v847, %v839
  %v850 = vadd.f32 %v848, %v849
  %v851 = vmul.f32 %v844, %v835
  %v852 = vadd.f32 %v851, %v847
  %v853 = vrcp.pop %v852
  %v854 = vmul.f32 %v850, %v853
  %s855 = scalar_lea.vmem [#allocation4], 40
  %v856 = vld [vmem:[%s855] sm:$0xff]
  %v857 = vmul.f32 %v856, %v854
  %858 = vst.msk [vmem:[%s855] sm:$0xff] %vm64, %v857
  %v859 = vsub.f32 %v824, %v677
  %v860 = vmax.f32 %v859, %v837
  %v861 = vsub.f32 %v859, %v860
  %v862 = vmul.f32 %v861, 1.442695
  %v863 = vpow.pop %v862
  %v864 = vsub.f32 %v837, %v860
  %v865 = vmul.f32 %v864, 1.442695
  %v866 = vpow.pop %v865
  %v867 = vmul.f32 %v863, %v833
  %v868 = vmul.f32 %v866, %v839
  %v869 = vadd.f32 %v867, %v868
  %v870 = vmul.f32 %v863, %v835
  %v871 = vadd.f32 %v870, %v866
  %s872 = scalar_lea.vmem [#allocation2], 48
  %v873 = vld [vmem:[%s872] sm:$0xff]
  %s874 = scalar_lea.vmem [#allocation3], 48
  %v875 = vld [vmem:[%s874] sm:$0xff]
  %v876 = vadd.f32 %v653, %v873
  %v877 = vmax.f32 %v876, %v860
  %v878 = vsub.f32 %v860, %v877
  %v879 = vmul.f32 %v878, 1.442695
  %v880 = vpow.pop %v879
  %v881 = vsub.f32 %v876, %v877
  %v882 = vmul.f32 %v881, 1.442695
  %v883 = vpow.pop %v882
  %v884 = vmul.f32 %v880, %v869
  %v885 = vmul.f32 %v883, %v875
  %v886 = vadd.f32 %v884, %v885
  %v887 = vmul.f32 %v880, %v871
  %v888 = vadd.f32 %v887, %v883
  %v889 = vrcp.pop %v888
  %v890 = vmul.f32 %v886, %v889
  %s891 = scalar_lea.vmem [#allocation4], 48
  %v892 = vld [vmem:[%s891] sm:$0xff]
  %v893 = vmul.f32 %v892, %v890
  %894 = vst.msk [vmem:[%s891] sm:$0xff] %vm64, %v893
  %v895 = vsub.f32 %v860, %v677
  %v896 = vmax.f32 %v895, %v873
  %v897 = vsub.f32 %v895, %v896
  %v898 = vmul.f32 %v897, 1.442695
  %v899 = vpow.pop %v898
  %v900 = vsub.f32 %v873, %v896
  %v901 = vmul.f32 %v900, 1.442695
  %v902 = vpow.pop %v901
  %v903 = vmul.f32 %v899, %v869
  %v904 = vmul.f32 %v902, %v875
  %v905 = vadd.f32 %v903, %v904
  %v906 = vmul.f32 %v899, %v871
  %v907 = vadd.f32 %v906, %v902
  %s908 = scalar_lea.vmem [#allocation2], 56
  %v909 = vld [vmem:[%s908] sm:$0xff]
  %s910 = scalar_lea.vmem [#allocation3], 56
  %v911 = vld [vmem:[%s910] sm:$0xff]
  %v912 = vadd.f32 %v653, %v909
  %v913 = vmax.f32 %v912, %v896
  %v914 = vsub.f32 %v896, %v913
  %v915 = vmul.f32 %v914, 1.442695
  %v916 = vpow.pop %v915
  %v917 = vsub.f32 %v912, %v913
  %v918 = vmul.f32 %v917, 1.442695
  %v919 = vpow.pop %v918
  %v920 = vmul.f32 %v916, %v905
  %v921 = vmul.f32 %v919, %v911
  %v922 = vadd.f32 %v920, %v921
  %v923 = vmul.f32 %v916, %v907
  %v924 = vadd.f32 %v923, %v919
  %v925 = vrcp.pop %v924
  %v926 = vmul.f32 %v922, %v925
  %s927 = scalar_lea.vmem [#allocation4], 56
  %v928 = vld [vmem:[%s927] sm:$0xff]
  %v929 = vmul.f32 %v928, %v926
  %930 = vst.msk [vmem:[%s927] sm:$0xff] %vm64, %v929
  %v931 = vsub.f32 %v896, %v677
  %v932 = vmax.f32 %v931, %v909
  %v933 = vsub.f32 %v931, %v932
  %v934 = vmul.f32 %v933, 1.442695
  %v935 = vpow.pop %v934
  %v936 = vsub.f32 %v909, %v932
  %v937 = vmul.f32 %v936, 1.442695
  %v938 = vpow.pop %v937
  %v939 = vmul.f32 %v935, %v905
  %v940 = vmul.f32 %v938, %v911
  %v941 = vadd.f32 %v939, %v940
  %v942 = vmul.f32 %v935, %v907
  %v943 = vadd.f32 %v942, %v938
  %944 = vst.msk [vmem:[%s14] sm:$0xff] %vm64, %v941
  %945 = vst.msk [vmem:[%s643] sm:$0xff] %vm64, %v943
  %946 = vst.msk [vmem:[%s645] sm:$0xff] %vm64, %v932
  %v947 = vld [vmem:[#allocation4] sm:$0xff]
  %v948 = vld [vmem:[#allocation4 + $0x8] sm:$0xff]
  %v949 = vld [vmem:[#allocation4 + $0x10] sm:$0xff]
  %v950 = vld [vmem:[#allocation4 + $0x18] sm:$0xff]
  %v951 = vld [vmem:[#allocation4 + $0x20] sm:$0xff]
  %v952 = vld [vmem:[#allocation4 + $0x28] sm:$0xff]
  %v953 = vld [vmem:[#allocation4 + $0x30] sm:$0xff]
  %v954 = vld [vmem:[#allocation4 + $0x38] sm:$0xff]
  %v955 = vpack.c.bf16 %v948, %v947
  %v956 = vpack.c.bf16 %v950, %v949
  %v957 = vpack.c.bf16 %v952, %v951
  %v958 = vpack.c.bf16 %v954, %v953
  %v959 = vld [vmem:[%s9] sm:$0xf]
  %v960 = vld [vmem:[%s9 + $0x4] sm:$0xf]
  %v961 = vld [vmem:[%s9 + $0x8] sm:$0xf]
  %v962 = vld [vmem:[%s9 + $0xc] sm:$0xf]
  %v967 = vunpack.c.l.b16 %v959
  %v968 = vunpack.c.l.b16 %v960
  %v969 = vunpack.c.l.b16 %v961
  %v970 = vunpack.c.l.b16 %v962
  %v971 = vpack.c.b16 %v968, %v967
  %v972 = vpack.c.b16 %v970, %v969
  %v976 = vsel %vm64, %v955, 0
  %v979 = vsel %vm64, %v956, 0
  %v982 = vsel %vm64, %v957, 0
  %v985 = vsel %vm64, %v958, 0
  %987 = vmatprep.subr.bf16.mxu0 0
  %988 = vmatpush1.bf16.msra.mxu0 %v971
  %989 = vmatprep.subr.bf16.mxu0 0
  %990 = vmatpush1.bf16.msra.mxu0 %v972
  %991 = vmatprep.subr.bf16.mxu0 0
  %992 = vmatpush1.bf16.msra.mxu0 0
  %993 = vmatprep.subr.bf16.mxu0 0
  %994 = vmatpush1.bf16.msra.mxu0 0
  %995 = vmatprep.subr.bf16.mxu0 0
  %996 = vmatpush1.bf16.msra.mxu0 0
  %997 = vmatprep.subr.bf16.mxu0 0
  %998 = vmatpush1.bf16.msra.mxu0 0
  %999 = vmatprep.subr.bf16.mxu0 0
  %1000 = vmatpush1.bf16.msra.mxu0 0
  %1001 = vmatprep.subr.bf16.mxu0 0
  %1002 = vmatpush1.bf16.msra.mxu0 0
  %1003 = vmatprep.subr.bf16.mxu0 0
  %1004 = vmatpush1.bf16.msra.mxu0 0
  %1005 = vmatprep.subr.bf16.mxu0 0
  %1006 = vmatpush1.bf16.msra.mxu0 0
  %1007 = vmatprep.subr.bf16.mxu0 0
  %1008 = vmatpush1.bf16.msra.mxu0 0
  %1009 = vmatprep.subr.bf16.mxu0 0
  %1010 = vmatpush1.bf16.msra.mxu0 0
  %1011 = vmatprep.subr.bf16.mxu0 0
  %1012 = vmatpush1.bf16.msra.mxu0 0
  %1013 = vmatprep.subr.bf16.mxu0 0
  %1014 = vmatpush1.bf16.msra.mxu0 0
  %1015 = vmatprep.subr.bf16.mxu0 0
  %1016 = vmatpush1.bf16.msra.mxu0 0
  %1017 = vmatprep.subr.bf16.mxu0 0
  %1018 = vmatpush1.bf16.msra.mxu0 0
  %1019 = vmatprep.mubr.bf16.mxu0 0
  %1020 = vmatmul.mubr.bf16.gmra.mrb[0].mxu0 %v976
  %v1021 = vpop.f32.mrb[0].mxu0
  %v1022 = vadd.f32 0.0, %v1021
  %v1023 = vpop.f32.mrb[0].mxu0
  %v1024 = vpop.f32.mrb[0].mxu0
  %v1025 = vadd.f32 0.0, %v1024
  %v1026 = vpop.f32.mrb[0].mxu0
  %1027 = vmatprep.mubr.bf16.mxu0 0
  %1028 = vmatmul.mubr.bf16.gmra.mrb[0].mxu0 %v979
  %v1029 = vpop.f32.mrb[0].mxu0
  %v1030 = vadd.f32 0.0, %v1029
  %v1031 = vpop.f32.mrb[0].mxu0
  %v1032 = vpop.f32.mrb[0].mxu0
  %v1033 = vadd.f32 0.0, %v1032
  %v1034 = vpop.f32.mrb[0].mxu0
  %1035 = vmatprep.mubr.bf16.mxu0 0
  %1036 = vmatmul.mubr.bf16.gmra.mrb[0].mxu0 %v982
  %v1037 = vpop.f32.mrb[0].mxu0
  %v1038 = vadd.f32 0.0, %v1037
  %v1039 = vpop.f32.mrb[0].mxu0
  %v1040 = vpop.f32.mrb[0].mxu0
  %v1041 = vadd.f32 0.0, %v1040
  %v1042 = vpop.f32.mrb[0].mxu0
  %1043 = vmatprep.mubr.bf16.mxu0 0
  %1044 = vmatmul.mubr.bf16.gmra.mrb[0].mxu0 %v985
  %v1045 = vpop.f32.mrb[0].mxu0
  %v1046 = vadd.f32 0.0, %v1045
  %v1047 = vpop.f32.mrb[0].mxu0
  %v1048 = vpop.f32.mrb[0].mxu0
  %v1049 = vadd.f32 0.0, %v1048
  %v1050 = vpop.f32.mrb[0].mxu0
  %1051 = vdwg.mxu0
  %v1052 = vadd.f32 %v54, %v1022
  %v1053 = vadd.f32 %v55, %v1025
  %v1054 = vadd.f32 %v56, %v1030
  %v1055 = vadd.f32 %v57, %v1033
  %v1056 = vadd.f32 %v58, %v1038
  %v1057 = vadd.f32 %v59, %v1041
  %v1058 = vadd.f32 %v60, %v1046
  %v1059 = vadd.f32 %v61, %v1049
  %1060 = vst.msk [vmem:[%s12] sm:$0xff] %vm64, %v1052
  %1061 = vst.msk [vmem:[%s12 + $0x8] sm:$0xff] %vm64, %v1053
  %1062 = vst.msk [vmem:[%s12 + $0x10] sm:$0xff] %vm64, %v1054
  %1063 = vst.msk [vmem:[%s12 + $0x18] sm:$0xff] %vm64, %v1055
  %1064 = vst.msk [vmem:[%s12 + $0x20] sm:$0xff] %vm64, %v1056
  %1065 = vst.msk [vmem:[%s12 + $0x28] sm:$0xff] %vm64, %v1057
  %1066 = vst.msk [vmem:[%s12 + $0x30] sm:$0xff] %vm64, %v1058
  %1067 = vst.msk [vmem:[%s12 + $0x38] sm:$0xff] %vm64, %v1059
  // Predicated region
  $region54: #{rwkv_forward.7} parent=0 // pred_check
    _
  $region55: #{rwkv_forward.7} parent=0 // pred_check_branch
    %1069 = sbr.rel (0) target = $region57
  $region56: #{rwkv_forward.7} parent=0 // pred_region
    _
  $region57: #{rwkv_forward.7} parent=0 // pred_fallthru
    _
  // Predicated region
  $region58: #{rwkv_forward.7} parent=0 // pred_check
    _
  $region59: #{rwkv_forward.7} parent=0 // pred_check_branch
    %1071 = sbr.rel (0) target = $region61
  $region60: #{rwkv_forward.7} parent=0 // pred_region
    _
  $region61: #{rwkv_forward.7} parent=0 // pred_fallthru
    _
  // Predicated region
  $region62: #{rwkv_forward.7} parent=0 // pred_check
    _
  $region63: #{rwkv_forward.7} parent=0 // pred_check_branch
    %1073 = sbr.rel (0) target = $region65
  $region64: #{rwkv_forward.7} parent=0 // pred_region
    _
  $region65: #{rwkv_forward.7} parent=0 // pred_fallthru
    _
  // Predicated region
  $region66: #{rwkv_forward.7} parent=0 // pred_check
    _
  $region67: #{rwkv_forward.7} parent=0 // pred_check_branch
    %1075 = sbr.rel (0) target = $region69
  $region68: #{rwkv_forward.7} parent=0 // pred_region
    _
  $region69: #{rwkv_forward.7} parent=0 // pred_fallthru
    _
  // Predicated region
  $region70: #{rwkv_forward.7} parent=0 // pred_check
    _
  $region71: #{rwkv_forward.7} parent=0 // pred_check_branch
    %1077 = sbr.rel (0) target = $region73
  $region72: #{rwkv_forward.7} parent=0 // pred_region
    _
  $region73: #{rwkv_forward.7} parent=0 // pred_fallthru
    _
  // Predicated region
  $region74: #{rwkv_forward.7} parent=0 // pred_check
    _
  $region75: #{rwkv_forward.7} parent=0 // pred_check_branch
    %1079 = sbr.rel (0) target = $region77
  $region76: #{rwkv_forward.7} parent=0 // pred_region
    _
  $region77: #{rwkv_forward.7} parent=0 // pred_fallthru
    _

</llo_original>
